<compile_context>
chip_gen: v7x
topology: tpu7x:2x2x1
jax: 0.10.0
libtpu: 0.0.40
codegen_flags: <defaults>
</compile_context>

<pallas_src>
import functools

import jax
import jax.numpy as jnp
from jax.experimental import pallas as pl
from jax.experimental.pallas import tpu as pltpu

EPS = 1e-5  # torch.nn.LayerNorm default eps


def _layernorm(x, g, b):
    mu = jnp.mean(x, axis=-1, keepdims=True)
    c = x - mu
    var = jnp.mean(c * c, axis=-1, keepdims=True)
    return c * jax.lax.rsqrt(var + EPS) * g + b


def _pick_tile(n, cap):
    """Largest tile <= cap that divides n and is a multiple of 8, or n itself."""
    if n <= cap:
        return n
    t = (min(cap, n) // 8) * 8
    while t >= 8:
        if n % t == 0:
            return t
        t -= 8
    # TODO(synk): pad / mask ragged tails instead of falling back to the full extent.
    return n


def _chip_budget():
    """Per-generation VMEM budgets (v7x has 64 MiB, v5e/v6e have 128 MiB)."""
    vmem = 64 * 1024 * 1024
    try:
        info = pltpu.get_tpu_info()
        vmem = int(getattr(info, "vmem_capacity_bytes", vmem) or vmem)
    except Exception:
        pass
    if vmem >= 100 * 1024 * 1024:          # v5e / v6e: grow tiles, raise the limit
        return dict(z_cap=16 << 20, pair_cap=8 << 20, limit=96 << 20)
    return dict(z_cap=6 << 20, pair_cap=3 << 20, limit=48 << 20)   # v7x (64 MiB)


# ----------------------------------------------------------------------------
# Kernel 1: fused  PairToSequence bias + layernorm_1 + gated MHSA + residual
#           (K/V + full-seq LN hoisted into per-batch VMEM scratch)
# ----------------------------------------------------------------------------
def _attn_kernel(xf_ref, xt_ref, z_ref, m_ref,
                 ln1g_ref, ln1b_ref, zg_ref, zb_ref, p2swt_ref,
                 wq_ref, wkv_ref, wg_ref, bg_ref, wo_ref, bo_ref,
                 o_ref, k_scr, v_scr, *, num_heads, head_width):
    H, hw = num_heads, head_width
    Cs = H * hw
    scale = head_width ** -0.5
    bf16 = jnp.bfloat16

    # ---- per-batch prologue: full-seq LayerNorm + fused K|V projection ------
    @pl.when(pl.program_id(1) == 0)
    def _():
        x_full = xf_ref[0]                                          # (L, Cs)
        Lf = x_full.shape[0]
        yf = _layernorm(x_full, ln1g_ref[...], ln1b_ref[...]).astype(bf16)
        kv = jnp.dot(yf, wkv_ref[...], preferred_element_type=jnp.float32)  # (L, 2Cs)
        k_scr[...] = jnp.transpose(kv[:, :Cs].reshape(Lf, H, hw), (1, 0, 2)).astype(bf16)
        v_scr[...] = jnp.transpose(kv[:, Cs:].reshape(Lf, H, hw), (1, 0, 2)).astype(bf16)

    # ---- per-tile work -------------------------------------------------------
    x_tile = xt_ref[0]                                              # (Tq, Cs)
    Tq = x_tile.shape[0]
    yt = _layernorm(x_tile, ln1g_ref[...], ln1b_ref[...]).astype(bf16)

    q = jnp.dot(yt, wq_ref[...], preferred_element_type=jnp.float32) * scale  # (Tq, Cs)
    q3 = jnp.transpose(q.reshape(Tq, H, hw), (1, 0, 2)).astype(bf16)          # (H, Tq, hw)

    # fused PairToSequence bias: LN(z) @ W, head-major; never written to HBM
    z_t = z_ref[0]                                                  # (Tq, L, Cz)
    L, Cz = z_t.shape[1], z_t.shape[2]
    z_ln = _layernorm(z_t.reshape(Tq * L, Cz), zg_ref[...], zb_ref[...]).astype(bf16)
    bias = jax.lax.dot_general(p2swt_ref[...], z_ln, (((1,), (1,)), ((), ())),
                               preferred_element_type=jnp.float32).reshape(H, Tq, L)
    madd = jnp.where(m_ref[0] > 0.5, 0.0, -1e30)                    # (1, L)
    bias = bias + madd                                              # fold key mask once

    # batched-head attention (bf16 MXU operands, f32 softmax)
    a = jax.lax.dot_general(q3, k_scr[...], (((2,), (2,)), ((0,), (0,))),
                            preferred_element_type=jnp.float32)     # (H, Tq, L)
    a = a + bias
    a = a - jnp.max(a, axis=-1, keepdims=True)
    e = jnp.exp(a)
    pr = e * pl.reciprocal(jnp.sum(e, axis=-1, keepdims=True), approx=True)
    yh = jax.lax.dot_general(pr.astype(bf16), v_scr[...], (((2,), (1,)), ((0,), (0,))),
                             preferred_element_type=jnp.float32)    # (H, Tq, hw)
    y = jnp.transpose(yh, (1, 0, 2)).reshape(Tq, Cs)                # (Tq, Cs) in (h c)

    gate = jax.nn.sigmoid(jnp.dot(yt, wg_ref[...], preferred_element_type=jnp.float32)
                          + bg_ref[...])
    y = gate * y
    y = jnp.dot(y.astype(bf16), wo_ref[...], preferred_element_type=jnp.float32) + bo_ref[...]
    o_ref[0] = x_tile + y                                           # residual (dropout p=0)


def seq_attention_block(seq, z, mask, p, budget):
    B, L, Cs = seq.shape
    Cz = z.shape[-1]
    H, hw = p["num_heads"], p["head_width"]
    bf16 = jnp.bfloat16

    # one-time relayout: interleaved (h,(q,k,v),c) proj columns -> head-major q | k|v
    w3 = p["attn_wqkv"].reshape(Cs, H, 3, hw)
    wq = w3[:, :, 0, :].reshape(Cs, Cs).astype(bf16)
    wkv = jnp.concatenate([w3[:, :, 1, :].reshape(Cs, Cs),
                           w3[:, :, 2, :].reshape(Cs, Cs)], axis=1).astype(bf16)  # (Cs,2Cs)
    p2s_wt = p["p2s_w"].T.astype(bf16)                             # (H, Cz)

    # query-row tile: keep the (Tq, L, Cz) pairwise slab within the per-chip cap
    cap_rows = max(8, budget["z_cap"] // max(1, L * Cz * 4))
    Tq = _pick_tile(L, min(256, cap_rows))
    mask3 = mask.reshape(B, 1, L).astype(jnp.float32)

    kern = functools.partial(_attn_kernel, num_heads=H, head_width=hw)
    # TODO(synk): flash-style key-dim tiling would decouple Tq from the z-slab size on v7x.
    return pl.pallas_call(
        kern,
        out_shape=jax.ShapeDtypeStruct((B, L, Cs), jnp.float32),
        grid=(B, L // Tq),
        in_specs=[
            pl.BlockSpec((1, L, Cs), lambda b, i: (b, 0, 0)),        # x_full (constant idx)
            pl.BlockSpec((1, Tq, Cs), lambda b, i: (b, i, 0)),       # x_tile
            pl.BlockSpec((1, Tq, L, Cz), lambda b, i: (b, i, 0, 0)),  # z tile
            pl.BlockSpec((1, 1, L), lambda b, i: (b, 0, 0)),         # mask
            pl.BlockSpec((1, Cs), lambda b, i: (0, 0)),
            pl.BlockSpec((1, Cs), lambda b, i: (0, 0)),
            pl.BlockSpec((1, Cz), lambda b, i: (0, 0)),
            pl.BlockSpec((1, Cz), lambda b, i: (0, 0)),
            pl.BlockSpec((H, Cz), lambda b, i: (0, 0)),
            pl.BlockSpec((Cs, Cs), lambda b, i: (0, 0)),
            pl.BlockSpec((Cs, 2 * Cs), lambda b, i: (0, 0)),
            pl.BlockSpec((Cs, Cs), lambda b, i: (0, 0)),
            pl.BlockSpec((1, Cs), lambda b, i: (0, 0)),
            pl.BlockSpec((Cs, Cs), lambda b, i: (0, 0)),
            pl.BlockSpec((1, Cs), lambda b, i: (0, 0)),
        ],
        out_specs=pl.BlockSpec((1, Tq, Cs), lambda b, i: (b, i, 0)),
        scratch_shapes=[pltpu.VMEM((H, L, hw), bf16),               # K (head-major, per batch)
                        pltpu.VMEM((H, L, hw), bf16)],              # V
        compiler_params=pltpu.CompilerParams(
            # inner axis carries the K/V scratch -> "arbitrary"; batch shards megacore
            dimension_semantics=("parallel", "arbitrary"),
            vmem_limit_bytes=budget["limit"]),
    )(seq, seq, z, mask3,
      p["ln1_g"].reshape(1, -1), p["ln1_b"].reshape(1, -1),
      p["p2s_g"].reshape(1, -1), p["p2s_b"].reshape(1, -1),
      p2s_wt, wq, wkv,
      p["attn_wg"].astype(bf16), p["attn_bg"].reshape(1, -1),
      p["attn_wo"].astype(bf16), p["attn_bo"].reshape(1, -1))


# ----------------------------------------------------------------------------
# Kernel 2: fused  mlp_seq (residual)  +  SequenceToPair layernorm/proj
# ----------------------------------------------------------------------------
def _seq_mlp_proj_kernel(x_ref, mg_ref, mb_ref, w1_ref, b1_ref, w2_ref, b2_ref,
                         sg_ref, sb_ref, wp_ref, bp_ref, oseq_ref, os_ref):
    bf16 = jnp.bfloat16
    x = x_ref[...]
    ln1 = _layernorm(x, mg_ref[...], mb_ref[...]).astype(bf16)
    h = jnp.maximum(jnp.dot(ln1, w1_ref[...], preferred_element_type=jnp.float32)
                    + b1_ref[...], 0.0)
    seq_out = x + jnp.dot(h.astype(bf16), w2_ref[...],
                          preferred_element_type=jnp.float32) + b2_ref[...]
    oseq_ref[...] = seq_out
    ln2 = _layernorm(seq_out, sg_ref[...], sb_ref[...]).astype(bf16)
    os_ref[...] = jnp.dot(ln2, wp_ref[...], preferred_element_type=jnp.float32) + bp_ref[...]


def mlp_seq_and_pair_proj(seq2d, p, budget):
    N, Cs = seq2d.shape
    Cz = p["s2p_wproj"].shape[1]
    bf16 = jnp.bfloat16
    # bound the live f32 hidden (T, 4*Cs) to ~4 MiB
    rows_cap = max(8, (4 << 20) // max(1, 16 * Cs))
    T = _pick_tile(N, min(512, rows_cap))
    # TODO(synk): chunk the 4*Cs hidden (ReLU-chunk accumulate) / Buffered(1) the weights
    # when Cs is large enough that the two bf16 MLP weights dominate VMEM.
    return pl.pallas_call(
        _seq_mlp_proj_kernel,
        out_shape=(jax.ShapeDtypeStruct((N, Cs), jnp.float32),
                   jax.ShapeDtypeStruct((N, Cz), jnp.float32)),
        grid=(N // T,),
        in_specs=[
            pl.BlockSpec((T, Cs), lambda i: (i, 0)),
            pl.BlockSpec((1, Cs), lambda i: (0, 0)),
            pl.BlockSpec((1, Cs), lambda i: (0, 0)),
            pl.BlockSpec((Cs, 4 * Cs), lambda i: (0, 0)),
            pl.BlockSpec((1, 4 * Cs), lambda i: (0, 0)),
            pl.BlockSpec((4 * Cs, Cs), lambda i: (0, 0)),
            pl.BlockSpec((1, Cs), lambda i: (0, 0)),
            pl.BlockSpec((1, Cs), lambda i: (0, 0)),
            pl.BlockSpec((1, Cs), lambda i: (0, 0)),
            pl.BlockSpec((Cs, Cz), lambda i: (0, 0)),
            pl.BlockSpec((1, Cz), lambda i: (0, 0)),
        ],
        out_specs=(pl.BlockSpec((T, Cs), lambda i: (i, 0)),
                   pl.BlockSpec((T, Cz), lambda i: (i, 0))),
        input_output_aliases={0: 0},          # seq in -> seq out (in-place in HBM)
        compiler_params=pltpu.CompilerParams(
            dimension_semantics=("parallel",),
            vmem_limit_bytes=budget["limit"]),
    )(seq2d,
      p["mseq_g"].reshape(1, -1), p["mseq_b"].reshape(1, -1),
      p["mseq_w1"].astype(bf16), p["mseq_b1"].reshape(1, -1),
      p["mseq_w2"].astype(bf16), p["mseq_b2"].reshape(1, -1),
      p["s2p_g"].reshape(1, -1), p["s2p_b"].reshape(1, -1),
      p["s2p_wproj"].astype(bf16), p["s2p_bproj"].reshape(1, -1))


# ----------------------------------------------------------------------------
# Kernel 3: fused  SequenceToPair (outer prod/diff + o_proj + residual)  +  mlp_pair
# ----------------------------------------------------------------------------
def _pair_kernel(sf_ref, st_ref, z_ref, swo_ref, sbo_ref,
                 mg_ref, mb_ref, w1_ref, b1_ref, w2_ref, b2_ref,
                 o_ref, *, inner_dim):
    bf16 = jnp.bfloat16
    I = inner_dim
    s_full = sf_ref[0]                     # (L,  2I)  -> q  (pair column index j)
    s_tile = st_ref[0]                     # (Ti, 2I)  -> k  (pair row index i, this tile)
    Ti, L = s_tile.shape[0], s_full.shape[0]

    qv = s_full[:, :I]
    kv = s_tile[:, I:]
    prod = qv[None, :, :] * kv[:, None, :]                          # (Ti, L, I)
    diff = qv[None, :, :] - kv[:, None, :]
    x = jnp.concatenate([prod, diff], axis=-1).reshape(Ti * L, 2 * I).astype(bf16)
    y = jnp.dot(x, swo_ref[...], preferred_element_type=jnp.float32) + sbo_ref[...]
    Cz = y.shape[-1]
    z_new = z_ref[0].reshape(Ti * L, Cz) + y                        # SequenceToPair residual

    # TODO(synk): chunk the (Ti*L, 4*Cz) hidden on v7x if Ti*L grows large.
    ln = _layernorm(z_new, mg_ref[...], mb_ref[...]).astype(bf16)
    h = jnp.maximum(jnp.dot(ln, w1_ref[...], preferred_element_type=jnp.float32)
                    + b1_ref[...], 0.0)
    out = jnp.dot(h.astype(bf16), w2_ref[...], preferred_element_type=jnp.float32) + b2_ref[...]
    o_ref[0] = (z_new + out).reshape(Ti, L, Cz)                     # mlp_pair residual


def pair_update(s, z, p, budget):
    B, L, Cz = s.shape
    inner = Cz // 2
    bf16 = jnp.bfloat16
    cap_rows = max(8, budget["pair_cap"] // max(1, L * Cz * 4))
    Ti = _pick_tile(L, min(128, cap_rows))
    kern = functools.partial(_pair_kernel, inner_dim=inner)
    return pl.pallas_call(
        kern,
        out_shape=jax.ShapeDtypeStruct(z.shape, jnp.float32),
        grid=(B, L // Ti),
        in_specs=[
            pl.BlockSpec((1, L, Cz), lambda b, i: (b, 0, 0)),
            pl.BlockSpec((1, Ti, Cz), lambda b, i: (b, i, 0)),
            pl.BlockSpec((1, Ti, L, Cz), lambda b, i: (b, i, 0, 0)),
            pl.BlockSpec((Cz, Cz), lambda b, i: (0, 0)),
            pl.BlockSpec((1, Cz), lambda b, i: (0, 0)),
            pl.BlockSpec((1, Cz), lambda b, i: (0, 0)),
            pl.BlockSpec((1, Cz), lambda b, i: (0, 0)),
            pl.BlockSpec((Cz, 4 * Cz), lambda b, i: (0, 0)),
            pl.BlockSpec((1, 4 * Cz), lambda b, i: (0, 0)),
            pl.BlockSpec((4 * Cz, Cz), lambda b, i: (0, 0)),
            pl.BlockSpec((1, Cz), lambda b, i: (0, 0)),
        ],
        out_specs=pl.BlockSpec((1, Ti, L, Cz), lambda b, i: (b, i, 0, 0)),
        input_output_aliases={2: 0},          # z in -> z out (avoid a second B*L*L*Cz buffer)
        compiler_params=pltpu.CompilerParams(
            dimension_semantics=("parallel", "parallel"),
            vmem_limit_bytes=budget["limit"]),
    )(s, s, z,
      p["s2p_wo"].astype(bf16), p["s2p_bo"].reshape(1, -1),
      p["mpair_g"].reshape(1, -1), p["mpair_b"].reshape(1, -1),
      p["mpair_w1"].astype(bf16), p["mpair_b1"].reshape(1, -1),
      p["mpair_w2"].astype(bf16), p["mpair_b2"].reshape(1, -1))


# ----------------------------------------------------------------------------
# Full block forward (3 fused Pallas kernels; only free metadata reshapes outside).
# ----------------------------------------------------------------------------
def triangular_block_forward(p, seq, z, mask):
    B, L, Cs = seq.shape
    Cz = z.shape[-1]
    assert Cz % 2 == 0 and p["s2p_wproj"].shape[1] == Cz
    budget = _chip_budget()

    seq = seq_attention_block(seq, z, mask, p, budget)                 # K1
    seq2d, s2d = mlp_seq_and_pair_proj(seq.reshape(B * L, Cs), p, budget)  # K2
    seq = seq2d.reshape(B, L, Cs)
    s = s2d.reshape(B, L, Cz)
    z = pair_update(s, z, p, budget)                                   # K3
    return seq, z


# ----------------------------------------------------------------------------
# Pure-JAX f32 reference (same math as the PyTorch module) for correctness check.
# ----------------------------------------------------------------------------
def _ln_ref(x, g, b):
    mu = x.mean(-1, keepdims=True)
    var = ((x - mu) ** 2).mean(-1, keepdims=True)
    return (x - mu) / jnp.sqrt(var + EPS) * g + b


def reference_forward(p, seq, z, mask):
    B, L, Cs = seq.shape
    Cz = z.shape[-1]
    H, hw = p["num_heads"], p["head_width"]

    bias = _ln_ref(z, p["p2s_g"], p["p2s_b"]) @ p["p2s_w"]              # (B,L,L,H)

    y = _ln_ref(seq, p["ln1_g"], p["ln1_b"])
    qkv = y @ p["attn_wqkv"]
    t = qkv.reshape(B, L, H, 3 * hw).transpose(0, 2, 1, 3)               # (B,H,L,3hw)
    q, k, v = t[..., :hw] * hw ** (-0.5), t[..., hw:2 * hw], t[..., 2 * hw:]
    a = jnp.einsum("bhqc,bhkc->bhqk", q, k) + jnp.transpose(bias, (0, 3, 1, 2))
    a = jnp.where(mask[:, None, None, :] > 0.5, a, -1e30)
    a = jax.nn.softmax(a, axis=-1)
    yo = jnp.einsum("bhqk,bhkc->bqhc", a, v).reshape(B, L, Cs)
    gate = jax.nn.sigmoid(y @ p["attn_wg"] + p["attn_bg"])
    yo = gate * yo
    yo = yo @ p["attn_wo"] + p["attn_bo"]
    seq = seq + yo

    seq = seq + (jnp.maximum(_ln_ref(seq, p["mseq_g"], p["mseq_b"]) @ p["mseq_w1"]
                             + p["mseq_b1"], 0.0) @ p["mseq_w2"] + p["mseq_b2"])

    s = _ln_ref(seq, p["s2p_g"], p["s2p_b"]) @ p["s2p_wproj"] + p["s2p_bproj"]
    inner = Cz // 2
    q_, k_ = s[..., :inner], s[..., inner:]
    prod = q_[:, None, :, :] * k_[:, :, None, :]
    diff = q_[:, None, :, :] - k_[:, :, None, :]
    x = jnp.concatenate([prod, diff], axis=-1)
    z = z + x @ p["s2p_wo"] + p["s2p_bo"]

    z = z + (jnp.maximum(_ln_ref(z, p["mpair_g"], p["mpair_b"]) @ p["mpair_w1"]
                         + p["mpair_b1"], 0.0) @ p["mpair_w2"] + p["mpair_b2"])
    return seq, z


# ----------------------------------------------------------------------------
# Deterministic synthetic parameters (shapes follow the module's __init__).
# ----------------------------------------------------------------------------
def make_params(key, Cs, Cz, seq_head_width):
    H = Cs // seq_head_width
    ks = jax.random.split(key, 16)

    def nrm(k, shape, scale=0.1):
        return scale * jax.random.normal(k, shape, jnp.float32)

    return dict(
        num_heads=H, head_width=seq_head_width,
        # PairToSequence
        p2s_g=jnp.ones((Cz,), jnp.float32), p2s_b=jnp.zeros((Cz,), jnp.float32),
        p2s_w=nrm(ks[0], (Cz, H)),
        # layernorm_1 + gated attention
        ln1_g=jnp.ones((Cs,), jnp.float32), ln1_b=jnp.zeros((Cs,), jnp.float32),
        attn_wqkv=nrm(ks[1], (Cs, 3 * Cs)),
        attn_wg=nrm(ks[2], (Cs, Cs)), attn_bg=jnp.ones((Cs,), jnp.float32),
        attn_wo=nrm(ks[3], (Cs, Cs)), attn_bo=nrm(ks[4], (Cs,)),
        # mlp_seq
        mseq_g=jnp.ones((Cs,), jnp.float32), mseq_b=jnp.zeros((Cs,), jnp.float32),
        mseq_w1=nrm(ks[5], (Cs, 4 * Cs)), mseq_b1=nrm(ks[6], (4 * Cs,)),
        mseq_w2=nrm(ks[7], (4 * Cs, Cs)), mseq_b2=nrm(ks[8], (Cs,)),
        # SequenceToPair (inner = Cz // 2, so 2*inner = Cz)
        s2p_g=jnp.ones((Cs,), jnp.float32), s2p_b=jnp.zeros((Cs,), jnp.float32),
        s2p_wproj=nrm(ks[9], (Cs, Cz)), s2p_bproj=nrm(ks[10], (Cz,)),
        s2p_wo=nrm(ks[11], (Cz, Cz)), s2p_bo=nrm(ks[12], (Cz,)),
        # mlp_pair
        mpair_g=jnp.ones((Cz,), jnp.float32), mpair_b=jnp.zeros((Cz,), jnp.float32),
        mpair_w1=nrm(ks[13], (Cz, 4 * Cz)), mpair_b1=jnp.zeros((4 * Cz,), jnp.float32),
        mpair_w2=nrm(ks[14], (4 * Cz, Cz)), mpair_b2=nrm(ks[15], (Cz,)),
    )


if __name__ == "__main__":
    key = jax.random.PRNGKey(0)
    B, L = 2, 16
    Cs, Cz = 64, 64                 # sequence_state_dim, pairwise_state_dim
    seq_head_width = 16             # -> 4 sequence heads
    kp, ks_, kz = jax.random.split(key, 3)

    params = make_params(kp, Cs, Cz, seq_head_width)
    seq = jax.random.normal(ks_, (B, L, Cs), jnp.float32)
    z = jax.random.normal(kz, (B, L, L, Cz), jnp.float32)
    mask = jnp.ones((B, L), jnp.float32)

    # compute the pure-f32 reference first (also keeps it independent of the
    # in-place z/seq aliasing inside the Pallas calls)
    ref_seq, ref_z = reference_forward(params, seq, z, mask)
    jax.block_until_ready((ref_seq, ref_z))

    out_seq, out_z = triangular_block_forward(params, seq, z, mask)
    jax.block_until_ready((out_seq, out_z))

    # Kernels use bf16 matmul operands (f32 accumulation) + EUP approx reciprocal,
    # so compare against the pure-f32 reference with a correspondingly loose tolerance.
    assert jnp.allclose(out_seq, ref_seq, atol=7.5e-2, rtol=7.5e-2), "sequence_state mismatch"
    assert jnp.allclose(out_z, ref_z, atol=7.5e-2, rtol=7.5e-2), "pairwise_state mismatch"
    print("KERNEL_OK")
</pallas_src>

<mosaic_0001>
module attributes {stable_mosaic.version = 11 : i64} {
  func.func @_attn_kernel(%arg0: i32, %arg1: i32, %arg2: memref<1x16x64xf32, #tpu.memory_space<vmem>>, %arg3: memref<1x16x64xf32, #tpu.memory_space<vmem>>, %arg4: memref<1x16x16x64xf32, #tpu.memory_space<vmem>>, %arg5: memref<1x1x16xf32, #tpu.memory_space<vmem>>, %arg6: memref<1x64xf32, #tpu.memory_space<vmem>>, %arg7: memref<1x64xf32, #tpu.memory_space<vmem>>, %arg8: memref<1x64xf32, #tpu.memory_space<vmem>>, %arg9: memref<1x64xf32, #tpu.memory_space<vmem>>, %arg10: memref<4x64xbf16, #tpu.memory_space<vmem>>, %arg11: memref<64x64xbf16, #tpu.memory_space<vmem>>, %arg12: memref<64x128xbf16, #tpu.memory_space<vmem>>, %arg13: memref<64x64xbf16, #tpu.memory_space<vmem>>, %arg14: memref<1x64xf32, #tpu.memory_space<vmem>>, %arg15: memref<64x64xbf16, #tpu.memory_space<vmem>>, %arg16: memref<1x64xf32, #tpu.memory_space<vmem>>, %arg17: memref<1x16x64xf32, #tpu.memory_space<vmem>>, %arg18: memref<4x16x16xbf16, #tpu.memory_space<vmem>>, %arg19: memref<4x16x16xbf16, #tpu.memory_space<vmem>>) attributes {dimension_semantics = [#tpu.dimension_semantics<parallel>, #tpu.dimension_semantics<arbitrary>], iteration_bounds = array<i64: 2, 1>, scalar_prefetch = 0 : i64, scratch_operands = 2 : i64, tpu.core_type = #tpu.core_type<tc>, window_params = [{transform_indices = @transform_0, window_bounds = array<i64: 1, 16, 64>}, {transform_indices = @transform_1, window_bounds = array<i64: 1, 16, 64>}, {transform_indices = @transform_2, window_bounds = array<i64: 1, 16, 16, 64>}, {transform_indices = @transform_3, window_bounds = array<i64: 1, 1, 16>}, {pipeline_mode = #tpu.pipeline_mode<synchronous>, transform_indices = @transform_4, window_bounds = array<i64: 1, 64>}, {pipeline_mode = #tpu.pipeline_mode<synchronous>, transform_indices = @transform_5, window_bounds = array<i64: 1, 64>}, {pipeline_mode = #tpu.pipeline_mode<synchronous>, transform_indices = @transform_6, window_bounds = array<i64: 1, 64>}, {pipeline_mode = #tpu.pipeline_mode<synchronous>, transform_indices = @transform_7, window_bounds = array<i64: 1, 64>}, {pipeline_mode = #tpu.pipeline_mode<synchronous>, transform_indices = @transform_8, window_bounds = array<i64: 4, 64>}, {pipeline_mode = #tpu.pipeline_mode<synchronous>, transform_indices = @transform_9, window_bounds = array<i64: 64, 64>}, {pipeline_mode = #tpu.pipeline_mode<synchronous>, transform_indices = @transform_10, window_bounds = array<i64: 64, 128>}, {pipeline_mode = #tpu.pipeline_mode<synchronous>, transform_indices = @transform_11, window_bounds = array<i64: 64, 64>}, {pipeline_mode = #tpu.pipeline_mode<synchronous>, transform_indices = @transform_12, window_bounds = array<i64: 1, 64>}, {pipeline_mode = #tpu.pipeline_mode<synchronous>, transform_indices = @transform_13, window_bounds = array<i64: 64, 64>}, {pipeline_mode = #tpu.pipeline_mode<synchronous>, transform_indices = @transform_14, window_bounds = array<i64: 1, 64>}, {transform_indices = @transform_15, window_bounds = array<i64: 1, 16, 64>}]} {
    %c0_i32 = arith.constant 0 : i32
    %0 = arith.cmpi eq, %arg1, %c0_i32 : i32
    %1 = arith.extui %0 : i1 to i32
    %c0_i32_0 = arith.constant 0 : i32
    %2 = arith.cmpi ne, %1, %c0_i32_0 : i32
    scf.if %2 {
      %c0_61 = arith.constant 0 : index
      %c0_62 = arith.constant 0 : index
      %c0_63 = arith.constant 0 : index
      %113 = vector.load %arg2[%c0_61, %c0_62, %c0_63] : memref<1x16x64xf32, #tpu.memory_space<vmem>>, vector<1x16x64xf32>
      %114 = vector.shape_cast %113 : vector<1x16x64xf32> to vector<16x64xf32>
      %c0_64 = arith.constant 0 : index
      %c0_65 = arith.constant 0 : index
      %115 = vector.load %arg6[%c0_64, %c0_65] : memref<1x64xf32, #tpu.memory_space<vmem>>, vector<1x64xf32>
      %c0_66 = arith.constant 0 : index
      %c0_67 = arith.constant 0 : index
      %116 = vector.load %arg7[%c0_66, %c0_67] : memref<1x64xf32, #tpu.memory_space<vmem>>, vector<1x64xf32>
      %cst_68 = arith.constant dense<0.000000e+00> : vector<16xf32>
      %117 = vector.multi_reduction <add>, %114, %cst_68 [1] : vector<16x64xf32> to vector<16xf32>
      %118 = vector.shape_cast %117 : vector<16xf32> to vector<16x1xf32>
      %cst_69 = arith.constant 6.400000e+01 : f32
      %119 = vector.broadcast %cst_69 : f32 to vector<16x1xf32>
      %120 = arith.divf %118, %119 : vector<16x1xf32>
      %121 = vector.broadcast %120 : vector<16x1xf32> to vector<16x64xf32>
      %122 = arith.subf %114, %121 : vector<16x64xf32>
      %123 = arith.mulf %122, %122 : vector<16x64xf32>
      %cst_70 = arith.constant dense<0.000000e+00> : vector<16xf32>
      %124 = vector.multi_reduction <add>, %123, %cst_70 [1] : vector<16x64xf32> to vector<16xf32>
      %125 = vector.shape_cast %124 : vector<16xf32> to vector<16x1xf32>
      %cst_71 = arith.constant 6.400000e+01 : f32
      %126 = vector.broadcast %cst_71 : f32 to vector<16x1xf32>
      %127 = arith.divf %125, %126 : vector<16x1xf32>
      %cst_72 = arith.constant 9.99999974E-6 : f32
      %128 = vector.broadcast %cst_72 : f32 to vector<16x1xf32>
      %129 = arith.addf %127, %128 : vector<16x1xf32>
      %130 = math.rsqrt %129 : vector<16x1xf32>
      %131 = vector.broadcast %130 : vector<16x1xf32> to vector<16x64xf32>
      %132 = arith.mulf %122, %131 : vector<16x64xf32>
      %133 = vector.broadcast %115 : vector<1x64xf32> to vector<16x64xf32>
      %134 = arith.mulf %132, %133 : vector<16x64xf32>
      %135 = vector.broadcast %116 : vector<1x64xf32> to vector<16x64xf32>
      %136 = arith.addf %134, %135 : vector<16x64xf32>
      %137 = arith.truncf %136 : vector<16x64xf32> to vector<16x64xbf16>
      %c0_73 = arith.constant 0 : index
      %c0_74 = arith.constant 0 : index
      %138 = vector.load %arg12[%c0_73, %c0_74] : memref<64x128xbf16, #tpu.memory_space<vmem>>, vector<64x128xbf16>
      %cst_75 = arith.constant dense<0.000000e+00> : vector<16x128xf32>
      %139 = tpu.matmul %137, %138, %cst_75 {dimension_numbers = #tpu.dot_dimension_numbers<[1], [0], [0], [1], [0, 0, 1, 1], [], []>} : vector<16x64xbf16>, vector<64x128xbf16>, vector<16x128xf32> -> vector<16x128xf32>
      %140 = vector.extract_strided_slice %139 {offsets = [0, 0], sizes = [16, 64], strides = [1, 1]} : vector<16x128xf32> to vector<16x64xf32>
      %141 = vector.shape_cast %140 : vector<16x64xf32> to vector<16x4x16xf32>
      %142 = tpu.transpose %141, [1, 0, 2] : vector<16x4x16xf32> -> vector<4x16x16xf32>
      %143 = arith.truncf %142 : vector<4x16x16xf32> to vector<4x16x16xbf16>
      %c0_76 = arith.constant 0 : index
      %c0_77 = arith.constant 0 : index
      %c0_78 = arith.constant 0 : index
      %144 = vector.load %arg18[%c0_76, %c0_77, %c0_78] : memref<4x16x16xbf16, #tpu.memory_space<vmem>>, vector<4x16x16xbf16>
      tpu.vector_store %arg18[%c0_76, %c0_77, %c0_78], %143 {strides = array<i32>} : memref<4x16x16xbf16, #tpu.memory_space<vmem>>, vector<4x16x16xbf16>,
      %145 = vector.extract_strided_slice %139 {offsets = [0, 64], sizes = [16, 64], strides = [1, 1]} : vector<16x128xf32> to vector<16x64xf32>
      %146 = vector.shape_cast %145 : vector<16x64xf32> to vector<16x4x16xf32>
      %147 = tpu.transpose %146, [1, 0, 2] : vector<16x4x16xf32> -> vector<4x16x16xf32>
      %148 = arith.truncf %147 : vector<4x16x16xf32> to vector<4x16x16xbf16>
      %c0_79 = arith.constant 0 : index
      %c0_80 = arith.constant 0 : index
      %c0_81 = arith.constant 0 : index
      %149 = vector.load %arg19[%c0_79, %c0_80, %c0_81] : memref<4x16x16xbf16, #tpu.memory_space<vmem>>, vector<4x16x16xbf16>
      tpu.vector_store %arg19[%c0_79, %c0_80, %c0_81], %148 {strides = array<i32>} : memref<4x16x16xbf16, #tpu.memory_space<vmem>>, vector<4x16x16xbf16>,
    } else {
    }
    %c0 = arith.constant 0 : index
    %c0_1 = arith.constant 0 : index
    %c0_2 = arith.constant 0 : index
    %3 = vector.load %arg3[%c0, %c0_1, %c0_2] : memref<1x16x64xf32, #tpu.memory_space<vmem>>, vector<1x16x64xf32>
    %4 = vector.shape_cast %3 : vector<1x16x64xf32> to vector<16x64xf32>
    %c0_3 = arith.constant 0 : index
    %c0_4 = arith.constant 0 : index
    %5 = vector.load %arg6[%c0_3, %c0_4] : memref<1x64xf32, #tpu.memory_space<vmem>>, vector<1x64xf32>
    %c0_5 = arith.constant 0 : index
    %c0_6 = arith.constant 0 : index
    %6 = vector.load %arg7[%c0_5, %c0_6] : memref<1x64xf32, #tpu.memory_space<vmem>>, vector<1x64xf32>
    %cst = arith.constant dense<0.000000e+00> : vector<16xf32>
    %7 = vector.multi_reduction <add>, %4, %cst [1] : vector<16x64xf32> to vector<16xf32>
    %8 = vector.shape_cast %7 : vector<16xf32> to vector<16x1xf32>
    %cst_7 = arith.constant 6.400000e+01 : f32
    %9 = vector.broadcast %cst_7 : f32 to vector<16x1xf32>
    %10 = arith.divf %8, %9 : vector<16x1xf32>
    %11 = vector.broadcast %10 : vector<16x1xf32> to vector<16x64xf32>
    %12 = arith.subf %4, %11 : vector<16x64xf32>
    %13 = arith.mulf %12, %12 : vector<16x64xf32>
    %cst_8 = arith.constant dense<0.000000e+00> : vector<16xf32>
    %14 = vector.multi_reduction <add>, %13, %cst_8 [1] : vector<16x64xf32> to vector<16xf32>
    %15 = vector.shape_cast %14 : vector<16xf32> to vector<16x1xf32>
    %cst_9 = arith.constant 6.400000e+01 : f32
    %16 = vector.broadcast %cst_9 : f32 to vector<16x1xf32>
    %17 = arith.divf %15, %16 : vector<16x1xf32>
    %cst_10 = arith.constant 9.99999974E-6 : f32
    %18 = vector.broadcast %cst_10 : f32 to vector<16x1xf32>
    %19 = arith.addf %17, %18 : vector<16x1xf32>
    %20 = math.rsqrt %19 : vector<16x1xf32>
    %21 = vector.broadcast %20 : vector<16x1xf32> to vector<16x64xf32>
    %22 = arith.mulf %12, %21 : vector<16x64xf32>
    %23 = vector.broadcast %5 : vector<1x64xf32> to vector<16x64xf32>
    %24 = arith.mulf %22, %23 : vector<16x64xf32>
    %25 = vector.broadcast %6 : vector<1x64xf32> to vector<16x64xf32>
    %26 = arith.addf %24, %25 : vector<16x64xf32>
    %27 = arith.truncf %26 : vector<16x64xf32> to vector<16x64xbf16>
    %c0_11 = arith.constant 0 : index
    %c0_12 = arith.constant 0 : index
    %28 = vector.load %arg11[%c0_11, %c0_12] : memref<64x64xbf16, #tpu.memory_space<vmem>>, vector<64x64xbf16>
    %cst_13 = arith.constant dense<0.000000e+00> : vector<16x64xf32>
    %29 = tpu.matmul %27, %28, %cst_13 {dimension_numbers = #tpu.dot_dimension_numbers<[1], [0], [0], [1], [0, 0, 1, 1], [], []>} : vector<16x64xbf16>, vector<64x64xbf16>, vector<16x64xf32> -> vector<16x64xf32>
    %cst_14 = arith.constant 2.500000e-01 : f32
    %30 = vector.broadcast %cst_14 : f32 to vector<16x64xf32>
    %31 = arith.mulf %29, %30 : vector<16x64xf32>
    %32 = vector.shape_cast %31 : vector<16x64xf32> to vector<16x4x16xf32>
    %33 = tpu.transpose %32, [1, 0, 2] : vector<16x4x16xf32> -> vector<4x16x16xf32>
    %34 = arith.truncf %33 : vector<4x16x16xf32> to vector<4x16x16xbf16>
    %c0_15 = arith.constant 0 : index
    %c0_16 = arith.constant 0 : index
    %c0_17 = arith.constant 0 : index
    %c0_18 = arith.constant 0 : index
    %35 = vector.load %arg4[%c0_15, %c0_16, %c0_17, %c0_18] : memref<1x16x16x64xf32, #tpu.memory_space<vmem>>, vector<1x16x16x64xf32>
    %36 = vector.shape_cast %35 : vector<1x16x16x64xf32> to vector<16x16x64xf32>
    %37 = vector.shape_cast %36 : vector<16x16x64xf32> to vector<256x64xf32>
    %c0_19 = arith.constant 0 : index
    %c0_20 = arith.constant 0 : index
    %38 = vector.load %arg8[%c0_19, %c0_20] : memref<1x64xf32, #tpu.memory_space<vmem>>, vector<1x64xf32>
    %c0_21 = arith.constant 0 : index
    %c0_22 = arith.constant 0 : index
    %39 = vector.load %arg9[%c0_21, %c0_22] : memref<1x64xf32, #tpu.memory_space<vmem>>, vector<1x64xf32>
    %cst_23 = arith.constant dense<0.000000e+00> : vector<256xf32>
    %40 = vector.multi_reduction <add>, %37, %cst_23 [1] : vector<256x64xf32> to vector<256xf32>
    %41 = vector.shape_cast %40 : vector<256xf32> to vector<256x1xf32>
    %cst_24 = arith.constant 6.400000e+01 : f32
    %42 = vector.broadcast %cst_24 : f32 to vector<256x1xf32>
    %43 = arith.divf %41, %42 : vector<256x1xf32>
    %44 = vector.broadcast %43 : vector<256x1xf32> to vector<256x64xf32>
    %45 = arith.subf %37, %44 : vector<256x64xf32>
    %46 = arith.mulf %45, %45 : vector<256x64xf32>
    %cst_25 = arith.constant dense<0.000000e+00> : vector<256xf32>
    %47 = vector.multi_reduction <add>, %46, %cst_25 [1] : vector<256x64xf32> to vector<256xf32>
    %48 = vector.shape_cast %47 : vector<256xf32> to vector<256x1xf32>
    %cst_26 = arith.constant 6.400000e+01 : f32
    %49 = vector.broadcast %cst_26 : f32 to vector<256x1xf32>
    %50 = arith.divf %48, %49 : vector<256x1xf32>
    %cst_27 = arith.constant 9.99999974E-6 : f32
    %51 = vector.broadcast %cst_27 : f32 to vector<256x1xf32>
    %52 = arith.addf %50, %51 : vector<256x1xf32>
    %53 = math.rsqrt %52 : vector<256x1xf32>
    %54 = vector.broadcast %53 : vector<256x1xf32> to vector<256x64xf32>
    %55 = arith.mulf %45, %54 : vector<256x64xf32>
    %56 = vector.broadcast %38 : vector<1x64xf32> to vector<256x64xf32>
    %57 = arith.mulf %55, %56 : vector<256x64xf32>
    %58 = vector.broadcast %39 : vector<1x64xf32> to vector<256x64xf32>
    %59 = arith.addf %57, %58 : vector<256x64xf32>
    %60 = arith.truncf %59 : vector<256x64xf32> to vector<256x64xbf16>
    %c0_28 = arith.constant 0 : index
    %c0_29 = arith.constant 0 : index
    %61 = vector.load %arg10[%c0_28, %c0_29] : memref<4x64xbf16, #tpu.memory_space<vmem>>, vector<4x64xbf16>
    %cst_30 = arith.constant dense<0.000000e+00> : vector<4x256xf32>
    %62 = tpu.matmul %61, %60, %cst_30 {dimension_numbers = #tpu.dot_dimension_numbers<[1], [1], [0], [0], [0, 0, 1, 0], [], []>} : vector<4x64xbf16>, vector<256x64xbf16>, vector<4x256xf32> -> vector<4x256xf32>
    %63 = vector.shape_cast %62 : vector<4x256xf32> to vector<4x16x16xf32>
    %c0_31 = arith.constant 0 : index
    %c0_32 = arith.constant 0 : index
    %c0_33 = arith.constant 0 : index
    %64 = vector.load %arg5[%c0_31, %c0_32, %c0_33] : memref<1x1x16xf32, #tpu.memory_space<vmem>>, vector<1x1x16xf32>
    %65 = vector.shape_cast %64 : vector<1x1x16xf32> to vector<1x16xf32>
    %cst_34 = arith.constant 5.000000e-01 : f32
    %66 = vector.broadcast %cst_34 : f32 to vector<1x16xf32>
    %67 = arith.cmpf ogt, %65, %66 : vector<1x16xf32>
    %cst_35 = arith.constant 0.000000e+00 : f32
    %cst_36 = arith.constant -1.000000e+30 : f32
    %68 = vector.broadcast %cst_35 : f32 to vector<1x16xf32>
    %69 = vector.broadcast %cst_36 : f32 to vector<1x16xf32>
    %70 = arith.select %67, %68, %69 : vector<1x16xi1>, vector<1x16xf32>
    %71 = vector.shape_cast %70 : vector<1x16xf32> to vector<1x1x16xf32>
    %72 = vector.broadcast %71 : vector<1x1x16xf32> to vector<4x16x16xf32>
    %73 = arith.addf %63, %72 : vector<4x16x16xf32>
    %c0_37 = arith.constant 0 : index
    %c0_38 = arith.constant 0 : index
    %c0_39 = arith.constant 0 : index
    %74 = vector.load %arg18[%c0_37, %c0_38, %c0_39] : memref<4x16x16xbf16, #tpu.memory_space<vmem>>, vector<4x16x16xbf16>
    %cst_40 = arith.constant dense<0.000000e+00> : vector<4x16x16xf32>
    %75 = tpu.matmul %34, %74, %cst_40 {dimension_numbers = #tpu.dot_dimension_numbers<[2], [2], [1], [1], [0, 0, 0, 1, 1, 1], [0], [0]>} : vector<4x16x16xbf16>, vector<4x16x16xbf16>, vector<4x16x16xf32> -> vector<4x16x16xf32>
    %76 = arith.addf %75, %73 : vector<4x16x16xf32>
    %cst_41 = arith.constant dense<0xFF800000> : vector<4x16xf32>
    %77 = vector.multi_reduction <maximumf>, %76, %cst_41 [2] : vector<4x16x16xf32> to vector<4x16xf32>
    %78 = vector.shape_cast %77 : vector<4x16xf32> to vector<4x16x1xf32>
    %79 = vector.broadcast %78 : vector<4x16x1xf32> to vector<4x16x16xf32>
    %80 = arith.subf %76, %79 : vector<4x16x16xf32>
    %81 = math.exp %80 : vector<4x16x16xf32>
    %cst_42 = arith.constant dense<0.000000e+00> : vector<4x16xf32>
    %82 = vector.multi_reduction <add>, %81, %cst_42 [2] : vector<4x16x16xf32> to vector<4x16xf32>
    %83 = vector.shape_cast %82 : vector<4x16xf32> to vector<4x16x1xf32>
    %84 = tpu.reciprocal %83 {approx = true} : vector<4x16x1xf32> -> vector<4x16x1xf32>
    %85 = vector.broadcast %84 : vector<4x16x1xf32> to vector<4x16x16xf32>
    %86 = arith.mulf %81, %85 : vector<4x16x16xf32>
    %87 = arith.truncf %86 : vector<4x16x16xf32> to vector<4x16x16xbf16>
    %c0_43 = arith.constant 0 : index
    %c0_44 = arith.constant 0 : index
    %c0_45 = arith.constant 0 : index
    %88 = vector.load %arg19[%c0_43, %c0_44, %c0_45] : memref<4x16x16xbf16, #tpu.memory_space<vmem>>, vector<4x16x16xbf16>
    %cst_46 = arith.constant dense<0.000000e+00> : vector<4x16x16xf32>
    %89 = tpu.matmul %87, %88, %cst_46 {dimension_numbers = #tpu.dot_dimension_numbers<[2], [1], [1], [2], [0, 0, 0, 1, 1, 2], [0], [0]>} : vector<4x16x16xbf16>, vector<4x16x16xbf16>, vector<4x16x16xf32> -> vector<4x16x16xf32>
    %90 = tpu.transpose %89, [1, 0, 2] : vector<4x16x16xf32> -> vector<16x4x16xf32>
    %91 = vector.shape_cast %90 : vector<16x4x16xf32> to vector<16x64xf32>
    %c0_47 = arith.constant 0 : index
    %c0_48 = arith.constant 0 : index
    %92 = vector.load %arg13[%c0_47, %c0_48] : memref<64x64xbf16, #tpu.memory_space<vmem>>, vector<64x64xbf16>
    %cst_49 = arith.constant dense<0.000000e+00> : vector<16x64xf32>
    %93 = tpu.matmul %27, %92, %cst_49 {dimension_numbers = #tpu.dot_dimension_numbers<[1], [0], [0], [1], [0, 0, 1, 1], [], []>} : vector<16x64xbf16>, vector<64x64xbf16>, vector<16x64xf32> -> vector<16x64xf32>
    %c0_50 = arith.constant 0 : index
    %c0_51 = arith.constant 0 : index
    %94 = vector.load %arg14[%c0_50, %c0_51] : memref<1x64xf32, #tpu.memory_space<vmem>>, vector<1x64xf32>
    %95 = vector.broadcast %94 : vector<1x64xf32> to vector<16x64xf32>
    %96 = arith.addf %93, %95 : vector<16x64xf32>
    %97 = arith.negf %96 : vector<16x64xf32>
    %98 = math.exp %97 : vector<16x64xf32>
    %cst_52 = arith.constant 1.000000e+00 : f32
    %99 = vector.broadcast %cst_52 : f32 to vector<16x64xf32>
    %100 = arith.addf %99, %98 : vector<16x64xf32>
    %101 = arith.divf %99, %100 : vector<16x64xf32>
    %102 = arith.mulf %101, %91 : vector<16x64xf32>
    %103 = arith.truncf %102 : vector<16x64xf32> to vector<16x64xbf16>
    %c0_53 = arith.constant 0 : index
    %c0_54 = arith.constant 0 : index
    %104 = vector.load %arg15[%c0_53, %c0_54] : memref<64x64xbf16, #tpu.memory_space<vmem>>, vector<64x64xbf16>
    %cst_55 = arith.constant dense<0.000000e+00> : vector<16x64xf32>
    %105 = tpu.matmul %103, %104, %cst_55 {dimension_numbers = #tpu.dot_dimension_numbers<[1], [0], [0], [1], [0, 0, 1, 1], [], []>} : vector<16x64xbf16>, vector<64x64xbf16>, vector<16x64xf32> -> vector<16x64xf32>
    %c0_56 = arith.constant 0 : index
    %c0_57 = arith.constant 0 : index
    %106 = vector.load %arg16[%c0_56, %c0_57] : memref<1x64xf32, #tpu.memory_space<vmem>>, vector<1x64xf32>
    %107 = vector.broadcast %106 : vector<1x64xf32> to vector<16x64xf32>
    %108 = arith.addf %105, %107 : vector<16x64xf32>
    %109 = arith.addf %4, %108 : vector<16x64xf32>
    %c0_58 = arith.constant 0 : index
    %c0_59 = arith.constant 0 : index
    %c0_60 = arith.constant 0 : index
    %110 = vector.load %arg17[%c0_58, %c0_59, %c0_60] : memref<1x16x64xf32, #tpu.memory_space<vmem>>, vector<1x16x64xf32>
    %111 = vector.shape_cast %110 : vector<1x16x64xf32> to vector<16x64xf32>
    %112 = vector.shape_cast %109 : vector<16x64xf32> to vector<1x16x64xf32>
    tpu.vector_store %arg17[%c0_58, %c0_59, %c0_60], %112 {strides = array<i32>} : memref<1x16x64xf32, #tpu.memory_space<vmem>>, vector<1x16x64xf32>,
    return
  }
  func.func @transform_0(%arg0: i32, %arg1: i32) -> (i32, i32, i32) {
    %c0_i32 = arith.constant 0 : i32
    %c0_i32_0 = arith.constant 0 : i32
    %c0_i32_1 = arith.constant 0 : i32
    return %arg0, %c0_i32, %c0_i32_0 : i32, i32, i32
  }
  func.func @transform_1(%arg0: i32, %arg1: i32) -> (i32, i32, i32) {
    %c0_i32 = arith.constant 0 : i32
    %c0_i32_0 = arith.constant 0 : i32
    return %arg0, %arg1, %c0_i32 : i32, i32, i32
  }
  func.func @transform_2(%arg0: i32, %arg1: i32) -> (i32, i32, i32, i32) {
    %c0_i32 = arith.constant 0 : i32
    %c0_i32_0 = arith.constant 0 : i32
    %c0_i32_1 = arith.constant 0 : i32
    return %arg0, %arg1, %c0_i32, %c0_i32_0 : i32, i32, i32, i32
  }
  func.func @transform_3(%arg0: i32, %arg1: i32) -> (i32, i32, i32) {
    %c0_i32 = arith.constant 0 : i32
    %c0_i32_0 = arith.constant 0 : i32
    %c0_i32_1 = arith.constant 0 : i32
    return %arg0, %c0_i32, %c0_i32_0 : i32, i32, i32
  }
  func.func @transform_4(%arg0: i32, %arg1: i32) -> (i32, i32) {
    %c0_i32 = arith.constant 0 : i32
    %c0_i32_0 = arith.constant 0 : i32
    %c0_i32_1 = arith.constant 0 : i32
    return %c0_i32, %c0_i32_0 : i32, i32
  }
  func.func @transform_5(%arg0: i32, %arg1: i32) -> (i32, i32) {
    %c0_i32 = arith.constant 0 : i32
    %c0_i32_0 = arith.constant 0 : i32
    %c0_i32_1 = arith.constant 0 : i32
    return %c0_i32, %c0_i32_0 : i32, i32
  }
  func.func @transform_6(%arg0: i32, %arg1: i32) -> (i32, i32) {
    %c0_i32 = arith.constant 0 : i32
    %c0_i32_0 = arith.constant 0 : i32
    %c0_i32_1 = arith.constant 0 : i32
    return %c0_i32, %c0_i32_0 : i32, i32
  }
  func.func @transform_7(%arg0: i32, %arg1: i32) -> (i32, i32) {
    %c0_i32 = arith.constant 0 : i32
    %c0_i32_0 = arith.constant 0 : i32
    %c0_i32_1 = arith.constant 0 : i32
    return %c0_i32, %c0_i32_0 : i32, i32
  }
  func.func @transform_8(%arg0: i32, %arg1: i32) -> (i32, i32) {
    %c0_i32 = arith.constant 0 : i32
    %c0_i32_0 = arith.constant 0 : i32
    %c0_i32_1 = arith.constant 0 : i32
    return %c0_i32, %c0_i32_0 : i32, i32
  }
  func.func @transform_9(%arg0: i32, %arg1: i32) -> (i32, i32) {
    %c0_i32 = arith.constant 0 : i32
    %c0_i32_0 = arith.constant 0 : i32
    %c0_i32_1 = arith.constant 0 : i32
    return %c0_i32, %c0_i32_0 : i32, i32
  }
  func.func @transform_10(%arg0: i32, %arg1: i32) -> (i32, i32) {
    %c0_i32 = arith.constant 0 : i32
    %c0_i32_0 = arith.constant 0 : i32
    %c0_i32_1 = arith.constant 0 : i32
    return %c0_i32, %c0_i32_0 : i32, i32
  }
  func.func @transform_11(%arg0: i32, %arg1: i32) -> (i32, i32) {
    %c0_i32 = arith.constant 0 : i32
    %c0_i32_0 = arith.constant 0 : i32
    %c0_i32_1 = arith.constant 0 : i32
    return %c0_i32, %c0_i32_0 : i32, i32
  }
  func.func @transform_12(%arg0: i32, %arg1: i32) -> (i32, i32) {
    %c0_i32 = arith.constant 0 : i32
    %c0_i32_0 = arith.constant 0 : i32
    %c0_i32_1 = arith.constant 0 : i32
    return %c0_i32, %c0_i32_0 : i32, i32
  }
  func.func @transform_13(%arg0: i32, %arg1: i32) -> (i32, i32) {
    %c0_i32 = arith.constant 0 : i32
    %c0_i32_0 = arith.constant 0 : i32
    %c0_i32_1 = arith.constant 0 : i32
    return %c0_i32, %c0_i32_0 : i32, i32
  }
  func.func @transform_14(%arg0: i32, %arg1: i32) -> (i32, i32) {
    %c0_i32 = arith.constant 0 : i32
    %c0_i32_0 = arith.constant 0 : i32
    %c0_i32_1 = arith.constant 0 : i32
    return %c0_i32, %c0_i32_0 : i32, i32
  }
  func.func @transform_15(%arg0: i32, %arg1: i32) -> (i32, i32, i32) {
    %c0_i32 = arith.constant 0 : i32
    %c0_i32_0 = arith.constant 0 : i32
    return %arg0, %arg1, %c0_i32 : i32, i32, i32
  }
}

</mosaic_0001>

<llo_original>
// kernel: tpu_custom_call.1
$region0: #{tpu_custom_call.1}
  #allocation0 [shape = 'u32[]', space=smem, size = 0x4, offset = 0x4, fixed_abs, tag = 'smem constant byte address 0x4 - core index']
  #allocation1 [shape = 'u32[144,128]{1,0:T(1,128)}', space=vmem, size = 0x12000, scoped, tag = 'internal scratch']
  #allocation2 [shape = 'bf16[4,16,16]{2,1,0:T(16,128)(2,1)}', space=vmem, size = 0x4000, scoped, tag = 'scratch operand']
  #allocation3 [shape = 'bf16[4,16,16]{2,1,0:T(16,128)(2,1)}', space=vmem, size = 0x4000, scoped, tag = 'scratch operand']
  %s0 = inlined_call_operand.hbm [shape: f32[2,16,64], index: 0, kind: input, shape index: {}]
  %s1 = inlined_call_operand.hbm [shape: f32[2,16,64], index: 1, kind: input, shape index: {}]
  %s2 = inlined_call_operand.hbm [shape: f32[2,16,16,64], index: 2, kind: input, shape index: {}]
  %s3 = inlined_call_operand.vmem [shape: f32[2,1,16], index: 3, kind: input, shape index: {}]
  %s4 = inlined_call_operand.hbm [shape: f32[1,64], index: 4, kind: input, shape index: {}]
  %s5 = inlined_call_operand.hbm [shape: f32[1,64], index: 5, kind: input, shape index: {}]
  %s6 = inlined_call_operand.hbm [shape: f32[1,64], index: 6, kind: input, shape index: {}]
  %s7 = inlined_call_operand.hbm [shape: f32[1,64], index: 7, kind: input, shape index: {}]
  %s8 = inlined_call_operand.hbm [shape: bf16[4,64], index: 8, kind: input, shape index: {}]
  %s9 = inlined_call_operand.vmem [shape: bf16[64,64], index: 9, kind: input, shape index: {}]
  %s10 = inlined_call_operand.hbm [shape: bf16[64,128], index: 10, kind: input, shape index: {}]
  %s11 = inlined_call_operand.hbm [shape: bf16[64,64], index: 11, kind: input, shape index: {}]
  %s12 = inlined_call_operand.vmem [shape: f32[1,64], index: 12, kind: input, shape index: {}]
  %s13 = inlined_call_operand.hbm [shape: bf16[64,64], index: 13, kind: input, shape index: {}]
  %s14 = inlined_call_operand.vmem [shape: f32[1,64], index: 14, kind: input, shape index: {}]
  %s15 = inlined_call_operand.hbm [shape: f32[2,16,64], index: 15, kind: output, shape index: {}]
  %s16 = sld [smem:[#allocation0]]
  $region141: #{tpu_custom_call.1} parent=0
    _
  %s18 = ssub.s32 1, %s16
  %s19 = scalar_select 0, %s18, %s16
  $region1: #{tpu_custom_call.1} parent=0
    #allocation4 [shape = 'u8[16384]{0}', space=vmem, size = 0x4000, scoped, tag = 'input window, operand 0']
    #allocation5 [shape = 's32[2]{0}', space=sflag, size = 0x8, scoped, tag = 'scoped memory for tpu_custom_call.1']
    #allocation6 [shape = 's32[2]{0}', space=sflag, size = 0x8, scoped, tag = 'scoped memory for tpu_custom_call.1']
    #allocation7 [shape = 'u8[16384]{0}', space=vmem, size = 0x4000, scoped, tag = 'input window, operand 1']
    #allocation8 [shape = 's32[2]{0}', space=sflag, size = 0x8, scoped, tag = 'scoped memory for tpu_custom_call.1']
    #allocation9 [shape = 'u8[262144]{0}', space=vmem, size = 0x40000, scoped, tag = 'input window, operand 2']
    #allocation10 [shape = 'u8[512]{0}', space=vmem, size = 0x400, scoped, tag = 'input window, operand 4, single buffered']
    #allocation11 [shape = 's32[1]{0}', space=sflag, size = 0x4, scoped, tag = 'scoped memory for tpu_custom_call.1']
    #allocation12 [shape = 'u8[512]{0}', space=vmem, size = 0x400, scoped, tag = 'input window, operand 5, single buffered']
    #allocation13 [shape = 'u8[512]{0}', space=vmem, size = 0x400, scoped, tag = 'input window, operand 6, single buffered']
    #allocation14 [shape = 's32[1]{0}', space=sflag, size = 0x4, scoped, tag = 'scoped memory for tpu_custom_call.1']
    #allocation15 [shape = 'u8[512]{0}', space=vmem, size = 0x400, scoped, tag = 'input window, operand 7, single buffered']
    #allocation16 [shape = 'u8[1024]{0}', space=vmem, size = 0x400, scoped, tag = 'input window, operand 8, single buffered']
    #allocation17 [shape = 's32[1]{0}', space=sflag, size = 0x4, scoped, tag = 'scoped memory for tpu_custom_call.1']
    #allocation18 [shape = 'u8[16384]{0}', space=vmem, size = 0x4000, scoped, tag = 'input window, operand 10, single buffered']
    #allocation19 [shape = 'u8[16384]{0}', space=vmem, size = 0x4000, scoped, tag = 'input window, operand 11, single buffered']
    #allocation20 [shape = 's32[1]{0}', space=sflag, size = 0x4, scoped, tag = 'scoped memory for tpu_custom_call.1']
    #allocation21 [shape = 'u8[16384]{0}', space=vmem, size = 0x4000, scoped, tag = 'input window, operand 13, single buffered']
    #allocation22 [shape = 'u8[16384]{0}', space=vmem, size = 0x4000, scoped, tag = 'output window, operand 0']
    %20 = vsyncpa [#allocation5], 0
    %s21 = scalar_lea.sflag [#allocation5], 1
    %22 = vsyncpa %s21, 0
    %23 = vsyncpa [#allocation8], 0
    %s24 = scalar_lea.sflag [#allocation8], 1
    %25 = vsyncpa %s24, 0
    %26 = vsyncpa [#allocation11], 0
    %27 = vsyncpa [#allocation14], 0
    %28 = vsyncpa [#allocation17], 0
    %29 = vsyncpa [#allocation20], 0
    %30 = vsyncpa [#allocation6], 0
    %s31 = scalar_lea.sflag [#allocation6], 1
    %32 = vsyncpa %s31, 0
    loop: start=0, step=1, limit=4
    $region2: #{tpu_custom_call.1} parent=1 // loop_pre_header
      _
    $region3: #{tpu_custom_call.1} parent=1 // loop_header
      %s34 = sphi 0, %s38
      %p35 = scmp.ge.s32.totalorder %s34, 4
      %s41 = sphi 0, %s53
      %s42 = sphi 0, %s49
      %s43 = sphi 0, %s41
      %s44 = sphi 0, %s42
      %s45 = sphi 0, %s43
      %s46 = sphi 0, %s44
      %s56 = sphi 0, %s58
      %s59 = sphi 0, %s56
      %s60 = sphi 0, %s59
      %s76 = sphi 0, %s60
      %s84 = sphi 0, %s86
      %s87 = sphi 0, %s84
      %s88 = sphi 0, %s87
      %s104 = sphi 0, %s88
      %s112 = sphi 0, %s114
      %s115 = sphi 0, %s112
      %s116 = sphi 0, %s115
      %s132 = sphi 0, %s116
      %s138 = sphi 0, %s140
      %s141 = sphi 0, %s138
      %s142 = sphi 0, %s141
      %s158 = sphi 0, %s142
      %s162 = sphi 0, %s162
      %s164 = sphi 0, %s162
      %s165 = sphi 0, %s164
      %s179 = sphi 0, %s165
      %s183 = sphi 0, %s183
      %s185 = sphi 0, %s183
      %s186 = sphi 0, %s185
      %s200 = sphi 0, %s186
      %s204 = sphi 0, %s204
      %s206 = sphi 0, %s204
      %s207 = sphi 0, %s206
      %s221 = sphi 0, %s207
      %s225 = sphi 0, %s225
      %s227 = sphi 0, %s225
      %s228 = sphi 0, %s227
      %s242 = sphi 0, %s228
      %s246 = sphi 0, %s246
      %s248 = sphi 0, %s246
      %s249 = sphi 0, %s248
      %s263 = sphi 0, %s249
      %s267 = sphi 0, %s267
      %s269 = sphi 0, %s267
      %s270 = sphi 0, %s269
      %s284 = sphi 0, %s270
      %s288 = sphi 0, %s288
      %s290 = sphi 0, %s288
      %s291 = sphi 0, %s290
      %s305 = sphi 0, %s291
      %s309 = sphi 0, %s309
      %s311 = sphi 0, %s309
      %s312 = sphi 0, %s311
      %s326 = sphi 0, %s312
      %s330 = sphi 0, %s330
      %s332 = sphi 0, %s330
      %s333 = sphi 0, %s332
      %s347 = sphi 0, %s333
      %s351 = sphi 0, %s351
      %s353 = sphi 0, %s351
      %s354 = sphi 0, %s353
      %s368 = sphi 0, %s354
      %s372 = sphi 0, %s372
      %s374 = sphi 0, %s372
      %s375 = sphi 0, %s374
      %s389 = sphi 0, %s375
      %s397 = sphi 0, %s399
      %s400 = sphi 0, %s397
      %s401 = sphi 0, %s400
      %s417 = sphi 0, %s401
    $region4: #{tpu_custom_call.1} parent=1 // loop_header_branch
      %37 = sbr.rel (%p35) target = $region8
    $region5: #{tpu_custom_call.1} parent=1 // loop_body
      %s39 = ssub.s32 %s34, 1
      %s40 = ssub.s32 %s34, 2
      %s47 = sadd.s32 1, %s42
      %p48 = scmp.ge.s32.totalorder %s47, 1
      %s49 = scalar_select %p48, 0, %s47
      %s50 = sadd.s32 1, %s41
      %s51 = scalar_select %p48, %s50, %s41
      %p52 = scmp.ge.s32.totalorder %s51, 2
      %s53 = scalar_select %p52, 0, %s51
      %s54 = ssub.s32 %s41, %s53
      %p55 = scmp.eq.s32.totalorder %s54, 0
      %s57 = sadd.s32 %s56, 1
      %s58 = scalar_select %p55, %s56, %s57
      %p61 = pneg %p55
      %p62 = scmp.eq.s32.totalorder %s34, 1
      %p63 = por %p61, %p62
      %p64 = scmp.ne.s32.totalorder %s56, %s59
      %p65 = scmp.eq.s32.totalorder %s34, 0
      %p66 = por %p64, %p65
      %p67 = scmp.ne.s32.totalorder %s56, %s59
      %p68 = scmp.eq.s32.totalorder %s39, 1
      %p69 = por %p67, %p68
      %p70 = scmp.ne.s32.totalorder %s59, %s60
      %p71 = scmp.eq.s32.totalorder %s39, 0
      %p72 = por %p70, %p71
      %p73 = scmp.ne.s32.totalorder %s59, %s60
      %p74 = scmp.eq.s32.totalorder %s40, 1
      %p75 = por %p73, %p74
      %p77 = scmp.ne.s32.totalorder %s60, %s76
      %p78 = scmp.eq.s32.totalorder %s40, 0
      %p79 = por %p77, %p78
      %s80 = ssub.s32 %s41, %s53
      %s81 = ssub.s32 %s42, %s49
      %s82 = sor.u32 %s80, %s81
      %p83 = scmp.eq.s32.totalorder %s82, 0
      %s85 = sadd.s32 %s84, 1
      %s86 = scalar_select %p83, %s84, %s85
      %p89 = pneg %p83
      %p90 = scmp.eq.s32.totalorder %s34, 1
      %p91 = por %p89, %p90
      %p92 = scmp.ne.s32.totalorder %s84, %s87
      %p93 = scmp.eq.s32.totalorder %s34, 0
      %p94 = por %p92, %p93
      %p95 = scmp.ne.s32.totalorder %s84, %s87
      %p96 = scmp.eq.s32.totalorder %s39, 1
      %p97 = por %p95, %p96
      %p98 = scmp.ne.s32.totalorder %s87, %s88
      %p99 = scmp.eq.s32.totalorder %s39, 0
      %p100 = por %p98, %p99
      %p101 = scmp.ne.s32.totalorder %s87, %s88
      %p102 = scmp.eq.s32.totalorder %s40, 1
      %p103 = por %p101, %p102
      %p105 = scmp.ne.s32.totalorder %s88, %s104
      %p106 = scmp.eq.s32.totalorder %s40, 0
      %p107 = por %p105, %p106
      %s108 = ssub.s32 %s41, %s53
      %s109 = ssub.s32 %s42, %s49
      %s110 = sor.u32 %s108, %s109
      %p111 = scmp.eq.s32.totalorder %s110, 0
      %s113 = sadd.s32 %s112, 1
      %s114 = scalar_select %p111, %s112, %s113
      %p117 = pneg %p111
      %p118 = scmp.eq.s32.totalorder %s34, 1
      %p119 = por %p117, %p118
      %p120 = scmp.ne.s32.totalorder %s112, %s115
      %p121 = scmp.eq.s32.totalorder %s34, 0
      %p122 = por %p120, %p121
      %p123 = scmp.ne.s32.totalorder %s112, %s115
      %p124 = scmp.eq.s32.totalorder %s39, 1
      %p125 = por %p123, %p124
      %p126 = scmp.ne.s32.totalorder %s115, %s116
      %p127 = scmp.eq.s32.totalorder %s39, 0
      %p128 = por %p126, %p127
      %p129 = scmp.ne.s32.totalorder %s115, %s116
      %p130 = scmp.eq.s32.totalorder %s40, 1
      %p131 = por %p129, %p130
      %p133 = scmp.ne.s32.totalorder %s116, %s132
      %p134 = scmp.eq.s32.totalorder %s40, 0
      %p135 = por %p133, %p134
      %s136 = ssub.s32 %s41, %s53
      %p137 = scmp.eq.s32.totalorder %s136, 0
      %s139 = sadd.s32 %s138, 1
      %s140 = scalar_select %p137, %s138, %s139
      %p143 = pneg %p137
      %p144 = scmp.eq.s32.totalorder %s34, 1
      %p145 = por %p143, %p144
      %p146 = scmp.ne.s32.totalorder %s138, %s141
      %p147 = scmp.eq.s32.totalorder %s34, 0
      %p148 = por %p146, %p147
      %p149 = scmp.ne.s32.totalorder %s138, %s141
      %p150 = scmp.eq.s32.totalorder %s39, 1
      %p151 = por %p149, %p150
      %p152 = scmp.ne.s32.totalorder %s141, %s142
      %p153 = scmp.eq.s32.totalorder %s39, 0
      %p154 = por %p152, %p153
      %p155 = scmp.ne.s32.totalorder %s141, %s142
      %p156 = scmp.eq.s32.totalorder %s40, 1
      %p157 = por %p155, %p156
      %p159 = scmp.ne.s32.totalorder %s142, %s158
      %p160 = scmp.eq.s32.totalorder %s40, 0
      %p161 = por %p159, %p160
      %s163 = sadd.s32 %s162, 1
      %p166 = scmp.eq.s32.totalorder %s34, 1
      %p167 = scmp.ne.s32.totalorder %s162, %s164
      %p168 = scmp.eq.s32.totalorder %s34, 0
      %p169 = por %p167, %p168
      %p170 = scmp.ne.s32.totalorder %s162, %s164
      %p171 = scmp.eq.s32.totalorder %s39, 1
      %p172 = por %p170, %p171
      %p173 = scmp.ne.s32.totalorder %s164, %s165
      %p174 = scmp.eq.s32.totalorder %s39, 0
      %p175 = por %p173, %p174
      %p176 = scmp.ne.s32.totalorder %s164, %s165
      %p177 = scmp.eq.s32.totalorder %s40, 1
      %p178 = por %p176, %p177
      %p180 = scmp.ne.s32.totalorder %s165, %s179
      %p181 = scmp.eq.s32.totalorder %s40, 0
      %p182 = por %p180, %p181
      %s184 = sadd.s32 %s183, 1
      %p187 = scmp.eq.s32.totalorder %s34, 1
      %p188 = scmp.ne.s32.totalorder %s183, %s185
      %p189 = scmp.eq.s32.totalorder %s34, 0
      %p190 = por %p188, %p189
      %p191 = scmp.ne.s32.totalorder %s183, %s185
      %p192 = scmp.eq.s32.totalorder %s39, 1
      %p193 = por %p191, %p192
      %p194 = scmp.ne.s32.totalorder %s185, %s186
      %p195 = scmp.eq.s32.totalorder %s39, 0
      %p196 = por %p194, %p195
      %p197 = scmp.ne.s32.totalorder %s185, %s186
      %p198 = scmp.eq.s32.totalorder %s40, 1
      %p199 = por %p197, %p198
      %p201 = scmp.ne.s32.totalorder %s186, %s200
      %p202 = scmp.eq.s32.totalorder %s40, 0
      %p203 = por %p201, %p202
      %s205 = sadd.s32 %s204, 1
      %p208 = scmp.eq.s32.totalorder %s34, 1
      %p209 = scmp.ne.s32.totalorder %s204, %s206
      %p210 = scmp.eq.s32.totalorder %s34, 0
      %p211 = por %p209, %p210
      %p212 = scmp.ne.s32.totalorder %s204, %s206
      %p213 = scmp.eq.s32.totalorder %s39, 1
      %p214 = por %p212, %p213
      %p215 = scmp.ne.s32.totalorder %s206, %s207
      %p216 = scmp.eq.s32.totalorder %s39, 0
      %p217 = por %p215, %p216
      %p218 = scmp.ne.s32.totalorder %s206, %s207
      %p219 = scmp.eq.s32.totalorder %s40, 1
      %p220 = por %p218, %p219
      %p222 = scmp.ne.s32.totalorder %s207, %s221
      %p223 = scmp.eq.s32.totalorder %s40, 0
      %p224 = por %p222, %p223
      %s226 = sadd.s32 %s225, 1
      %p229 = scmp.eq.s32.totalorder %s34, 1
      %p230 = scmp.ne.s32.totalorder %s225, %s227
      %p231 = scmp.eq.s32.totalorder %s34, 0
      %p232 = por %p230, %p231
      %p233 = scmp.ne.s32.totalorder %s225, %s227
      %p234 = scmp.eq.s32.totalorder %s39, 1
      %p235 = por %p233, %p234
      %p236 = scmp.ne.s32.totalorder %s227, %s228
      %p237 = scmp.eq.s32.totalorder %s39, 0
      %p238 = por %p236, %p237
      %p239 = scmp.ne.s32.totalorder %s227, %s228
      %p240 = scmp.eq.s32.totalorder %s40, 1
      %p241 = por %p239, %p240
      %p243 = scmp.ne.s32.totalorder %s228, %s242
      %p244 = scmp.eq.s32.totalorder %s40, 0
      %p245 = por %p243, %p244
      %s247 = sadd.s32 %s246, 1
      %p250 = scmp.eq.s32.totalorder %s34, 1
      %p251 = scmp.ne.s32.totalorder %s246, %s248
      %p252 = scmp.eq.s32.totalorder %s34, 0
      %p253 = por %p251, %p252
      %p254 = scmp.ne.s32.totalorder %s246, %s248
      %p255 = scmp.eq.s32.totalorder %s39, 1
      %p256 = por %p254, %p255
      %p257 = scmp.ne.s32.totalorder %s248, %s249
      %p258 = scmp.eq.s32.totalorder %s39, 0
      %p259 = por %p257, %p258
      %p260 = scmp.ne.s32.totalorder %s248, %s249
      %p261 = scmp.eq.s32.totalorder %s40, 1
      %p262 = por %p260, %p261
      %p264 = scmp.ne.s32.totalorder %s249, %s263
      %p265 = scmp.eq.s32.totalorder %s40, 0
      %p266 = por %p264, %p265
      %s268 = sadd.s32 %s267, 1
      %p271 = scmp.eq.s32.totalorder %s34, 1
      %p272 = scmp.ne.s32.totalorder %s267, %s269
      %p273 = scmp.eq.s32.totalorder %s34, 0
      %p274 = por %p272, %p273
      %p275 = scmp.ne.s32.totalorder %s267, %s269
      %p276 = scmp.eq.s32.totalorder %s39, 1
      %p277 = por %p275, %p276
      %p278 = scmp.ne.s32.totalorder %s269, %s270
      %p279 = scmp.eq.s32.totalorder %s39, 0
      %p280 = por %p278, %p279
      %p281 = scmp.ne.s32.totalorder %s269, %s270
      %p282 = scmp.eq.s32.totalorder %s40, 1
      %p283 = por %p281, %p282
      %p285 = scmp.ne.s32.totalorder %s270, %s284
      %p286 = scmp.eq.s32.totalorder %s40, 0
      %p287 = por %p285, %p286
      %s289 = sadd.s32 %s288, 1
      %p292 = scmp.eq.s32.totalorder %s34, 1
      %p293 = scmp.ne.s32.totalorder %s288, %s290
      %p294 = scmp.eq.s32.totalorder %s34, 0
      %p295 = por %p293, %p294
      %p296 = scmp.ne.s32.totalorder %s288, %s290
      %p297 = scmp.eq.s32.totalorder %s39, 1
      %p298 = por %p296, %p297
      %p299 = scmp.ne.s32.totalorder %s290, %s291
      %p300 = scmp.eq.s32.totalorder %s39, 0
      %p301 = por %p299, %p300
      %p302 = scmp.ne.s32.totalorder %s290, %s291
      %p303 = scmp.eq.s32.totalorder %s40, 1
      %p304 = por %p302, %p303
      %p306 = scmp.ne.s32.totalorder %s291, %s305
      %p307 = scmp.eq.s32.totalorder %s40, 0
      %p308 = por %p306, %p307
      %s310 = sadd.s32 %s309, 1
      %p313 = scmp.eq.s32.totalorder %s34, 1
      %p314 = scmp.ne.s32.totalorder %s309, %s311
      %p315 = scmp.eq.s32.totalorder %s34, 0
      %p316 = por %p314, %p315
      %p317 = scmp.ne.s32.totalorder %s309, %s311
      %p318 = scmp.eq.s32.totalorder %s39, 1
      %p319 = por %p317, %p318
      %p320 = scmp.ne.s32.totalorder %s311, %s312
      %p321 = scmp.eq.s32.totalorder %s39, 0
      %p322 = por %p320, %p321
      %p323 = scmp.ne.s32.totalorder %s311, %s312
      %p324 = scmp.eq.s32.totalorder %s40, 1
      %p325 = por %p323, %p324
      %p327 = scmp.ne.s32.totalorder %s312, %s326
      %p328 = scmp.eq.s32.totalorder %s40, 0
      %p329 = por %p327, %p328
      %s331 = sadd.s32 %s330, 1
      %p334 = scmp.eq.s32.totalorder %s34, 1
      %p335 = scmp.ne.s32.totalorder %s330, %s332
      %p336 = scmp.eq.s32.totalorder %s34, 0
      %p337 = por %p335, %p336
      %p338 = scmp.ne.s32.totalorder %s330, %s332
      %p339 = scmp.eq.s32.totalorder %s39, 1
      %p340 = por %p338, %p339
      %p341 = scmp.ne.s32.totalorder %s332, %s333
      %p342 = scmp.eq.s32.totalorder %s39, 0
      %p343 = por %p341, %p342
      %p344 = scmp.ne.s32.totalorder %s332, %s333
      %p345 = scmp.eq.s32.totalorder %s40, 1
      %p346 = por %p344, %p345
      %p348 = scmp.ne.s32.totalorder %s333, %s347
      %p349 = scmp.eq.s32.totalorder %s40, 0
      %p350 = por %p348, %p349
      %s352 = sadd.s32 %s351, 1
      %p355 = scmp.eq.s32.totalorder %s34, 1
      %p356 = scmp.ne.s32.totalorder %s351, %s353
      %p357 = scmp.eq.s32.totalorder %s34, 0
      %p358 = por %p356, %p357
      %p359 = scmp.ne.s32.totalorder %s351, %s353
      %p360 = scmp.eq.s32.totalorder %s39, 1
      %p361 = por %p359, %p360
      %p362 = scmp.ne.s32.totalorder %s353, %s354
      %p363 = scmp.eq.s32.totalorder %s39, 0
      %p364 = por %p362, %p363
      %p365 = scmp.ne.s32.totalorder %s353, %s354
      %p366 = scmp.eq.s32.totalorder %s40, 1
      %p367 = por %p365, %p366
      %p369 = scmp.ne.s32.totalorder %s354, %s368
      %p370 = scmp.eq.s32.totalorder %s40, 0
      %p371 = por %p369, %p370
      %s373 = sadd.s32 %s372, 1
      %p376 = scmp.eq.s32.totalorder %s34, 1
      %p377 = scmp.ne.s32.totalorder %s372, %s374
      %p378 = scmp.eq.s32.totalorder %s34, 0
      %p379 = por %p377, %p378
      %p380 = scmp.ne.s32.totalorder %s372, %s374
      %p381 = scmp.eq.s32.totalorder %s39, 1
      %p382 = por %p380, %p381
      %p383 = scmp.ne.s32.totalorder %s374, %s375
      %p384 = scmp.eq.s32.totalorder %s39, 0
      %p385 = por %p383, %p384
      %p386 = scmp.ne.s32.totalorder %s374, %s375
      %p387 = scmp.eq.s32.totalorder %s40, 1
      %p388 = por %p386, %p387
      %p390 = scmp.ne.s32.totalorder %s375, %s389
      %p391 = scmp.eq.s32.totalorder %s40, 0
      %p392 = por %p390, %p391
      %s393 = ssub.s32 %s41, %s53
      %s394 = ssub.s32 %s42, %s49
      %s395 = sor.u32 %s393, %s394
      %p396 = scmp.eq.s32.totalorder %s395, 0
      %s398 = sadd.s32 %s397, 1
      %s399 = scalar_select %p396, %s397, %s398
      %p402 = pneg %p396
      %p403 = scmp.eq.s32.totalorder %s34, 1
      %p404 = por %p402, %p403
      %p405 = scmp.ne.s32.totalorder %s397, %s400
      %p406 = scmp.eq.s32.totalorder %s34, 0
      %p407 = por %p405, %p406
      %p408 = scmp.ne.s32.totalorder %s397, %s400
      %p409 = scmp.eq.s32.totalorder %s39, 1
      %p410 = por %p408, %p409
      %p411 = scmp.ne.s32.totalorder %s400, %s401
      %p412 = scmp.eq.s32.totalorder %s39, 0
      %p413 = por %p411, %p412
      %p414 = scmp.ne.s32.totalorder %s400, %s401
      %p415 = scmp.eq.s32.totalorder %s40, 1
      %p416 = por %p414, %p415
      %p418 = scmp.ne.s32.totalorder %s401, %s417
      %p419 = scmp.eq.s32.totalorder %s40, 0
      %p420 = por %p418, %p419
      %p421 = scmp.le.s32.totalorder 1, %s34
      %p422 = scmp.lt.s32.totalorder %s34, 3
      %p423 = pnand %p421, %p422
      %p424 = pneg %p423
      // Predicated region
      $region9: #{tpu_custom_call.1} parent=5 // pred_check
        _
      $region10: #{tpu_custom_call.1} parent=5 // pred_check_branch
        %426 = sbr.rel (%p423) target = $region12
      $region11: #{tpu_custom_call.1} parent=5 // pred_region
        %s427 = ssub.s32 %s34, 1
        // Predicated region
        $region13: #{tpu_custom_call.1} parent=11 // pred_check
          %p428 = pneg %p175
        $region14: #{tpu_custom_call.1} parent=11 // pred_check_branch
          %430 = sbr.rel (%p428) target = $region16
        $region15: #{tpu_custom_call.1} parent=11 // pred_region
          %s432 = ssub.s32 16, 16
          %433 = vsyncadd [#allocation11], %s432
          %s435 = sshll.u32 [#allocation10], 4
          %s436 = int_to_ptr.vmem [resolvable:$true] %s435
          %438 = dma.hbm_to_vmem [thread:$0]  %s4, 16, %s436, [#allocation11]
        $region16: #{tpu_custom_call.1} parent=11 // pred_fallthru
          _
        // Predicated region
        $region17: #{tpu_custom_call.1} parent=11 // pred_check
          %p439 = pneg %p196
        $region18: #{tpu_custom_call.1} parent=11 // pred_check_branch
          %441 = sbr.rel (%p439) target = $region20
        $region19: #{tpu_custom_call.1} parent=11 // pred_region
          %s443 = ssub.s32 16, 16
          %444 = vsyncadd [#allocation11], %s443
          %s446 = sshll.u32 [#allocation12], 4
          %s447 = int_to_ptr.vmem [resolvable:$true] %s446
          %449 = dma.hbm_to_vmem [thread:$0]  %s5, 16, %s447, [#allocation11]
        $region20: #{tpu_custom_call.1} parent=11 // pred_fallthru
          _
        // Predicated region
        $region21: #{tpu_custom_call.1} parent=11 // pred_check
          %p450 = pneg %p217
        $region22: #{tpu_custom_call.1} parent=11 // pred_check_branch
          %452 = sbr.rel (%p450) target = $region24
        $region23: #{tpu_custom_call.1} parent=11 // pred_region
          %s454 = ssub.s32 16, 16
          %455 = vsyncadd [#allocation14], %s454
          %s457 = sshll.u32 [#allocation13], 4
          %s458 = int_to_ptr.vmem [resolvable:$true] %s457
          %460 = dma.hbm_to_vmem [thread:$0]  %s6, 16, %s458, [#allocation14]
        $region24: #{tpu_custom_call.1} parent=11 // pred_fallthru
          _
        // Predicated region
        $region25: #{tpu_custom_call.1} parent=11 // pred_check
          %p461 = pneg %p238
        $region26: #{tpu_custom_call.1} parent=11 // pred_check_branch
          %463 = sbr.rel (%p461) target = $region28
        $region27: #{tpu_custom_call.1} parent=11 // pred_region
          %s465 = ssub.s32 16, 16
          %466 = vsyncadd [#allocation14], %s465
          %s468 = sshll.u32 [#allocation15], 4
          %s469 = int_to_ptr.vmem [resolvable:$true] %s468
          %471 = dma.hbm_to_vmem [thread:$0]  %s7, 16, %s469, [#allocation14]
        $region28: #{tpu_custom_call.1} parent=11 // pred_fallthru
          _
        // Predicated region
        $region29: #{tpu_custom_call.1} parent=11 // pred_check
          %p472 = pneg %p259
        $region30: #{tpu_custom_call.1} parent=11 // pred_check_branch
          %474 = sbr.rel (%p472) target = $region32
        $region31: #{tpu_custom_call.1} parent=11 // pred_region
          %s476 = ssub.s32 32, 32
          %477 = vsyncadd [#allocation17], %s476
          %s479 = sshll.u32 [#allocation16], 4
          %s480 = int_to_ptr.vmem [resolvable:$true] %s479
          %482 = dma.hbm_to_vmem [thread:$0]  %s8, 32, %s480, [#allocation17]
        $region32: #{tpu_custom_call.1} parent=11 // pred_fallthru
          _
        // Predicated region
        $region33: #{tpu_custom_call.1} parent=11 // pred_check
          %p483 = pneg %p280
        $region34: #{tpu_custom_call.1} parent=11 // pred_check_branch
          %485 = sbr.rel (%p483) target = $region36
        $region35: #{tpu_custom_call.1} parent=11 // pred_region
          _
        $region36: #{tpu_custom_call.1} parent=11 // pred_fallthru
          _
        // Predicated region
        $region37: #{tpu_custom_call.1} parent=11 // pred_check
          %p486 = pneg %p301
        $region38: #{tpu_custom_call.1} parent=11 // pred_check_branch
          %488 = sbr.rel (%p486) target = $region40
        $region39: #{tpu_custom_call.1} parent=11 // pred_region
          %s490 = ssub.s32 512, 512
          %491 = vsyncadd [#allocation17], %s490
          %s492 = sshll.u32 [#allocation18], 4
          %s493 = int_to_ptr.vmem [resolvable:$true] %s492
          %498 = dma.hbm_to_vmem [thread:$0]  %s10, 512, %s493, [#allocation17], 64, 64, 4
        $region40: #{tpu_custom_call.1} parent=11 // pred_fallthru
          _
        // Predicated region
        $region41: #{tpu_custom_call.1} parent=11 // pred_check
          %p499 = pneg %p322
        $region42: #{tpu_custom_call.1} parent=11 // pred_check_branch
          %501 = sbr.rel (%p499) target = $region44
        $region43: #{tpu_custom_call.1} parent=11 // pred_region
          %s503 = ssub.s32 512, 512
          %504 = vsyncadd [#allocation20], %s503
          %s505 = sshll.u32 [#allocation19], 4
          %s506 = int_to_ptr.vmem [resolvable:$true] %s505
          %511 = dma.hbm_to_vmem [thread:$0]  %s11, 512, %s506, [#allocation20], 64, 64, 4
        $region44: #{tpu_custom_call.1} parent=11 // pred_fallthru
          _
        // Predicated region
        $region45: #{tpu_custom_call.1} parent=11 // pred_check
          %p512 = pneg %p343
        $region46: #{tpu_custom_call.1} parent=11 // pred_check_branch
          %514 = sbr.rel (%p512) target = $region48
        $region47: #{tpu_custom_call.1} parent=11 // pred_region
          _
        $region48: #{tpu_custom_call.1} parent=11 // pred_fallthru
          _
        // Predicated region
        $region49: #{tpu_custom_call.1} parent=11 // pred_check
          %p515 = pneg %p364
        $region50: #{tpu_custom_call.1} parent=11 // pred_check_branch
          %517 = sbr.rel (%p515) target = $region52
        $region51: #{tpu_custom_call.1} parent=11 // pred_region
          %s519 = ssub.s32 512, 512
          %520 = vsyncadd [#allocation20], %s519
          %s521 = sshll.u32 [#allocation21], 4
          %s522 = int_to_ptr.vmem [resolvable:$true] %s521
          %527 = dma.hbm_to_vmem [thread:$0]  %s13, 512, %s522, [#allocation20], 64, 64, 4
        $region52: #{tpu_custom_call.1} parent=11 // pred_fallthru
          _
        // Predicated region
        $region53: #{tpu_custom_call.1} parent=11 // pred_check
          %p528 = pneg %p385
        $region54: #{tpu_custom_call.1} parent=11 // pred_check_branch
          %530 = sbr.rel (%p528) target = $region56
        $region55: #{tpu_custom_call.1} parent=11 // pred_region
          _
        $region56: #{tpu_custom_call.1} parent=11 // pred_fallthru
          _
      $region12: #{tpu_custom_call.1} parent=5 // pred_fallthru
        _
      %p531 = scmp.lt.s32.totalorder %s34, 2
      // Predicated region
      $region57: #{tpu_custom_call.1} parent=5 // pred_check
        %p532 = pneg %p531
      $region58: #{tpu_custom_call.1} parent=5 // pred_check_branch
        %534 = sbr.rel (%p532) target = $region60
      $region59: #{tpu_custom_call.1} parent=5 // pred_region
        // Predicated region
        $region61: #{tpu_custom_call.1} parent=59 // pred_check
          %p535 = pneg %p66
        $region62: #{tpu_custom_call.1} parent=59 // pred_check_branch
          %537 = sbr.rel (%p535) target = $region64
        $region63: #{tpu_custom_call.1} parent=59 // pred_region
          %s538 = sand.u32 %s56, 1
          %s539 = scalar_lea.sflag [#allocation5], %s538
          %s540 = sand.u32 %s56, 1
          %s541 = smul.addr %s540, 16
          %s542 = scalar_lea.vmem [#allocation4], %s541
          %s544 = ssub.s32 256, 256
          %545 = vsyncadd %s539, %s544
          %s546 = smul.addr %s41, 2
          %s547 = smul.addr %s546, 128
          %s548 = scalar_lea.hbm %s0, %s547
          %s549 = sshll.u32 %s542, 4
          %s550 = int_to_ptr.vmem [resolvable:$true] %s549
          %555 = dma.hbm_to_vmem [thread:$0]  %s548, 256, %s550, %s539, 128, 128, 8
        $region64: #{tpu_custom_call.1} parent=59 // pred_fallthru
          _
        // Predicated region
        $region65: #{tpu_custom_call.1} parent=59 // pred_check
          %p556 = pneg %p94
        $region66: #{tpu_custom_call.1} parent=59 // pred_check_branch
          %558 = sbr.rel (%p556) target = $region68
        $region67: #{tpu_custom_call.1} parent=59 // pred_region
          %s559 = sand.u32 %s34, 1
          %s560 = scalar_lea.sflag [#allocation8], %s559
          %s561 = sand.u32 %s84, 1
          %s562 = smul.addr %s561, 16
          %s563 = scalar_lea.vmem [#allocation7], %s562
          %s564 = smul.u32 2, %s42
          %s566 = ssub.s32 256, 256
          %567 = vsyncadd %s560, %s566
          %s568 = smul.addr %s41, 2
          %s569 = sadd.s32 %s564, %s568
          %s570 = smul.addr %s569, 128
          %s571 = scalar_lea.hbm %s1, %s570
          %s572 = sshll.u32 %s563, 4
          %s573 = int_to_ptr.vmem [resolvable:$true] %s572
          %578 = dma.hbm_to_vmem [thread:$0]  %s571, 256, %s573, %s560, 128, 128, 8
        $region68: #{tpu_custom_call.1} parent=59 // pred_fallthru
          _
        // Predicated region
        $region69: #{tpu_custom_call.1} parent=59 // pred_check
          %p579 = pneg %p122
        $region70: #{tpu_custom_call.1} parent=59 // pred_check_branch
          %581 = sbr.rel (%p579) target = $region72
        $region71: #{tpu_custom_call.1} parent=59 // pred_region
          %s582 = sand.u32 %s34, 1
          %s583 = scalar_lea.sflag [#allocation8], %s582
          %s584 = sand.u32 %s112, 1
          %s585 = smul.addr %s584, 256
          %s586 = scalar_lea.vmem [#allocation9], %s585
          %s587 = smul.u32 16, %s42
          %s589 = ssub.s32 4096, 4096
          %590 = vsyncadd %s583, %s589
          %s591 = smul.addr %s587, 2
          %s592 = smul.addr %s41, 32
          %s593 = sadd.s32 %s591, %s592
          %s594 = smul.addr %s593, 128
          %s595 = scalar_lea.hbm %s2, %s594
          %s596 = sshll.u32 %s586, 4
          %s597 = int_to_ptr.vmem [resolvable:$true] %s596
          %602 = dma.hbm_to_vmem [thread:$0]  %s595, 4096, %s597, %s583, 128, 128, 8
        $region72: #{tpu_custom_call.1} parent=59 // pred_fallthru
          _
        // Predicated region
        $region73: #{tpu_custom_call.1} parent=59 // pred_check
          %p603 = pneg %p148
        $region74: #{tpu_custom_call.1} parent=59 // pred_check_branch
          %605 = sbr.rel (%p603) target = $region76
        $region75: #{tpu_custom_call.1} parent=59 // pred_region
          %p606 = scmp.lt.s32.totalorder %s41, 1
          %s607 = scalar_select %p606, %s41, 1
          %s608 = scalar_lea.vmem %s3, %s607
        $region76: #{tpu_custom_call.1} parent=59 // pred_fallthru
          _
      $region60: #{tpu_custom_call.1} parent=5 // pred_fallthru
        _
      %p609 = scmp.le.s32.totalorder 1, %s34
      %p610 = scmp.lt.s32.totalorder %s34, 3
      %p611 = pnand %p609, %p610
      %p612 = pneg %p611
      // Predicated region
      $region77: #{tpu_custom_call.1} parent=5 // pred_check
        _
      $region78: #{tpu_custom_call.1} parent=5 // pred_check_branch
        %614 = sbr.rel (%p611) target = $region80
      $region79: #{tpu_custom_call.1} parent=5 // pred_region
        %s615 = ssub.s32 %s34, 1
        %s616 = sand.u32 %s59, 1
        %s617 = scalar_lea.sflag [#allocation5], %s616
        %s618 = sand.u32 %s59, 1
        %s619 = smul.addr %s618, 16
        %s620 = scalar_lea.vmem [#allocation4], %s619
        // Predicated region
        $region81: #{tpu_custom_call.1} parent=79 // pred_check
          %p621 = pneg %p72
        $region82: #{tpu_custom_call.1} parent=79 // pred_check_branch
          %623 = sbr.rel (%p621) target = $region84
        $region83: #{tpu_custom_call.1} parent=79 // pred_region
          %624 = dma.done %s617, 256
        $region84: #{tpu_custom_call.1} parent=79 // pred_fallthru
          _
        %s625 = sand.u32 %s39, 1
        %s626 = scalar_lea.sflag [#allocation8], %s625
        %s627 = sand.u32 %s87, 1
        %s628 = smul.addr %s627, 16
        %s629 = scalar_lea.vmem [#allocation7], %s628
        // Predicated region
        $region85: #{tpu_custom_call.1} parent=79 // pred_check
          %p630 = pneg %p100
        $region86: #{tpu_custom_call.1} parent=79 // pred_check_branch
          %632 = sbr.rel (%p630) target = $region88
        $region87: #{tpu_custom_call.1} parent=79 // pred_region
          %633 = dma.done %s626, 256
        $region88: #{tpu_custom_call.1} parent=79 // pred_fallthru
          _
        %s634 = sand.u32 %s39, 1
        %s635 = scalar_lea.sflag [#allocation8], %s634
        %s636 = sand.u32 %s115, 1
        %s637 = smul.addr %s636, 256
        %s638 = scalar_lea.vmem [#allocation9], %s637
        // Predicated region
        $region89: #{tpu_custom_call.1} parent=79 // pred_check
          %p639 = pneg %p128
        $region90: #{tpu_custom_call.1} parent=79 // pred_check_branch
          %641 = sbr.rel (%p639) target = $region92
        $region91: #{tpu_custom_call.1} parent=79 // pred_region
          %642 = dma.done %s635, 4096
        $region92: #{tpu_custom_call.1} parent=79 // pred_fallthru
          _
        // Predicated region
        $region93: #{tpu_custom_call.1} parent=79 // pred_check
          %p643 = pneg %p175
        $region94: #{tpu_custom_call.1} parent=79 // pred_check_branch
          %645 = sbr.rel (%p643) target = $region96
        $region95: #{tpu_custom_call.1} parent=79 // pred_region
          %646 = dma.done [#allocation11], 16
        $region96: #{tpu_custom_call.1} parent=79 // pred_fallthru
          _
        // Predicated region
        $region97: #{tpu_custom_call.1} parent=79 // pred_check
          %p647 = pneg %p196
        $region98: #{tpu_custom_call.1} parent=79 // pred_check_branch
          %649 = sbr.rel (%p647) target = $region100
        $region99: #{tpu_custom_call.1} parent=79 // pred_region
          %650 = dma.done [#allocation11], 16
        $region100: #{tpu_custom_call.1} parent=79 // pred_fallthru
          _
        // Predicated region
        $region101: #{tpu_custom_call.1} parent=79 // pred_check
          %p651 = pneg %p217
        $region102: #{tpu_custom_call.1} parent=79 // pred_check_branch
          %653 = sbr.rel (%p651) target = $region104
        $region103: #{tpu_custom_call.1} parent=79 // pred_region
          %654 = dma.done [#allocation14], 16
        $region104: #{tpu_custom_call.1} parent=79 // pred_fallthru
          _
        // Predicated region
        $region105: #{tpu_custom_call.1} parent=79 // pred_check
          %p655 = pneg %p238
        $region106: #{tpu_custom_call.1} parent=79 // pred_check_branch
          %657 = sbr.rel (%p655) target = $region108
        $region107: #{tpu_custom_call.1} parent=79 // pred_region
          %658 = dma.done [#allocation14], 16
        $region108: #{tpu_custom_call.1} parent=79 // pred_fallthru
          _
        // Predicated region
        $region109: #{tpu_custom_call.1} parent=79 // pred_check
          %p659 = pneg %p259
        $region110: #{tpu_custom_call.1} parent=79 // pred_check_branch
          %661 = sbr.rel (%p659) target = $region112
        $region111: #{tpu_custom_call.1} parent=79 // pred_region
          %662 = dma.done [#allocation17], 32
        $region112: #{tpu_custom_call.1} parent=79 // pred_fallthru
          _
        // Predicated region
        $region113: #{tpu_custom_call.1} parent=79 // pred_check
          %p663 = pneg %p301
        $region114: #{tpu_custom_call.1} parent=79 // pred_check_branch
          %665 = sbr.rel (%p663) target = $region116
        $region115: #{tpu_custom_call.1} parent=79 // pred_region
          %666 = dma.done [#allocation17], 512
        $region116: #{tpu_custom_call.1} parent=79 // pred_fallthru
          _
        // Predicated region
        $region117: #{tpu_custom_call.1} parent=79 // pred_check
          %p667 = pneg %p322
        $region118: #{tpu_custom_call.1} parent=79 // pred_check_branch
          %669 = sbr.rel (%p667) target = $region120
        $region119: #{tpu_custom_call.1} parent=79 // pred_region
          %670 = dma.done [#allocation20], 512
        $region120: #{tpu_custom_call.1} parent=79 // pred_fallthru
          _
        // Predicated region
        $region121: #{tpu_custom_call.1} parent=79 // pred_check
          %p671 = pneg %p364
        $region122: #{tpu_custom_call.1} parent=79 // pred_check_branch
          %673 = sbr.rel (%p671) target = $region124
        $region123: #{tpu_custom_call.1} parent=79 // pred_region
          %674 = dma.done [#allocation20], 512
        $region124: #{tpu_custom_call.1} parent=79 // pred_fallthru
          _
        %s675 = sand.u32 %s59, 1
        %s676 = scalar_lea.sflag [#allocation5], %s675
        %s677 = sand.u32 %s59, 1
        %s678 = smul.addr %s677, 16
        %s679 = scalar_lea.vmem [#allocation4], %s678
        %p680 = pneg %p72
        %p681 = pneg %p69
        %s682 = sand.u32 %s39, 1
        %s683 = scalar_lea.sflag [#allocation8], %s682
        %s684 = sand.u32 %s87, 1
        %s685 = smul.addr %s684, 16
        %s686 = scalar_lea.vmem [#allocation7], %s685
        %p687 = pneg %p100
        %p688 = pneg %p97
        %s689 = sand.u32 %s39, 1
        %s690 = scalar_lea.sflag [#allocation8], %s689
        %s691 = sand.u32 %s115, 1
        %s692 = smul.addr %s691, 256
        %s693 = scalar_lea.vmem [#allocation9], %s692
        %p694 = pneg %p128
        %p695 = pneg %p125
        %p696 = scmp.lt.s32.totalorder %s43, 1
        %s697 = scalar_select %p696, %s43, 1
        %s698 = scalar_lea.vmem %s3, %s697
        %p699 = pneg %p154
        %p700 = pneg %p151
        %p701 = pneg %p175
        %p702 = pneg %p172
        %p703 = pneg %p196
        %p704 = pneg %p193
        %p705 = pneg %p217
        %p706 = pneg %p214
        %p707 = pneg %p238
        %p708 = pneg %p235
        %p709 = pneg %p259
        %p710 = pneg %p256
        %p711 = pneg %p280
        %p712 = pneg %p277
        %p713 = pneg %p301
        %p714 = pneg %p298
        %p715 = pneg %p322
        %p716 = pneg %p319
        %p717 = pneg %p343
        %p718 = pneg %p340
        %p719 = pneg %p364
        %p720 = pneg %p361
        %p721 = pneg %p385
        %p722 = pneg %p382
        %p723 = pneg %p413
        %p724 = pneg %p410
        %s725 = sand.u32 %s400, 1
        %s726 = scalar_lea.sflag [#allocation6], %s725
        %s727 = sand.u32 %s400, 1
        %s728 = smul.addr %s727, 16
        %s729 = scalar_lea.vmem [#allocation22], %s728
        %s730 = smul.u32 2, %s44
        %s731 = smul.u32 16, %s44
        %p732 = scmp.lt.s32.totalorder %s43, 1
        %s733 = scalar_select %p732, %s43, 1
        %s734 = scalar_lea.vmem %s3, %s733
        %s735 = smul.u32 2, %s44
        %p737 = scmp.eq.s32.totalorder %s44, 0
        // Predicated region
        $region125: #{tpu_custom_call.1} parent=79 // pred_check
          %p738 = pneg %p737
        $region126: #{tpu_custom_call.1} parent=79 // pred_check_branch
          %740 = sbr.rel (%p738) target = $region128
        $region127: #{tpu_custom_call.1} parent=79 // pred_region
          %v741 = vld [vmem:[%s620] sm:$0xff]
          %v742 = vld [vmem:[%s620 + $0x8] sm:$0xff]
          %v743 = vld [vmem:[#allocation10] sm:$0x1]
          %v744 = vld [vmem:[#allocation12] sm:$0x1]
          %vm745 = vcmask 523264
          %v746 = vsel %vm745, %v741, 0.0
          %747 = vadd.xlane.f32.xlu0 %v746
          %v748 = vpop.xlane.xlu0 %747
          %v749 = vsel %vm745, %v742, 0.0
          %750 = vadd.xlane.f32.xlu0 %v749
          %v751 = vpop.xlane.xlu0 %750
          %v752 = vrcp.pop 64.0
          %v753 = vmul.f32 %v748, %v752
          %v754 = vmul.f32 %v751, %v752
          %v755 = vsub.f32 %v741, %v753
          %v756 = vsub.f32 %v742, %v754
          %v757 = vmul.f32 %v755, %v755
          %v758 = vmul.f32 %v756, %v756
          %v759 = vsel %vm745, %v757, 0.0
          %760 = vadd.xlane.f32.xlu0 %v759
          %v761 = vpop.xlane.xlu0 %760
          %v762 = vsel %vm745, %v758, 0.0
          %763 = vadd.xlane.f32.xlu0 %v762
          %v764 = vpop.xlane.xlu0 %763
          %v765 = vmul.f32 %v761, %v752
          %v766 = vmul.f32 %v764, %v752
          %v767 = vadd.f32 %v765, 1e-05
          %v768 = vadd.f32 %v766, 1e-05
          %v769 = vrsqrt.pop %v767
          %v770 = vrsqrt.pop %v768
          %v771 = vmul.f32 %v755, %v769
          %v772 = vmul.f32 %v756, %v770
          %v774 = vlaneseq
          %v775 = vshrl.u32 %v774, 7
          %v776 = vsub.s32 0, %v775
          %v777 = vrot.slane %v743, %v776
          %v779 = vmul.f32 %v771, %v777
          %v780 = vmul.f32 %v772, %v777
          %v782 = vlaneseq
          %v783 = vshrl.u32 %v782, 7
          %v784 = vsub.s32 0, %v783
          %v785 = vrot.slane %v744, %v784
          %v787 = vadd.f32 %v779, %v785
          %v788 = vadd.f32 %v780, %v785
          %v789 = vpack.c.bf16 %v788, %v787
          %v790 = vld [vmem:[#allocation18] sm:$0xf]
          %v791 = vld [vmem:[#allocation18 + $0x4] sm:$0xf]
          %v792 = vld [vmem:[#allocation18 + $0x8] sm:$0xf]
          %v793 = vld [vmem:[#allocation18 + $0xc] sm:$0xf]
          %v794 = vld [vmem:[#allocation18 + $0x10] sm:$0xf]
          %v795 = vld [vmem:[#allocation18 + $0x14] sm:$0xf]
          %v796 = vld [vmem:[#allocation18 + $0x18] sm:$0xf]
          %v797 = vld [vmem:[#allocation18 + $0x1c] sm:$0xf]
          %v806 = vunpack.c.l.b16 %v790
          %v807 = vunpack.c.l.b16 %v791
          %v808 = vunpack.c.l.b16 %v792
          %v809 = vunpack.c.l.b16 %v793
          %v810 = vunpack.c.l.b16 %v794
          %v811 = vunpack.c.l.b16 %v795
          %v812 = vunpack.c.l.b16 %v796
          %v813 = vunpack.c.l.b16 %v797
          %v814 = vpack.c.b16 %v807, %v806
          %v815 = vpack.c.b16 %v809, %v808
          %v816 = vpack.c.b16 %v811, %v810
          %v817 = vpack.c.b16 %v813, %v812
          %v823 = vsel %vm745, %v789, 0
          %825 = vmatprep.subr.bf16.mxu0 0
          %826 = vmatpush1.bf16.msra.mxu0 %v814
          %827 = vmatprep.subr.bf16.mxu0 0
          %828 = vmatpush1.bf16.msra.mxu0 %v815
          %829 = vmatprep.subr.bf16.mxu0 0
          %830 = vmatpush1.bf16.msra.mxu0 %v816
          %831 = vmatprep.subr.bf16.mxu0 0
          %832 = vmatpush1.bf16.msra.mxu0 %v817
          %833 = vmatprep.subr.bf16.mxu0 0
          %834 = vmatpush1.bf16.msra.mxu0 0
          %835 = vmatprep.subr.bf16.mxu0 0
          %836 = vmatpush1.bf16.msra.mxu0 0
          %837 = vmatprep.subr.bf16.mxu0 0
          %838 = vmatpush1.bf16.msra.mxu0 0
          %839 = vmatprep.subr.bf16.mxu0 0
          %840 = vmatpush1.bf16.msra.mxu0 0
          %841 = vmatprep.subr.bf16.mxu0 0
          %842 = vmatpush1.bf16.msra.mxu0 0
          %843 = vmatprep.subr.bf16.mxu0 0
          %844 = vmatpush1.bf16.msra.mxu0 0
          %845 = vmatprep.subr.bf16.mxu0 0
          %846 = vmatpush1.bf16.msra.mxu0 0
          %847 = vmatprep.subr.bf16.mxu0 0
          %848 = vmatpush1.bf16.msra.mxu0 0
          %849 = vmatprep.subr.bf16.mxu0 0
          %850 = vmatpush1.bf16.msra.mxu0 0
          %851 = vmatprep.subr.bf16.mxu0 0
          %852 = vmatpush1.bf16.msra.mxu0 0
          %853 = vmatprep.subr.bf16.mxu0 0
          %854 = vmatpush1.bf16.msra.mxu0 0
          %855 = vmatprep.subr.bf16.mxu0 0
          %856 = vmatpush1.bf16.msra.mxu0 0
          %857 = vmatprep.mubr.bf16.mxu0 0
          %858 = vmatmul.mubr.bf16.gmra.mrb[0].mxu0 %v823
          %v859 = vpop.f32.mrb[0].mxu0
          %v860 = vadd.f32 0.0, %v859
          %v861 = vpop.f32.mrb[0].mxu0
          %v862 = vpop.f32.mrb[0].mxu0
          %v863 = vadd.f32 0.0, %v862
          %v864 = vpop.f32.mrb[0].mxu0
          %865 = vdwg.mxu0
          %868 = vrot.lane.b32.xlu0 %v860, 112
          %v869 = vpop.permute.xlu0 %868
          %870 = vrot.lane.b32.xlu0 %v863, 112
          %v871 = vpop.permute.xlu0 %870
          %874 = vrot.lane.b32.xlu0 %v860, 96
          %v875 = vpop.permute.xlu0 %874
          %876 = vrot.lane.b32.xlu0 %v863, 96
          %v877 = vpop.permute.xlu0 %876
          %880 = vrot.lane.b32.xlu0 %v860, 80
          %v881 = vpop.permute.xlu0 %880
          %882 = vrot.lane.b32.xlu0 %v863, 80
          %v883 = vpop.permute.xlu0 %882
          %v886 = vcombine.low %v860, %v875
          %v887 = vcombine.high %v860, %v875
          %v889 = vunpack.c.l.s4 1983009808
          %v890 = vunpack.c.0.s8 %v889
          %v891 = vlaneseq
          %v892 = vshrl.u32 %v891, 7
          %v893 = vsub.s32 %v890, %v892
          %v894 = vrot.slane %v886, %v893
          %v896 = vunpack.c.l.s4 1983009808
          %v897 = vunpack.c.0.s8 %v896
          %v898 = vlaneseq
          %v899 = vshrl.u32 %v898, 7
          %v900 = vsub.s32 %v897, %v899
          %v901 = vrot.slane %v887, %v900
          %v902 = vcombine.low %v869, %v881
          %v903 = vcombine.high %v869, %v881
          %v905 = vunpack.c.l.s4 1983009808
          %v906 = vunpack.c.0.s8 %v905
          %v907 = vlaneseq
          %v908 = vshrl.u32 %v907, 7
          %v909 = vsub.s32 %v906, %v908
          %v910 = vrot.slane %v902, %v909
          %v912 = vunpack.c.l.s4 1983009808
          %v913 = vunpack.c.0.s8 %v912
          %v914 = vlaneseq
          %v915 = vshrl.u32 %v914, 7
          %v916 = vsub.s32 %v913, %v915
          %v917 = vrot.slane %v903, %v916
          %v918 = vcombine.low %v894, %v910
          %v919 = vcombine.high %v894, %v910
          %v921 = vunpack.c.l.s4 1934713408
          %v922 = vunpack.c.0.s8 %v921
          %v923 = vlaneseq
          %v924 = vshrl.u32 %v923, 7
          %v925 = vsub.s32 %v922, %v924
          %v926 = vrot.slane %v918, %v925
          %v928 = vunpack.c.l.s4 1934713408
          %v929 = vunpack.c.0.s8 %v928
          %v930 = vlaneseq
          %v931 = vshrl.u32 %v930, 7
          %v932 = vsub.s32 %v929, %v931
          %v933 = vrot.slane %v919, %v932
          %v934 = vcombine.low %v901, %v917
          %v935 = vcombine.high %v901, %v917
          %v937 = vunpack.c.l.s4 1934713408
          %v938 = vunpack.c.0.s8 %v937
          %v939 = vlaneseq
          %v940 = vshrl.u32 %v939, 7
          %v941 = vsub.s32 %v938, %v940
          %v942 = vrot.slane %v934, %v941
          %v944 = vunpack.c.l.s4 1934713408
          %v945 = vunpack.c.0.s8 %v944
          %v946 = vlaneseq
          %v947 = vshrl.u32 %v946, 7
          %v948 = vsub.s32 %v945, %v947
          %v949 = vrot.slane %v935, %v948
          %v950 = vcombine.high %v926, 0.0
          %v951 = vcombine.high %v933, 0.0
          %v952 = vcombine.high %v942, 0.0
          %v953 = vcombine.high %v949, 0.0
          %v954 = vcombine.low %v863, %v877
          %v955 = vcombine.high %v863, %v877
          %v957 = vunpack.c.l.s4 1983009808
          %v958 = vunpack.c.0.s8 %v957
          %v959 = vlaneseq
          %v960 = vshrl.u32 %v959, 7
          %v961 = vsub.s32 %v958, %v960
          %v962 = vrot.slane %v954, %v961
          %v964 = vunpack.c.l.s4 1983009808
          %v965 = vunpack.c.0.s8 %v964
          %v966 = vlaneseq
          %v967 = vshrl.u32 %v966, 7
          %v968 = vsub.s32 %v965, %v967
          %v969 = vrot.slane %v955, %v968
          %v970 = vcombine.low %v871, %v883
          %v971 = vcombine.high %v871, %v883
          %v973 = vunpack.c.l.s4 1983009808
          %v974 = vunpack.c.0.s8 %v973
          %v975 = vlaneseq
          %v976 = vshrl.u32 %v975, 7
          %v977 = vsub.s32 %v974, %v976
          %v978 = vrot.slane %v970, %v977
          %v980 = vunpack.c.l.s4 1983009808
          %v981 = vunpack.c.0.s8 %v980
          %v982 = vlaneseq
          %v983 = vshrl.u32 %v982, 7
          %v984 = vsub.s32 %v981, %v983
          %v985 = vrot.slane %v971, %v984
          %v986 = vcombine.low %v962, %v978
          %v987 = vcombine.high %v962, %v978
          %v989 = vunpack.c.l.s4 1934713408
          %v990 = vunpack.c.0.s8 %v989
          %v991 = vlaneseq
          %v992 = vshrl.u32 %v991, 7
          %v993 = vsub.s32 %v990, %v992
          %v994 = vrot.slane %v986, %v993
          %v996 = vunpack.c.l.s4 1934713408
          %v997 = vunpack.c.0.s8 %v996
          %v998 = vlaneseq
          %v999 = vshrl.u32 %v998, 7
          %v1000 = vsub.s32 %v997, %v999
          %v1001 = vrot.slane %v987, %v1000
          %v1002 = vcombine.low %v969, %v985
          %v1003 = vcombine.high %v969, %v985
          %v1005 = vunpack.c.l.s4 1934713408
          %v1006 = vunpack.c.0.s8 %v1005
          %v1007 = vlaneseq
          %v1008 = vshrl.u32 %v1007, 7
          %v1009 = vsub.s32 %v1006, %v1008
          %v1010 = vrot.slane %v1002, %v1009
          %v1012 = vunpack.c.l.s4 1934713408
          %v1013 = vunpack.c.0.s8 %v1012
          %v1014 = vlaneseq
          %v1015 = vshrl.u32 %v1014, 7
          %v1016 = vsub.s32 %v1013, %v1015
          %v1017 = vrot.slane %v1003, %v1016
          %v1018 = vcombine.high %v994, 0.0
          %v1019 = vcombine.high %v1001, 0.0
          %v1020 = vcombine.high %v1010, 0.0
          %v1021 = vcombine.high %v1017, 0.0
          %v1022 = vcombine.low %v926, %v933
          %v1024 = vunpack.c.l.s4 1983009808
          %v1025 = vunpack.c.0.s8 %v1024
          %v1026 = vlaneseq
          %v1027 = vshrl.u32 %v1026, 7
          %v1028 = vsub.s32 %v1025, %v1027
          %v1029 = vrot.slane %v1022, %v1028
          %v1030 = vcombine.low %v950, %v951
          %v1032 = vunpack.c.l.s4 1983009808
          %v1033 = vunpack.c.0.s8 %v1032
          %v1034 = vlaneseq
          %v1035 = vshrl.u32 %v1034, 7
          %v1036 = vsub.s32 %v1033, %v1035
          %v1037 = vrot.slane %v1030, %v1036
          %v1038 = vcombine.low %v942, %v949
          %v1040 = vunpack.c.l.s4 1983009808
          %v1041 = vunpack.c.0.s8 %v1040
          %v1042 = vlaneseq
          %v1043 = vshrl.u32 %v1042, 7
          %v1044 = vsub.s32 %v1041, %v1043
          %v1045 = vrot.slane %v1038, %v1044
          %v1046 = vcombine.low %v952, %v953
          %v1048 = vunpack.c.l.s4 1983009808
          %v1049 = vunpack.c.0.s8 %v1048
          %v1050 = vlaneseq
          %v1051 = vshrl.u32 %v1050, 7
          %v1052 = vsub.s32 %v1049, %v1051
          %v1053 = vrot.slane %v1046, %v1052
          %v1054 = vcombine.low %v1029, %v1037
          %v1055 = vcombine.high %v1029, %v1037
          %v1057 = vunpack.c.l.s4 1934713408
          %v1058 = vunpack.c.0.s8 %v1057
          %v1059 = vlaneseq
          %v1060 = vshrl.u32 %v1059, 7
          %v1061 = vsub.s32 %v1058, %v1060
          %v1062 = vrot.slane %v1054, %v1061
          %v1064 = vunpack.c.l.s4 1934713408
          %v1065 = vunpack.c.0.s8 %v1064
          %v1066 = vlaneseq
          %v1067 = vshrl.u32 %v1066, 7
          %v1068 = vsub.s32 %v1065, %v1067
          %v1069 = vrot.slane %v1055, %v1068
          %v1070 = vcombine.low %v1045, %v1053
          %v1071 = vcombine.high %v1045, %v1053
          %v1073 = vunpack.c.l.s4 1934713408
          %v1074 = vunpack.c.0.s8 %v1073
          %v1075 = vlaneseq
          %v1076 = vshrl.u32 %v1075, 7
          %v1077 = vsub.s32 %v1074, %v1076
          %v1078 = vrot.slane %v1070, %v1077
          %v1080 = vunpack.c.l.s4 1934713408
          %v1081 = vunpack.c.0.s8 %v1080
          %v1082 = vlaneseq
          %v1083 = vshrl.u32 %v1082, 7
          %v1084 = vsub.s32 %v1081, %v1083
          %v1085 = vrot.slane %v1071, %v1084
          %v1086 = vcombine.low %v1062, %v1078
          %v1087 = vcombine.high %v1062, %v1078
          %v1088 = vcombine.low %v1069, %v1085
          %v1089 = vcombine.high %v1069, %v1085
          %v1090 = vcombine.low %v994, %v1001
          %v1092 = vunpack.c.l.s4 1983009808
          %v1093 = vunpack.c.0.s8 %v1092
          %v1094 = vlaneseq
          %v1095 = vshrl.u32 %v1094, 7
          %v1096 = vsub.s32 %v1093, %v1095
          %v1097 = vrot.slane %v1090, %v1096
          %v1098 = vcombine.low %v1018, %v1019
          %v1100 = vunpack.c.l.s4 1983009808
          %v1101 = vunpack.c.0.s8 %v1100
          %v1102 = vlaneseq
          %v1103 = vshrl.u32 %v1102, 7
          %v1104 = vsub.s32 %v1101, %v1103
          %v1105 = vrot.slane %v1098, %v1104
          %v1106 = vcombine.low %v1010, %v1017
          %v1108 = vunpack.c.l.s4 1983009808
          %v1109 = vunpack.c.0.s8 %v1108
          %v1110 = vlaneseq
          %v1111 = vshrl.u32 %v1110, 7
          %v1112 = vsub.s32 %v1109, %v1111
          %v1113 = vrot.slane %v1106, %v1112
          %v1114 = vcombine.low %v1020, %v1021
          %v1116 = vunpack.c.l.s4 1983009808
          %v1117 = vunpack.c.0.s8 %v1116
          %v1118 = vlaneseq
          %v1119 = vshrl.u32 %v1118, 7
          %v1120 = vsub.s32 %v1117, %v1119
          %v1121 = vrot.slane %v1114, %v1120
          %v1122 = vcombine.low %v1097, %v1105
          %v1123 = vcombine.high %v1097, %v1105
          %v1125 = vunpack.c.l.s4 1934713408
          %v1126 = vunpack.c.0.s8 %v1125
          %v1127 = vlaneseq
          %v1128 = vshrl.u32 %v1127, 7
          %v1129 = vsub.s32 %v1126, %v1128
          %v1130 = vrot.slane %v1122, %v1129
          %v1132 = vunpack.c.l.s4 1934713408
          %v1133 = vunpack.c.0.s8 %v1132
          %v1134 = vlaneseq
          %v1135 = vshrl.u32 %v1134, 7
          %v1136 = vsub.s32 %v1133, %v1135
          %v1137 = vrot.slane %v1123, %v1136
          %v1138 = vcombine.low %v1113, %v1121
          %v1139 = vcombine.high %v1113, %v1121
          %v1141 = vunpack.c.l.s4 1934713408
          %v1142 = vunpack.c.0.s8 %v1141
          %v1143 = vlaneseq
          %v1144 = vshrl.u32 %v1143, 7
          %v1145 = vsub.s32 %v1142, %v1144
          %v1146 = vrot.slane %v1138, %v1145
          %v1148 = vunpack.c.l.s4 1934713408
          %v1149 = vunpack.c.0.s8 %v1148
          %v1150 = vlaneseq
          %v1151 = vshrl.u32 %v1150, 7
          %v1152 = vsub.s32 %v1149, %v1151
          %v1153 = vrot.slane %v1139, %v1152
          %v1154 = vcombine.low %v1130, %v1146
          %v1155 = vcombine.high %v1130, %v1146
          %v1156 = vcombine.low %v1137, %v1153
          %v1157 = vcombine.high %v1137, %v1153
          %v1158 = vpack.c.bf16 %v1154, %v1086
          %v1159 = vpack.c.bf16 %v1155, %v1087
          %v1160 = vpack.c.bf16 %v1156, %v1088
          %v1161 = vpack.c.bf16 %v1157, %v1089
          %vm1162 = vcmask 130048
          %1163 = vst.msk [vmem:[#allocation2] sm:$0xff] %vm1162, %v1158
          %1164 = vst.msk [vmem:[#allocation2 + $0x8] sm:$0xff] %vm1162, %v1159
          %1165 = vst.msk [vmem:[#allocation2 + $0x10] sm:$0xff] %vm1162, %v1160
          %1166 = vst.msk [vmem:[#allocation2 + $0x18] sm:$0xff] %vm1162, %v1161
          %1167 = vrot.lane.b32.xlu0 %v860, 64
          %v1168 = vpop.permute.xlu0 %1167
          %1169 = vrot.lane.b32.xlu0 %v863, 64
          %v1170 = vpop.permute.xlu0 %1169
          %1171 = vrot.lane.b32.xlu0 %v869, 64
          %v1172 = vpop.permute.xlu0 %1171
          %1173 = vrot.lane.b32.xlu0 %v871, 64
          %v1174 = vpop.permute.xlu0 %1173
          %1175 = vrot.lane.b32.xlu0 %v875, 64
          %v1176 = vpop.permute.xlu0 %1175
          %1177 = vrot.lane.b32.xlu0 %v877, 64
          %v1178 = vpop.permute.xlu0 %1177
          %1179 = vrot.lane.b32.xlu0 %v881, 64
          %v1180 = vpop.permute.xlu0 %1179
          %1181 = vrot.lane.b32.xlu0 %v883, 64
          %v1182 = vpop.permute.xlu0 %1181
          %v1191 = vcombine.low %v1168, %v1176
          %v1192 = vcombine.high %v1168, %v1176
          %v1194 = vunpack.c.l.s4 1983009808
          %v1195 = vunpack.c.0.s8 %v1194
          %v1196 = vlaneseq
          %v1197 = vshrl.u32 %v1196, 7
          %v1198 = vsub.s32 %v1195, %v1197
          %v1199 = vrot.slane %v1191, %v1198
          %v1201 = vunpack.c.l.s4 1983009808
          %v1202 = vunpack.c.0.s8 %v1201
          %v1203 = vlaneseq
          %v1204 = vshrl.u32 %v1203, 7
          %v1205 = vsub.s32 %v1202, %v1204
          %v1206 = vrot.slane %v1192, %v1205
          %v1207 = vcombine.low %v1172, %v1180
          %v1208 = vcombine.high %v1172, %v1180
          %v1210 = vunpack.c.l.s4 1983009808
          %v1211 = vunpack.c.0.s8 %v1210
          %v1212 = vlaneseq
          %v1213 = vshrl.u32 %v1212, 7
          %v1214 = vsub.s32 %v1211, %v1213
          %v1215 = vrot.slane %v1207, %v1214
          %v1217 = vunpack.c.l.s4 1983009808
          %v1218 = vunpack.c.0.s8 %v1217
          %v1219 = vlaneseq
          %v1220 = vshrl.u32 %v1219, 7
          %v1221 = vsub.s32 %v1218, %v1220
          %v1222 = vrot.slane %v1208, %v1221
          %v1223 = vcombine.low %v1199, %v1215
          %v1224 = vcombine.high %v1199, %v1215
          %v1226 = vunpack.c.l.s4 1934713408
          %v1227 = vunpack.c.0.s8 %v1226
          %v1228 = vlaneseq
          %v1229 = vshrl.u32 %v1228, 7
          %v1230 = vsub.s32 %v1227, %v1229
          %v1231 = vrot.slane %v1223, %v1230
          %v1233 = vunpack.c.l.s4 1934713408
          %v1234 = vunpack.c.0.s8 %v1233
          %v1235 = vlaneseq
          %v1236 = vshrl.u32 %v1235, 7
          %v1237 = vsub.s32 %v1234, %v1236
          %v1238 = vrot.slane %v1224, %v1237
          %v1239 = vcombine.low %v1206, %v1222
          %v1240 = vcombine.high %v1206, %v1222
          %v1242 = vunpack.c.l.s4 1934713408
          %v1243 = vunpack.c.0.s8 %v1242
          %v1244 = vlaneseq
          %v1245 = vshrl.u32 %v1244, 7
          %v1246 = vsub.s32 %v1243, %v1245
          %v1247 = vrot.slane %v1239, %v1246
          %v1249 = vunpack.c.l.s4 1934713408
          %v1250 = vunpack.c.0.s8 %v1249
          %v1251 = vlaneseq
          %v1252 = vshrl.u32 %v1251, 7
          %v1253 = vsub.s32 %v1250, %v1252
          %v1254 = vrot.slane %v1240, %v1253
          %v1255 = vcombine.high %v1231, 0.0
          %v1256 = vcombine.high %v1238, 0.0
          %v1257 = vcombine.high %v1247, 0.0
          %v1258 = vcombine.high %v1254, 0.0
          %v1259 = vcombine.low %v1170, %v1178
          %v1260 = vcombine.high %v1170, %v1178
          %v1262 = vunpack.c.l.s4 1983009808
          %v1263 = vunpack.c.0.s8 %v1262
          %v1264 = vlaneseq
          %v1265 = vshrl.u32 %v1264, 7
          %v1266 = vsub.s32 %v1263, %v1265
          %v1267 = vrot.slane %v1259, %v1266
          %v1269 = vunpack.c.l.s4 1983009808
          %v1270 = vunpack.c.0.s8 %v1269
          %v1271 = vlaneseq
          %v1272 = vshrl.u32 %v1271, 7
          %v1273 = vsub.s32 %v1270, %v1272
          %v1274 = vrot.slane %v1260, %v1273
          %v1275 = vcombine.low %v1174, %v1182
          %v1276 = vcombine.high %v1174, %v1182
          %v1278 = vunpack.c.l.s4 1983009808
          %v1279 = vunpack.c.0.s8 %v1278
          %v1280 = vlaneseq
          %v1281 = vshrl.u32 %v1280, 7
          %v1282 = vsub.s32 %v1279, %v1281
          %v1283 = vrot.slane %v1275, %v1282
          %v1285 = vunpack.c.l.s4 1983009808
          %v1286 = vunpack.c.0.s8 %v1285
          %v1287 = vlaneseq
          %v1288 = vshrl.u32 %v1287, 7
          %v1289 = vsub.s32 %v1286, %v1288
          %v1290 = vrot.slane %v1276, %v1289
          %v1291 = vcombine.low %v1267, %v1283
          %v1292 = vcombine.high %v1267, %v1283
          %v1294 = vunpack.c.l.s4 1934713408
          %v1295 = vunpack.c.0.s8 %v1294
          %v1296 = vlaneseq
          %v1297 = vshrl.u32 %v1296, 7
          %v1298 = vsub.s32 %v1295, %v1297
          %v1299 = vrot.slane %v1291, %v1298
          %v1301 = vunpack.c.l.s4 1934713408
          %v1302 = vunpack.c.0.s8 %v1301
          %v1303 = vlaneseq
          %v1304 = vshrl.u32 %v1303, 7
          %v1305 = vsub.s32 %v1302, %v1304
          %v1306 = vrot.slane %v1292, %v1305
          %v1307 = vcombine.low %v1274, %v1290
          %v1308 = vcombine.high %v1274, %v1290
          %v1310 = vunpack.c.l.s4 1934713408
          %v1311 = vunpack.c.0.s8 %v1310
          %v1312 = vlaneseq
          %v1313 = vshrl.u32 %v1312, 7
          %v1314 = vsub.s32 %v1311, %v1313
          %v1315 = vrot.slane %v1307, %v1314
          %v1317 = vunpack.c.l.s4 1934713408
          %v1318 = vunpack.c.0.s8 %v1317
          %v1319 = vlaneseq
          %v1320 = vshrl.u32 %v1319, 7
          %v1321 = vsub.s32 %v1318, %v1320
          %v1322 = vrot.slane %v1308, %v1321
          %v1323 = vcombine.high %v1299, 0.0
          %v1324 = vcombine.high %v1306, 0.0
          %v1325 = vcombine.high %v1315, 0.0
          %v1326 = vcombine.high %v1322, 0.0
          %v1327 = vcombine.low %v1231, %v1238
          %v1329 = vunpack.c.l.s4 1983009808
          %v1330 = vunpack.c.0.s8 %v1329
          %v1331 = vlaneseq
          %v1332 = vshrl.u32 %v1331, 7
          %v1333 = vsub.s32 %v1330, %v1332
          %v1334 = vrot.slane %v1327, %v1333
          %v1335 = vcombine.low %v1255, %v1256
          %v1337 = vunpack.c.l.s4 1983009808
          %v1338 = vunpack.c.0.s8 %v1337
          %v1339 = vlaneseq
          %v1340 = vshrl.u32 %v1339, 7
          %v1341 = vsub.s32 %v1338, %v1340
          %v1342 = vrot.slane %v1335, %v1341
          %v1343 = vcombine.low %v1247, %v1254
          %v1345 = vunpack.c.l.s4 1983009808
          %v1346 = vunpack.c.0.s8 %v1345
          %v1347 = vlaneseq
          %v1348 = vshrl.u32 %v1347, 7
          %v1349 = vsub.s32 %v1346, %v1348
          %v1350 = vrot.slane %v1343, %v1349
          %v1351 = vcombine.low %v1257, %v1258
          %v1353 = vunpack.c.l.s4 1983009808
          %v1354 = vunpack.c.0.s8 %v1353
          %v1355 = vlaneseq
          %v1356 = vshrl.u32 %v1355, 7
          %v1357 = vsub.s32 %v1354, %v1356
          %v1358 = vrot.slane %v1351, %v1357
          %v1359 = vcombine.low %v1334, %v1342
          %v1360 = vcombine.high %v1334, %v1342
          %v1362 = vunpack.c.l.s4 1934713408
          %v1363 = vunpack.c.0.s8 %v1362
          %v1364 = vlaneseq
          %v1365 = vshrl.u32 %v1364, 7
          %v1366 = vsub.s32 %v1363, %v1365
          %v1367 = vrot.slane %v1359, %v1366
          %v1369 = vunpack.c.l.s4 1934713408
          %v1370 = vunpack.c.0.s8 %v1369
          %v1371 = vlaneseq
          %v1372 = vshrl.u32 %v1371, 7
          %v1373 = vsub.s32 %v1370, %v1372
          %v1374 = vrot.slane %v1360, %v1373
          %v1375 = vcombine.low %v1350, %v1358
          %v1376 = vcombine.high %v1350, %v1358
          %v1378 = vunpack.c.l.s4 1934713408
          %v1379 = vunpack.c.0.s8 %v1378
          %v1380 = vlaneseq
          %v1381 = vshrl.u32 %v1380, 7
          %v1382 = vsub.s32 %v1379, %v1381
          %v1383 = vrot.slane %v1375, %v1382
          %v1385 = vunpack.c.l.s4 1934713408
          %v1386 = vunpack.c.0.s8 %v1385
          %v1387 = vlaneseq
          %v1388 = vshrl.u32 %v1387, 7
          %v1389 = vsub.s32 %v1386, %v1388
          %v1390 = vrot.slane %v1376, %v1389
          %v1391 = vcombine.low %v1367, %v1383
          %v1392 = vcombine.high %v1367, %v1383
          %v1393 = vcombine.low %v1374, %v1390
          %v1394 = vcombine.high %v1374, %v1390
          %v1395 = vcombine.low %v1299, %v1306
          %v1397 = vunpack.c.l.s4 1983009808
          %v1398 = vunpack.c.0.s8 %v1397
          %v1399 = vlaneseq
          %v1400 = vshrl.u32 %v1399, 7
          %v1401 = vsub.s32 %v1398, %v1400
          %v1402 = vrot.slane %v1395, %v1401
          %v1403 = vcombine.low %v1323, %v1324
          %v1405 = vunpack.c.l.s4 1983009808
          %v1406 = vunpack.c.0.s8 %v1405
          %v1407 = vlaneseq
          %v1408 = vshrl.u32 %v1407, 7
          %v1409 = vsub.s32 %v1406, %v1408
          %v1410 = vrot.slane %v1403, %v1409
          %v1411 = vcombine.low %v1315, %v1322
          %v1413 = vunpack.c.l.s4 1983009808
          %v1414 = vunpack.c.0.s8 %v1413
          %v1415 = vlaneseq
          %v1416 = vshrl.u32 %v1415, 7
          %v1417 = vsub.s32 %v1414, %v1416
          %v1418 = vrot.slane %v1411, %v1417
          %v1419 = vcombine.low %v1325, %v1326
          %v1421 = vunpack.c.l.s4 1983009808
          %v1422 = vunpack.c.0.s8 %v1421
          %v1423 = vlaneseq
          %v1424 = vshrl.u32 %v1423, 7
          %v1425 = vsub.s32 %v1422, %v1424
          %v1426 = vrot.slane %v1419, %v1425
          %v1427 = vcombine.low %v1402, %v1410
          %v1428 = vcombine.high %v1402, %v1410
          %v1430 = vunpack.c.l.s4 1934713408
          %v1431 = vunpack.c.0.s8 %v1430
          %v1432 = vlaneseq
          %v1433 = vshrl.u32 %v1432, 7
          %v1434 = vsub.s32 %v1431, %v1433
          %v1435 = vrot.slane %v1427, %v1434
          %v1437 = vunpack.c.l.s4 1934713408
          %v1438 = vunpack.c.0.s8 %v1437
          %v1439 = vlaneseq
          %v1440 = vshrl.u32 %v1439, 7
          %v1441 = vsub.s32 %v1438, %v1440
          %v1442 = vrot.slane %v1428, %v1441
          %v1443 = vcombine.low %v1418, %v1426
          %v1444 = vcombine.high %v1418, %v1426
          %v1446 = vunpack.c.l.s4 1934713408
          %v1447 = vunpack.c.0.s8 %v1446
          %v1448 = vlaneseq
          %v1449 = vshrl.u32 %v1448, 7
          %v1450 = vsub.s32 %v1447, %v1449
          %v1451 = vrot.slane %v1443, %v1450
          %v1453 = vunpack.c.l.s4 1934713408
          %v1454 = vunpack.c.0.s8 %v1453
          %v1455 = vlaneseq
          %v1456 = vshrl.u32 %v1455, 7
          %v1457 = vsub.s32 %v1454, %v1456
          %v1458 = vrot.slane %v1444, %v1457
          %v1459 = vcombine.low %v1435, %v1451
          %v1460 = vcombine.high %v1435, %v1451
          %v1461 = vcombine.low %v1442, %v1458
          %v1462 = vcombine.high %v1442, %v1458
          %v1463 = vpack.c.bf16 %v1459, %v1391
          %v1464 = vpack.c.bf16 %v1460, %v1392
          %v1465 = vpack.c.bf16 %v1461, %v1393
          %v1466 = vpack.c.bf16 %v1462, %v1394
          %1467 = vst.msk [vmem:[#allocation3] sm:$0xff] %vm1162, %v1463
          %1468 = vst.msk [vmem:[#allocation3 + $0x8] sm:$0xff] %vm1162, %v1464
          %1469 = vst.msk [vmem:[#allocation3 + $0x10] sm:$0xff] %vm1162, %v1465
          %1470 = vst.msk [vmem:[#allocation3 + $0x18] sm:$0xff] %vm1162, %v1466
        $region128: #{tpu_custom_call.1} parent=79 // pred_fallthru
          _
        %v1471 = vld [vmem:[%s629] sm:$0xff]
        %v1472 = vld [vmem:[%s629 + $0x8] sm:$0xff]
        %v1473 = vld [vmem:[#allocation10] sm:$0x1]
        %v1474 = vld [vmem:[#allocation12] sm:$0x1]
        %vm1475 = vcmask 523264
        %v1476 = vsel %vm1475, %v1471, 0.0
        %1477 = vadd.xlane.f32.xlu0 %v1476
        %v1478 = vpop.xlane.xlu0 %1477
        %v1479 = vsel %vm1475, %v1472, 0.0
        %1480 = vadd.xlane.f32.xlu0 %v1479
        %v1481 = vpop.xlane.xlu0 %1480
        %v1482 = vrcp.pop 64.0
        %v1483 = vmul.f32 %v1478, %v1482
        %v1484 = vmul.f32 %v1481, %v1482
        %v1485 = vsub.f32 %v1471, %v1483
        %v1486 = vsub.f32 %v1472, %v1484
        %v1487 = vmul.f32 %v1485, %v1485
        %v1488 = vmul.f32 %v1486, %v1486
        %v1489 = vsel %vm1475, %v1487, 0.0
        %1490 = vadd.xlane.f32.xlu0 %v1489
        %v1491 = vpop.xlane.xlu0 %1490
        %v1492 = vsel %vm1475, %v1488, 0.0
        %1493 = vadd.xlane.f32.xlu0 %v1492
        %v1494 = vpop.xlane.xlu0 %1493
        %v1495 = vmul.f32 %v1491, %v1482
        %v1496 = vmul.f32 %v1494, %v1482
        %v1497 = vadd.f32 %v1495, 1e-05
        %v1498 = vadd.f32 %v1496, 1e-05
        %v1499 = vrsqrt.pop %v1497
        %v1500 = vrsqrt.pop %v1498
        %v1501 = vmul.f32 %v1485, %v1499
        %v1502 = vmul.f32 %v1486, %v1500
        %v1504 = vlaneseq
        %v1505 = vshrl.u32 %v1504, 7
        %v1506 = vsub.s32 0, %v1505
        %v1507 = vrot.slane %v1473, %v1506
        %v1509 = vmul.f32 %v1501, %v1507
        %v1510 = vmul.f32 %v1502, %v1507
        %v1512 = vlaneseq
        %v1513 = vshrl.u32 %v1512, 7
        %v1514 = vsub.s32 0, %v1513
        %v1515 = vrot.slane %v1474, %v1514
        %v1517 = vadd.f32 %v1509, %v1515
        %v1518 = vadd.f32 %v1510, %v1515
        %v1519 = vpack.c.bf16 %v1518, %v1517
        %v1520 = vld [vmem:[%s9] sm:$0xf]
        %v1521 = vld [vmem:[%s9 + $0x4] sm:$0xf]
        %v1522 = vld [vmem:[%s9 + $0x8] sm:$0xf]
        %v1523 = vld [vmem:[%s9 + $0xc] sm:$0xf]
        %v1524 = vld [vmem:[%s9 + $0x10] sm:$0xf]
        %v1525 = vld [vmem:[%s9 + $0x14] sm:$0xf]
        %v1526 = vld [vmem:[%s9 + $0x18] sm:$0xf]
        %v1527 = vld [vmem:[%s9 + $0x1c] sm:$0xf]
        %v1536 = vunpack.c.l.b16 %v1520
        %v1537 = vunpack.c.l.b16 %v1521
        %v1538 = vunpack.c.l.b16 %v1522
        %v1539 = vunpack.c.l.b16 %v1523
        %v1540 = vunpack.c.l.b16 %v1524
        %v1541 = vunpack.c.l.b16 %v1525
        %v1542 = vunpack.c.l.b16 %v1526
        %v1543 = vunpack.c.l.b16 %v1527
        %v1544 = vpack.c.b16 %v1537, %v1536
        %v1545 = vpack.c.b16 %v1539, %v1538
        %v1546 = vpack.c.b16 %v1541, %v1540
        %v1547 = vpack.c.b16 %v1543, %v1542
        %v1553 = vsel %vm1475, %v1519, 0
        %1555 = vmatprep.subr.bf16.mxu0 0
        %1556 = vmatpush1.bf16.msra.mxu0 %v1544
        %1557 = vmatprep.subr.bf16.mxu0 0
        %1558 = vmatpush1.bf16.msra.mxu0 %v1545
        %1559 = vmatprep.subr.bf16.mxu0 0
        %1560 = vmatpush1.bf16.msra.mxu0 %v1546
        %1561 = vmatprep.subr.bf16.mxu0 0
        %1562 = vmatpush1.bf16.msra.mxu0 %v1547
        %1563 = vmatprep.subr.bf16.mxu0 0
        %1564 = vmatpush1.bf16.msra.mxu0 0
        %1565 = vmatprep.subr.bf16.mxu0 0
        %1566 = vmatpush1.bf16.msra.mxu0 0
        %1567 = vmatprep.subr.bf16.mxu0 0
        %1568 = vmatpush1.bf16.msra.mxu0 0
        %1569 = vmatprep.subr.bf16.mxu0 0
        %1570 = vmatpush1.bf16.msra.mxu0 0
        %1571 = vmatprep.subr.bf16.mxu0 0
        %1572 = vmatpush1.bf16.msra.mxu0 0
        %1573 = vmatprep.subr.bf16.mxu0 0
        %1574 = vmatpush1.bf16.msra.mxu0 0
        %1575 = vmatprep.subr.bf16.mxu0 0
        %1576 = vmatpush1.bf16.msra.mxu0 0
        %1577 = vmatprep.subr.bf16.mxu0 0
        %1578 = vmatpush1.bf16.msra.mxu0 0
        %1579 = vmatprep.subr.bf16.mxu0 0
        %1580 = vmatpush1.bf16.msra.mxu0 0
        %1581 = vmatprep.subr.bf16.mxu0 0
        %1582 = vmatpush1.bf16.msra.mxu0 0
        %1583 = vmatprep.subr.bf16.mxu0 0
        %1584 = vmatpush1.bf16.msra.mxu0 0
        %1585 = vmatprep.subr.bf16.mxu0 0
        %1586 = vmatpush1.bf16.msra.mxu0 0
        %1587 = vmatprep.mubr.bf16.mxu0 0
        %1588 = vmatmul.mubr.bf16.gmra.mrb[0].mxu0 %v1553
        %v1589 = vpop.f32.mrb[0].mxu0
        %v1590 = vadd.f32 0.0, %v1589
        %v1591 = vpop.f32.mrb[0].mxu0
        %v1592 = vpop.f32.mrb[0].mxu0
        %v1593 = vadd.f32 0.0, %v1592
        %v1594 = vpop.f32.mrb[0].mxu0
        %1595 = vdwg.mxu0
        %v1596 = vmul.f32 %v1590, 0.25
        %v1597 = vmul.f32 %v1593, 0.25
        %1600 = vrot.lane.b32.xlu0 %v1596, 112
        %v1601 = vpop.permute.xlu0 %1600
        %1602 = vrot.lane.b32.xlu0 %v1597, 112
        %v1603 = vpop.permute.xlu0 %1602
        %1606 = vrot.lane.b32.xlu0 %v1596, 96
        %v1607 = vpop.permute.xlu0 %1606
        %1608 = vrot.lane.b32.xlu0 %v1597, 96
        %v1609 = vpop.permute.xlu0 %1608
        %1612 = vrot.lane.b32.xlu0 %v1596, 80
        %v1613 = vpop.permute.xlu0 %1612
        %1614 = vrot.lane.b32.xlu0 %v1597, 80
        %v1615 = vpop.permute.xlu0 %1614
        %v1618 = vcombine.low %v1596, %v1607
        %v1619 = vcombine.high %v1596, %v1607
        %v1621 = vunpack.c.l.s4 1983009808
        %v1622 = vunpack.c.0.s8 %v1621
        %v1623 = vlaneseq
        %v1624 = vshrl.u32 %v1623, 7
        %v1625 = vsub.s32 %v1622, %v1624
        %v1626 = vrot.slane %v1618, %v1625
        %v1628 = vunpack.c.l.s4 1983009808
        %v1629 = vunpack.c.0.s8 %v1628
        %v1630 = vlaneseq
        %v1631 = vshrl.u32 %v1630, 7
        %v1632 = vsub.s32 %v1629, %v1631
        %v1633 = vrot.slane %v1619, %v1632
        %v1634 = vcombine.low %v1601, %v1613
        %v1635 = vcombine.high %v1601, %v1613
        %v1637 = vunpack.c.l.s4 1983009808
        %v1638 = vunpack.c.0.s8 %v1637
        %v1639 = vlaneseq
        %v1640 = vshrl.u32 %v1639, 7
        %v1641 = vsub.s32 %v1638, %v1640
        %v1642 = vrot.slane %v1634, %v1641
        %v1644 = vunpack.c.l.s4 1983009808
        %v1645 = vunpack.c.0.s8 %v1644
        %v1646 = vlaneseq
        %v1647 = vshrl.u32 %v1646, 7
        %v1648 = vsub.s32 %v1645, %v1647
        %v1649 = vrot.slane %v1635, %v1648
        %v1650 = vcombine.low %v1626, %v1642
        %v1651 = vcombine.high %v1626, %v1642
        %v1653 = vunpack.c.l.s4 1934713408
        %v1654 = vunpack.c.0.s8 %v1653
        %v1655 = vlaneseq
        %v1656 = vshrl.u32 %v1655, 7
        %v1657 = vsub.s32 %v1654, %v1656
        %v1658 = vrot.slane %v1650, %v1657
        %v1660 = vunpack.c.l.s4 1934713408
        %v1661 = vunpack.c.0.s8 %v1660
        %v1662 = vlaneseq
        %v1663 = vshrl.u32 %v1662, 7
        %v1664 = vsub.s32 %v1661, %v1663
        %v1665 = vrot.slane %v1651, %v1664
        %v1666 = vcombine.low %v1633, %v1649
        %v1667 = vcombine.high %v1633, %v1649
        %v1669 = vunpack.c.l.s4 1934713408
        %v1670 = vunpack.c.0.s8 %v1669
        %v1671 = vlaneseq
        %v1672 = vshrl.u32 %v1671, 7
        %v1673 = vsub.s32 %v1670, %v1672
        %v1674 = vrot.slane %v1666, %v1673
        %v1676 = vunpack.c.l.s4 1934713408
        %v1677 = vunpack.c.0.s8 %v1676
        %v1678 = vlaneseq
        %v1679 = vshrl.u32 %v1678, 7
        %v1680 = vsub.s32 %v1677, %v1679
        %v1681 = vrot.slane %v1667, %v1680
        %v1682 = vcombine.high %v1658, 0.0
        %v1683 = vcombine.high %v1665, 0.0
        %v1684 = vcombine.high %v1674, 0.0
        %v1685 = vcombine.high %v1681, 0.0
        %v1686 = vcombine.low %v1597, %v1609
        %v1687 = vcombine.high %v1597, %v1609
        %v1689 = vunpack.c.l.s4 1983009808
        %v1690 = vunpack.c.0.s8 %v1689
        %v1691 = vlaneseq
        %v1692 = vshrl.u32 %v1691, 7
        %v1693 = vsub.s32 %v1690, %v1692
        %v1694 = vrot.slane %v1686, %v1693
        %v1696 = vunpack.c.l.s4 1983009808
        %v1697 = vunpack.c.0.s8 %v1696
        %v1698 = vlaneseq
        %v1699 = vshrl.u32 %v1698, 7
        %v1700 = vsub.s32 %v1697, %v1699
        %v1701 = vrot.slane %v1687, %v1700
        %v1702 = vcombine.low %v1603, %v1615
        %v1703 = vcombine.high %v1603, %v1615
        %v1705 = vunpack.c.l.s4 1983009808
        %v1706 = vunpack.c.0.s8 %v1705
        %v1707 = vlaneseq
        %v1708 = vshrl.u32 %v1707, 7
        %v1709 = vsub.s32 %v1706, %v1708
        %v1710 = vrot.slane %v1702, %v1709
        %v1712 = vunpack.c.l.s4 1983009808
        %v1713 = vunpack.c.0.s8 %v1712
        %v1714 = vlaneseq
        %v1715 = vshrl.u32 %v1714, 7
        %v1716 = vsub.s32 %v1713, %v1715
        %v1717 = vrot.slane %v1703, %v1716
        %v1718 = vcombine.low %v1694, %v1710
        %v1719 = vcombine.high %v1694, %v1710
        %v1721 = vunpack.c.l.s4 1934713408
        %v1722 = vunpack.c.0.s8 %v1721
        %v1723 = vlaneseq
        %v1724 = vshrl.u32 %v1723, 7
        %v1725 = vsub.s32 %v1722, %v1724
        %v1726 = vrot.slane %v1718, %v1725
        %v1728 = vunpack.c.l.s4 1934713408
        %v1729 = vunpack.c.0.s8 %v1728
        %v1730 = vlaneseq
        %v1731 = vshrl.u32 %v1730, 7
        %v1732 = vsub.s32 %v1729, %v1731
        %v1733 = vrot.slane %v1719, %v1732
        %v1734 = vcombine.low %v1701, %v1717
        %v1735 = vcombine.high %v1701, %v1717
        %v1737 = vunpack.c.l.s4 1934713408
        %v1738 = vunpack.c.0.s8 %v1737
        %v1739 = vlaneseq
        %v1740 = vshrl.u32 %v1739, 7
        %v1741 = vsub.s32 %v1738, %v1740
        %v1742 = vrot.slane %v1734, %v1741
        %v1744 = vunpack.c.l.s4 1934713408
        %v1745 = vunpack.c.0.s8 %v1744
        %v1746 = vlaneseq
        %v1747 = vshrl.u32 %v1746, 7
        %v1748 = vsub.s32 %v1745, %v1747
        %v1749 = vrot.slane %v1735, %v1748
        %v1750 = vcombine.high %v1726, 0.0
        %v1751 = vcombine.high %v1733, 0.0
        %v1752 = vcombine.high %v1742, 0.0
        %v1753 = vcombine.high %v1749, 0.0
        %v1754 = vcombine.low %v1658, %v1665
        %v1756 = vunpack.c.l.s4 1983009808
        %v1757 = vunpack.c.0.s8 %v1756
        %v1758 = vlaneseq
        %v1759 = vshrl.u32 %v1758, 7
        %v1760 = vsub.s32 %v1757, %v1759
        %v1761 = vrot.slane %v1754, %v1760
        %v1762 = vcombine.low %v1682, %v1683
        %v1764 = vunpack.c.l.s4 1983009808
        %v1765 = vunpack.c.0.s8 %v1764
        %v1766 = vlaneseq
        %v1767 = vshrl.u32 %v1766, 7
        %v1768 = vsub.s32 %v1765, %v1767
        %v1769 = vrot.slane %v1762, %v1768
        %v1770 = vcombine.low %v1674, %v1681
        %v1772 = vunpack.c.l.s4 1983009808
        %v1773 = vunpack.c.0.s8 %v1772
        %v1774 = vlaneseq
        %v1775 = vshrl.u32 %v1774, 7
        %v1776 = vsub.s32 %v1773, %v1775
        %v1777 = vrot.slane %v1770, %v1776
        %v1778 = vcombine.low %v1684, %v1685
        %v1780 = vunpack.c.l.s4 1983009808
        %v1781 = vunpack.c.0.s8 %v1780
        %v1782 = vlaneseq
        %v1783 = vshrl.u32 %v1782, 7
        %v1784 = vsub.s32 %v1781, %v1783
        %v1785 = vrot.slane %v1778, %v1784
        %v1786 = vcombine.low %v1761, %v1769
        %v1787 = vcombine.high %v1761, %v1769
        %v1789 = vunpack.c.l.s4 1934713408
        %v1790 = vunpack.c.0.s8 %v1789
        %v1791 = vlaneseq
        %v1792 = vshrl.u32 %v1791, 7
        %v1793 = vsub.s32 %v1790, %v1792
        %v1794 = vrot.slane %v1786, %v1793
        %v1796 = vunpack.c.l.s4 1934713408
        %v1797 = vunpack.c.0.s8 %v1796
        %v1798 = vlaneseq
        %v1799 = vshrl.u32 %v1798, 7
        %v1800 = vsub.s32 %v1797, %v1799
        %v1801 = vrot.slane %v1787, %v1800
        %v1802 = vcombine.low %v1777, %v1785
        %v1803 = vcombine.high %v1777, %v1785
        %v1805 = vunpack.c.l.s4 1934713408
        %v1806 = vunpack.c.0.s8 %v1805
        %v1807 = vlaneseq
        %v1808 = vshrl.u32 %v1807, 7
        %v1809 = vsub.s32 %v1806, %v1808
        %v1810 = vrot.slane %v1802, %v1809
        %v1812 = vunpack.c.l.s4 1934713408
        %v1813 = vunpack.c.0.s8 %v1812
        %v1814 = vlaneseq
        %v1815 = vshrl.u32 %v1814, 7
        %v1816 = vsub.s32 %v1813, %v1815
        %v1817 = vrot.slane %v1803, %v1816
        %v1818 = vcombine.low %v1794, %v1810
        %v1819 = vcombine.high %v1794, %v1810
        %v1820 = vcombine.low %v1801, %v1817
        %v1821 = vcombine.high %v1801, %v1817
        %v1822 = vcombine.low %v1726, %v1733
        %v1824 = vunpack.c.l.s4 1983009808
        %v1825 = vunpack.c.0.s8 %v1824
        %v1826 = vlaneseq
        %v1827 = vshrl.u32 %v1826, 7
        %v1828 = vsub.s32 %v1825, %v1827
        %v1829 = vrot.slane %v1822, %v1828
        %v1830 = vcombine.low %v1750, %v1751
        %v1832 = vunpack.c.l.s4 1983009808
        %v1833 = vunpack.c.0.s8 %v1832
        %v1834 = vlaneseq
        %v1835 = vshrl.u32 %v1834, 7
        %v1836 = vsub.s32 %v1833, %v1835
        %v1837 = vrot.slane %v1830, %v1836
        %v1838 = vcombine.low %v1742, %v1749
        %v1840 = vunpack.c.l.s4 1983009808
        %v1841 = vunpack.c.0.s8 %v1840
        %v1842 = vlaneseq
        %v1843 = vshrl.u32 %v1842, 7
        %v1844 = vsub.s32 %v1841, %v1843
        %v1845 = vrot.slane %v1838, %v1844
        %v1846 = vcombine.low %v1752, %v1753
        %v1848 = vunpack.c.l.s4 1983009808
        %v1849 = vunpack.c.0.s8 %v1848
        %v1850 = vlaneseq
        %v1851 = vshrl.u32 %v1850, 7
        %v1852 = vsub.s32 %v1849, %v1851
        %v1853 = vrot.slane %v1846, %v1852
        %v1854 = vcombine.low %v1829, %v1837
        %v1855 = vcombine.high %v1829, %v1837
        %v1857 = vunpack.c.l.s4 1934713408
        %v1858 = vunpack.c.0.s8 %v1857
        %v1859 = vlaneseq
        %v1860 = vshrl.u32 %v1859, 7
        %v1861 = vsub.s32 %v1858, %v1860
        %v1862 = vrot.slane %v1854, %v1861
        %v1864 = vunpack.c.l.s4 1934713408
        %v1865 = vunpack.c.0.s8 %v1864
        %v1866 = vlaneseq
        %v1867 = vshrl.u32 %v1866, 7
        %v1868 = vsub.s32 %v1865, %v1867
        %v1869 = vrot.slane %v1855, %v1868
        %v1870 = vcombine.low %v1845, %v1853
        %v1871 = vcombine.high %v1845, %v1853
        %v1873 = vunpack.c.l.s4 1934713408
        %v1874 = vunpack.c.0.s8 %v1873
        %v1875 = vlaneseq
        %v1876 = vshrl.u32 %v1875, 7
        %v1877 = vsub.s32 %v1874, %v1876
        %v1878 = vrot.slane %v1870, %v1877
        %v1880 = vunpack.c.l.s4 1934713408
        %v1881 = vunpack.c.0.s8 %v1880
        %v1882 = vlaneseq
        %v1883 = vshrl.u32 %v1882, 7
        %v1884 = vsub.s32 %v1881, %v1883
        %v1885 = vrot.slane %v1871, %v1884
        %v1886 = vcombine.low %v1862, %v1878
        %v1887 = vcombine.high %v1862, %v1878
        %v1888 = vcombine.low %v1869, %v1885
        %v1889 = vcombine.high %v1869, %v1885
        %v1890 = vpack.c.bf16 %v1886, %v1818
        %v1891 = vpack.c.bf16 %v1887, %v1819
        %v1892 = vpack.c.bf16 %v1888, %v1820
        %v1893 = vpack.c.bf16 %v1889, %v1821
        %v1894 = vld [vmem:[%s638] sm:$0xff]
        %v1895 = vld [vmem:[%s638 + $0x8] sm:$0xff]
        %v1896 = vld [vmem:[%s638 + $0x10] sm:$0xff]
        %v1897 = vld [vmem:[%s638 + $0x18] sm:$0xff]
        %v1898 = vld [vmem:[%s638 + $0x20] sm:$0xff]
        %v1899 = vld [vmem:[%s638 + $0x28] sm:$0xff]
        %v1900 = vld [vmem:[%s638 + $0x30] sm:$0xff]
        %v1901 = vld [vmem:[%s638 + $0x38] sm:$0xff]
        %v1902 = vld [vmem:[%s638 + $0x40] sm:$0xff]
        %v1903 = vld [vmem:[%s638 + $0x48] sm:$0xff]
        %v1904 = vld [vmem:[%s638 + $0x50] sm:$0xff]
        %v1905 = vld [vmem:[%s638 + $0x58] sm:$0xff]
        %v1906 = vld [vmem:[%s638 + $0x60] sm:$0xff]
        %v1907 = vld [vmem:[%s638 + $0x68] sm:$0xff]
        %v1908 = vld [vmem:[%s638 + $0x70] sm:$0xff]
        %v1909 = vld [vmem:[%s638 + $0x78] sm:$0xff]
        %v1910 = vld [vmem:[%s638 + $0x80] sm:$0xff]
        %v1911 = vld [vmem:[%s638 + $0x88] sm:$0xff]
        %v1912 = vld [vmem:[%s638 + $0x90] sm:$0xff]
        %v1913 = vld [vmem:[%s638 + $0x98] sm:$0xff]
        %v1914 = vld [vmem:[%s638 + $0xa0] sm:$0xff]
        %v1915 = vld [vmem:[%s638 + $0xa8] sm:$0xff]
        %v1916 = vld [vmem:[%s638 + $0xb0] sm:$0xff]
        %v1917 = vld [vmem:[%s638 + $0xb8] sm:$0xff]
        %v1918 = vld [vmem:[%s638 + $0xc0] sm:$0xff]
        %v1919 = vld [vmem:[%s638 + $0xc8] sm:$0xff]
        %v1920 = vld [vmem:[%s638 + $0xd0] sm:$0xff]
        %v1921 = vld [vmem:[%s638 + $0xd8] sm:$0xff]
        %v1922 = vld [vmem:[%s638 + $0xe0] sm:$0xff]
        %v1923 = vld [vmem:[%s638 + $0xe8] sm:$0xff]
        %v1924 = vld [vmem:[%s638 + $0xf0] sm:$0xff]
        %v1925 = vld [vmem:[%s638 + $0xf8] sm:$0xff]
        %v1926 = vld [vmem:[#allocation13] sm:$0x1]
        %v1927 = vld [vmem:[#allocation15] sm:$0x1]
        %v1928 = vsel %vm1475, %v1894, 0.0
        %1929 = vadd.xlane.f32.xlu0 %v1928
        %v1930 = vpop.xlane.xlu0 %1929
        %v1931 = vsel %vm1475, %v1895, 0.0
        %1932 = vadd.xlane.f32.xlu0 %v1931
        %v1933 = vpop.xlane.xlu0 %1932
        %v1934 = vsel %vm1475, %v1896, 0.0
        %1935 = vadd.xlane.f32.xlu0 %v1934
        %v1936 = vpop.xlane.xlu0 %1935
        %v1937 = vsel %vm1475, %v1897, 0.0
        %1938 = vadd.xlane.f32.xlu0 %v1937
        %v1939 = vpop.xlane.xlu0 %1938
        %v1940 = vsel %vm1475, %v1898, 0.0
        %1941 = vadd.xlane.f32.xlu0 %v1940
        %v1942 = vpop.xlane.xlu0 %1941
        %v1943 = vsel %vm1475, %v1899, 0.0
        %1944 = vadd.xlane.f32.xlu0 %v1943
        %v1945 = vpop.xlane.xlu0 %1944
        %v1946 = vsel %vm1475, %v1900, 0.0
        %1947 = vadd.xlane.f32.xlu0 %v1946
        %v1948 = vpop.xlane.xlu0 %1947
        %v1949 = vsel %vm1475, %v1901, 0.0
        %1950 = vadd.xlane.f32.xlu0 %v1949
        %v1951 = vpop.xlane.xlu0 %1950
        %v1952 = vsel %vm1475, %v1902, 0.0
        %1953 = vadd.xlane.f32.xlu0 %v1952
        %v1954 = vpop.xlane.xlu0 %1953
        %v1955 = vsel %vm1475, %v1903, 0.0
        %1956 = vadd.xlane.f32.xlu0 %v1955
        %v1957 = vpop.xlane.xlu0 %1956
        %v1958 = vsel %vm1475, %v1904, 0.0
        %1959 = vadd.xlane.f32.xlu0 %v1958
        %v1960 = vpop.xlane.xlu0 %1959
        %v1961 = vsel %vm1475, %v1905, 0.0
        %1962 = vadd.xlane.f32.xlu0 %v1961
        %v1963 = vpop.xlane.xlu0 %1962
        %v1964 = vsel %vm1475, %v1906, 0.0
        %1965 = vadd.xlane.f32.xlu0 %v1964
        %v1966 = vpop.xlane.xlu0 %1965
        %v1967 = vsel %vm1475, %v1907, 0.0
        %1968 = vadd.xlane.f32.xlu0 %v1967
        %v1969 = vpop.xlane.xlu0 %1968
        %v1970 = vsel %vm1475, %v1908, 0.0
        %1971 = vadd.xlane.f32.xlu0 %v1970
        %v1972 = vpop.xlane.xlu0 %1971
        %v1973 = vsel %vm1475, %v1909, 0.0
        %1974 = vadd.xlane.f32.xlu0 %v1973
        %v1975 = vpop.xlane.xlu0 %1974
        %v1976 = vsel %vm1475, %v1910, 0.0
        %1977 = vadd.xlane.f32.xlu0 %v1976
        %v1978 = vpop.xlane.xlu0 %1977
        %v1979 = vsel %vm1475, %v1911, 0.0
        %1980 = vadd.xlane.f32.xlu0 %v1979
        %v1981 = vpop.xlane.xlu0 %1980
        %v1982 = vsel %vm1475, %v1912, 0.0
        %1983 = vadd.xlane.f32.xlu0 %v1982
        %v1984 = vpop.xlane.xlu0 %1983
        %v1985 = vsel %vm1475, %v1913, 0.0
        %1986 = vadd.xlane.f32.xlu0 %v1985
        %v1987 = vpop.xlane.xlu0 %1986
        %v1988 = vsel %vm1475, %v1914, 0.0
        %1989 = vadd.xlane.f32.xlu0 %v1988
        %v1990 = vpop.xlane.xlu0 %1989
        %v1991 = vsel %vm1475, %v1915, 0.0
        %1992 = vadd.xlane.f32.xlu0 %v1991
        %v1993 = vpop.xlane.xlu0 %1992
        %v1994 = vsel %vm1475, %v1916, 0.0
        %1995 = vadd.xlane.f32.xlu0 %v1994
        %v1996 = vpop.xlane.xlu0 %1995
        %v1997 = vsel %vm1475, %v1917, 0.0
        %1998 = vadd.xlane.f32.xlu0 %v1997
        %v1999 = vpop.xlane.xlu0 %1998
        %v2000 = vsel %vm1475, %v1918, 0.0
        %2001 = vadd.xlane.f32.xlu0 %v2000
        %v2002 = vpop.xlane.xlu0 %2001
        %v2003 = vsel %vm1475, %v1919, 0.0
        %2004 = vadd.xlane.f32.xlu0 %v2003
        %v2005 = vpop.xlane.xlu0 %2004
        %v2006 = vsel %vm1475, %v1920, 0.0
        %2007 = vadd.xlane.f32.xlu0 %v2006
        %v2008 = vpop.xlane.xlu0 %2007
        %v2009 = vsel %vm1475, %v1921, 0.0
        %2010 = vadd.xlane.f32.xlu0 %v2009
        %v2011 = vpop.xlane.xlu0 %2010
        %v2012 = vsel %vm1475, %v1922, 0.0
        %2013 = vadd.xlane.f32.xlu0 %v2012
        %v2014 = vpop.xlane.xlu0 %2013
        %v2015 = vsel %vm1475, %v1923, 0.0
        %2016 = vadd.xlane.f32.xlu0 %v2015
        %v2017 = vpop.xlane.xlu0 %2016
        %v2018 = vsel %vm1475, %v1924, 0.0
        %2019 = vadd.xlane.f32.xlu0 %v2018
        %v2020 = vpop.xlane.xlu0 %2019
        %v2021 = vsel %vm1475, %v1925, 0.0
        %2022 = vadd.xlane.f32.xlu0 %v2021
        %v2023 = vpop.xlane.xlu0 %2022
        %v2024 = vmul.f32 %v1930, %v1482
        %v2025 = vmul.f32 %v1933, %v1482
        %v2026 = vmul.f32 %v1936, %v1482
        %v2027 = vmul.f32 %v1939, %v1482
        %v2028 = vmul.f32 %v1942, %v1482
        %v2029 = vmul.f32 %v1945, %v1482
        %v2030 = vmul.f32 %v1948, %v1482
        %v2031 = vmul.f32 %v1951, %v1482
        %v2032 = vmul.f32 %v1954, %v1482
        %v2033 = vmul.f32 %v1957, %v1482
        %v2034 = vmul.f32 %v1960, %v1482
        %v2035 = vmul.f32 %v1963, %v1482
        %v2036 = vmul.f32 %v1966, %v1482
        %v2037 = vmul.f32 %v1969, %v1482
        %v2038 = vmul.f32 %v1972, %v1482
        %v2039 = vmul.f32 %v1975, %v1482
        %v2040 = vmul.f32 %v1978, %v1482
        %v2041 = vmul.f32 %v1981, %v1482
        %v2042 = vmul.f32 %v1984, %v1482
        %v2043 = vmul.f32 %v1987, %v1482
        %v2044 = vmul.f32 %v1990, %v1482
        %v2045 = vmul.f32 %v1993, %v1482
        %v2046 = vmul.f32 %v1996, %v1482
        %v2047 = vmul.f32 %v1999, %v1482
        %v2048 = vmul.f32 %v2002, %v1482
        %v2049 = vmul.f32 %v2005, %v1482
        %v2050 = vmul.f32 %v2008, %v1482
        %v2051 = vmul.f32 %v2011, %v1482
        %v2052 = vmul.f32 %v2014, %v1482
        %v2053 = vmul.f32 %v2017, %v1482
        %v2054 = vmul.f32 %v2020, %v1482
        %v2055 = vmul.f32 %v2023, %v1482
        %v2056 = vsub.f32 %v1894, %v2024
        %v2057 = vsub.f32 %v1895, %v2025
        %v2058 = vsub.f32 %v1896, %v2026
        %v2059 = vsub.f32 %v1897, %v2027
        %v2060 = vsub.f32 %v1898, %v2028
        %v2061 = vsub.f32 %v1899, %v2029
        %v2062 = vsub.f32 %v1900, %v2030
        %v2063 = vsub.f32 %v1901, %v2031
        %v2064 = vsub.f32 %v1902, %v2032
        %v2065 = vsub.f32 %v1903, %v2033
        %v2066 = vsub.f32 %v1904, %v2034
        %v2067 = vsub.f32 %v1905, %v2035
        %v2068 = vsub.f32 %v1906, %v2036
        %v2069 = vsub.f32 %v1907, %v2037
        %v2070 = vsub.f32 %v1908, %v2038
        %v2071 = vsub.f32 %v1909, %v2039
        %v2072 = vsub.f32 %v1910, %v2040
        %v2073 = vsub.f32 %v1911, %v2041
        %v2074 = vsub.f32 %v1912, %v2042
        %v2075 = vsub.f32 %v1913, %v2043
        %v2076 = vsub.f32 %v1914, %v2044
        %v2077 = vsub.f32 %v1915, %v2045
        %v2078 = vsub.f32 %v1916, %v2046
        %v2079 = vsub.f32 %v1917, %v2047
        %v2080 = vsub.f32 %v1918, %v2048
        %v2081 = vsub.f32 %v1919, %v2049
        %v2082 = vsub.f32 %v1920, %v2050
        %v2083 = vsub.f32 %v1921, %v2051
        %v2084 = vsub.f32 %v1922, %v2052
        %v2085 = vsub.f32 %v1923, %v2053
        %v2086 = vsub.f32 %v1924, %v2054
        %v2087 = vsub.f32 %v1925, %v2055
        %v2088 = vmul.f32 %v2056, %v2056
        %v2089 = vmul.f32 %v2057, %v2057
        %v2090 = vmul.f32 %v2058, %v2058
        %v2091 = vmul.f32 %v2059, %v2059
        %v2092 = vmul.f32 %v2060, %v2060
        %v2093 = vmul.f32 %v2061, %v2061
        %v2094 = vmul.f32 %v2062, %v2062
        %v2095 = vmul.f32 %v2063, %v2063
        %v2096 = vmul.f32 %v2064, %v2064
        %v2097 = vmul.f32 %v2065, %v2065
        %v2098 = vmul.f32 %v2066, %v2066
        %v2099 = vmul.f32 %v2067, %v2067
        %v2100 = vmul.f32 %v2068, %v2068
        %v2101 = vmul.f32 %v2069, %v2069
        %v2102 = vmul.f32 %v2070, %v2070
        %v2103 = vmul.f32 %v2071, %v2071
        %v2104 = vmul.f32 %v2072, %v2072
        %v2105 = vmul.f32 %v2073, %v2073
        %v2106 = vmul.f32 %v2074, %v2074
        %v2107 = vmul.f32 %v2075, %v2075
        %v2108 = vmul.f32 %v2076, %v2076
        %v2109 = vmul.f32 %v2077, %v2077
        %v2110 = vmul.f32 %v2078, %v2078
        %v2111 = vmul.f32 %v2079, %v2079
        %v2112 = vmul.f32 %v2080, %v2080
        %v2113 = vmul.f32 %v2081, %v2081
        %v2114 = vmul.f32 %v2082, %v2082
        %v2115 = vmul.f32 %v2083, %v2083
        %v2116 = vmul.f32 %v2084, %v2084
        %v2117 = vmul.f32 %v2085, %v2085
        %v2118 = vmul.f32 %v2086, %v2086
        %v2119 = vmul.f32 %v2087, %v2087
        %v2120 = vsel %vm1475, %v2088, 0.0
        %2121 = vadd.xlane.f32.xlu0 %v2120
        %v2122 = vpop.xlane.xlu0 %2121
        %v2123 = vsel %vm1475, %v2089, 0.0
        %2124 = vadd.xlane.f32.xlu0 %v2123
        %v2125 = vpop.xlane.xlu0 %2124
        %v2126 = vsel %vm1475, %v2090, 0.0
        %2127 = vadd.xlane.f32.xlu0 %v2126
        %v2128 = vpop.xlane.xlu0 %2127
        %v2129 = vsel %vm1475, %v2091, 0.0
        %2130 = vadd.xlane.f32.xlu0 %v2129
        %v2131 = vpop.xlane.xlu0 %2130
        %v2132 = vsel %vm1475, %v2092, 0.0
        %2133 = vadd.xlane.f32.xlu0 %v2132
        %v2134 = vpop.xlane.xlu0 %2133
        %v2135 = vsel %vm1475, %v2093, 0.0
        %2136 = vadd.xlane.f32.xlu0 %v2135
        %v2137 = vpop.xlane.xlu0 %2136
        %v2138 = vsel %vm1475, %v2094, 0.0
        %2139 = vadd.xlane.f32.xlu0 %v2138
        %v2140 = vpop.xlane.xlu0 %2139
        %v2141 = vsel %vm1475, %v2095, 0.0
        %2142 = vadd.xlane.f32.xlu0 %v2141
        %v2143 = vpop.xlane.xlu0 %2142
        %v2144 = vsel %vm1475, %v2096, 0.0
        %2145 = vadd.xlane.f32.xlu0 %v2144
        %v2146 = vpop.xlane.xlu0 %2145
        %v2147 = vsel %vm1475, %v2097, 0.0
        %2148 = vadd.xlane.f32.xlu0 %v2147
        %v2149 = vpop.xlane.xlu0 %2148
        %v2150 = vsel %vm1475, %v2098, 0.0
        %2151 = vadd.xlane.f32.xlu0 %v2150
        %v2152 = vpop.xlane.xlu0 %2151
        %v2153 = vsel %vm1475, %v2099, 0.0
        %2154 = vadd.xlane.f32.xlu0 %v2153
        %v2155 = vpop.xlane.xlu0 %2154
        %v2156 = vsel %vm1475, %v2100, 0.0
        %2157 = vadd.xlane.f32.xlu0 %v2156
        %v2158 = vpop.xlane.xlu0 %2157
        %v2159 = vsel %vm1475, %v2101, 0.0
        %2160 = vadd.xlane.f32.xlu0 %v2159
        %v2161 = vpop.xlane.xlu0 %2160
        %v2162 = vsel %vm1475, %v2102, 0.0
        %2163 = vadd.xlane.f32.xlu0 %v2162
        %v2164 = vpop.xlane.xlu0 %2163
        %v2165 = vsel %vm1475, %v2103, 0.0
        %2166 = vadd.xlane.f32.xlu0 %v2165
        %v2167 = vpop.xlane.xlu0 %2166
        %v2168 = vsel %vm1475, %v2104, 0.0
        %2169 = vadd.xlane.f32.xlu0 %v2168
        %v2170 = vpop.xlane.xlu0 %2169
        %v2171 = vsel %vm1475, %v2105, 0.0
        %2172 = vadd.xlane.f32.xlu0 %v2171
        %v2173 = vpop.xlane.xlu0 %2172
        %v2174 = vsel %vm1475, %v2106, 0.0
        %2175 = vadd.xlane.f32.xlu0 %v2174
        %v2176 = vpop.xlane.xlu0 %2175
        %v2177 = vsel %vm1475, %v2107, 0.0
        %2178 = vadd.xlane.f32.xlu0 %v2177
        %v2179 = vpop.xlane.xlu0 %2178
        %v2180 = vsel %vm1475, %v2108, 0.0
        %2181 = vadd.xlane.f32.xlu0 %v2180
        %v2182 = vpop.xlane.xlu0 %2181
        %v2183 = vsel %vm1475, %v2109, 0.0
        %2184 = vadd.xlane.f32.xlu0 %v2183
        %v2185 = vpop.xlane.xlu0 %2184
        %v2186 = vsel %vm1475, %v2110, 0.0
        %2187 = vadd.xlane.f32.xlu0 %v2186
        %v2188 = vpop.xlane.xlu0 %2187
        %v2189 = vsel %vm1475, %v2111, 0.0
        %2190 = vadd.xlane.f32.xlu0 %v2189
        %v2191 = vpop.xlane.xlu0 %2190
        %v2192 = vsel %vm1475, %v2112, 0.0
        %2193 = vadd.xlane.f32.xlu0 %v2192
        %v2194 = vpop.xlane.xlu0 %2193
        %v2195 = vsel %vm1475, %v2113, 0.0
        %2196 = vadd.xlane.f32.xlu0 %v2195
        %v2197 = vpop.xlane.xlu0 %2196
        %v2198 = vsel %vm1475, %v2114, 0.0
        %2199 = vadd.xlane.f32.xlu0 %v2198
        %v2200 = vpop.xlane.xlu0 %2199
        %v2201 = vsel %vm1475, %v2115, 0.0
        %2202 = vadd.xlane.f32.xlu0 %v2201
        %v2203 = vpop.xlane.xlu0 %2202
        %v2204 = vsel %vm1475, %v2116, 0.0
        %2205 = vadd.xlane.f32.xlu0 %v2204
        %v2206 = vpop.xlane.xlu0 %2205
        %v2207 = vsel %vm1475, %v2117, 0.0
        %2208 = vadd.xlane.f32.xlu0 %v2207
        %v2209 = vpop.xlane.xlu0 %2208
        %v2210 = vsel %vm1475, %v2118, 0.0
        %2211 = vadd.xlane.f32.xlu0 %v2210
        %v2212 = vpop.xlane.xlu0 %2211
        %v2213 = vsel %vm1475, %v2119, 0.0
        %2214 = vadd.xlane.f32.xlu0 %v2213
        %v2215 = vpop.xlane.xlu0 %2214
        %v2216 = vmul.f32 %v2122, %v1482
        %v2217 = vmul.f32 %v2125, %v1482
        %v2218 = vmul.f32 %v2128, %v1482
        %v2219 = vmul.f32 %v2131, %v1482
        %v2220 = vmul.f32 %v2134, %v1482
        %v2221 = vmul.f32 %v2137, %v1482
        %v2222 = vmul.f32 %v2140, %v1482
        %v2223 = vmul.f32 %v2143, %v1482
        %v2224 = vmul.f32 %v2146, %v1482
        %v2225 = vmul.f32 %v2149, %v1482
        %v2226 = vmul.f32 %v2152, %v1482
        %v2227 = vmul.f32 %v2155, %v1482
        %v2228 = vmul.f32 %v2158, %v1482
        %v2229 = vmul.f32 %v2161, %v1482
        %v2230 = vmul.f32 %v2164, %v1482
        %v2231 = vmul.f32 %v2167, %v1482
        %v2232 = vmul.f32 %v2170, %v1482
        %v2233 = vmul.f32 %v2173, %v1482
        %v2234 = vmul.f32 %v2176, %v1482
        %v2235 = vmul.f32 %v2179, %v1482
        %v2236 = vmul.f32 %v2182, %v1482
        %v2237 = vmul.f32 %v2185, %v1482
        %v2238 = vmul.f32 %v2188, %v1482
        %v2239 = vmul.f32 %v2191, %v1482
        %v2240 = vmul.f32 %v2194, %v1482
        %v2241 = vmul.f32 %v2197, %v1482
        %v2242 = vmul.f32 %v2200, %v1482
        %v2243 = vmul.f32 %v2203, %v1482
        %v2244 = vmul.f32 %v2206, %v1482
        %v2245 = vmul.f32 %v2209, %v1482
        %v2246 = vmul.f32 %v2212, %v1482
        %v2247 = vmul.f32 %v2215, %v1482
        %v2248 = vadd.f32 %v2216, 1e-05
        %v2249 = vadd.f32 %v2217, 1e-05
        %v2250 = vadd.f32 %v2218, 1e-05
        %v2251 = vadd.f32 %v2219, 1e-05
        %v2252 = vadd.f32 %v2220, 1e-05
        %v2253 = vadd.f32 %v2221, 1e-05
        %v2254 = vadd.f32 %v2222, 1e-05
        %v2255 = vadd.f32 %v2223, 1e-05
        %v2256 = vadd.f32 %v2224, 1e-05
        %v2257 = vadd.f32 %v2225, 1e-05
        %v2258 = vadd.f32 %v2226, 1e-05
        %v2259 = vadd.f32 %v2227, 1e-05
        %v2260 = vadd.f32 %v2228, 1e-05
        %v2261 = vadd.f32 %v2229, 1e-05
        %v2262 = vadd.f32 %v2230, 1e-05
        %v2263 = vadd.f32 %v2231, 1e-05
        %v2264 = vadd.f32 %v2232, 1e-05
        %v2265 = vadd.f32 %v2233, 1e-05
        %v2266 = vadd.f32 %v2234, 1e-05
        %v2267 = vadd.f32 %v2235, 1e-05
        %v2268 = vadd.f32 %v2236, 1e-05
        %v2269 = vadd.f32 %v2237, 1e-05
        %v2270 = vadd.f32 %v2238, 1e-05
        %v2271 = vadd.f32 %v2239, 1e-05
        %v2272 = vadd.f32 %v2240, 1e-05
        %v2273 = vadd.f32 %v2241, 1e-05
        %v2274 = vadd.f32 %v2242, 1e-05
        %v2275 = vadd.f32 %v2243, 1e-05
        %v2276 = vadd.f32 %v2244, 1e-05
        %v2277 = vadd.f32 %v2245, 1e-05
        %v2278 = vadd.f32 %v2246, 1e-05
        %v2279 = vadd.f32 %v2247, 1e-05
        %v2280 = vrsqrt.pop %v2248
        %v2281 = vrsqrt.pop %v2249
        %v2282 = vrsqrt.pop %v2250
        %v2283 = vrsqrt.pop %v2251
        %v2284 = vrsqrt.pop %v2252
        %v2285 = vrsqrt.pop %v2253
        %v2286 = vrsqrt.pop %v2254
        %v2287 = vrsqrt.pop %v2255
        %v2288 = vrsqrt.pop %v2256
        %v2289 = vrsqrt.pop %v2257
        %v2290 = vrsqrt.pop %v2258
        %v2291 = vrsqrt.pop %v2259
        %v2292 = vrsqrt.pop %v2260
        %v2293 = vrsqrt.pop %v2261
        %v2294 = vrsqrt.pop %v2262
        %v2295 = vrsqrt.pop %v2263
        %v2296 = vrsqrt.pop %v2264
        %v2297 = vrsqrt.pop %v2265
        %v2298 = vrsqrt.pop %v2266
        %v2299 = vrsqrt.pop %v2267
        %v2300 = vrsqrt.pop %v2268
        %v2301 = vrsqrt.pop %v2269
        %v2302 = vrsqrt.pop %v2270
        %v2303 = vrsqrt.pop %v2271
        %v2304 = vrsqrt.pop %v2272
        %v2305 = vrsqrt.pop %v2273
        %v2306 = vrsqrt.pop %v2274
        %v2307 = vrsqrt.pop %v2275
        %v2308 = vrsqrt.pop %v2276
        %v2309 = vrsqrt.pop %v2277
        %v2310 = vrsqrt.pop %v2278
        %v2311 = vrsqrt.pop %v2279
        %v2312 = vmul.f32 %v2056, %v2280
        %v2313 = vmul.f32 %v2057, %v2281
        %v2314 = vmul.f32 %v2058, %v2282
        %v2315 = vmul.f32 %v2059, %v2283
        %v2316 = vmul.f32 %v2060, %v2284
        %v2317 = vmul.f32 %v2061, %v2285
        %v2318 = vmul.f32 %v2062, %v2286
        %v2319 = vmul.f32 %v2063, %v2287
        %v2320 = vmul.f32 %v2064, %v2288
        %v2321 = vmul.f32 %v2065, %v2289
        %v2322 = vmul.f32 %v2066, %v2290
        %v2323 = vmul.f32 %v2067, %v2291
        %v2324 = vmul.f32 %v2068, %v2292
        %v2325 = vmul.f32 %v2069, %v2293
        %v2326 = vmul.f32 %v2070, %v2294
        %v2327 = vmul.f32 %v2071, %v2295
        %v2328 = vmul.f32 %v2072, %v2296
        %v2329 = vmul.f32 %v2073, %v2297
        %v2330 = vmul.f32 %v2074, %v2298
        %v2331 = vmul.f32 %v2075, %v2299
        %v2332 = vmul.f32 %v2076, %v2300
        %v2333 = vmul.f32 %v2077, %v2301
        %v2334 = vmul.f32 %v2078, %v2302
        %v2335 = vmul.f32 %v2079, %v2303
        %v2336 = vmul.f32 %v2080, %v2304
        %v2337 = vmul.f32 %v2081, %v2305
        %v2338 = vmul.f32 %v2082, %v2306
        %v2339 = vmul.f32 %v2083, %v2307
        %v2340 = vmul.f32 %v2084, %v2308
        %v2341 = vmul.f32 %v2085, %v2309
        %v2342 = vmul.f32 %v2086, %v2310
        %v2343 = vmul.f32 %v2087, %v2311
        %v2345 = vlaneseq
        %v2346 = vshrl.u32 %v2345, 7
        %v2347 = vsub.s32 0, %v2346
        %v2348 = vrot.slane %v1926, %v2347
        %v2350 = vmul.f32 %v2312, %v2348
        %v2351 = vmul.f32 %v2313, %v2348
        %v2352 = vmul.f32 %v2314, %v2348
        %v2353 = vmul.f32 %v2315, %v2348
        %v2354 = vmul.f32 %v2316, %v2348
        %v2355 = vmul.f32 %v2317, %v2348
        %v2356 = vmul.f32 %v2318, %v2348
        %v2357 = vmul.f32 %v2319, %v2348
        %v2358 = vmul.f32 %v2320, %v2348
        %v2359 = vmul.f32 %v2321, %v2348
        %v2360 = vmul.f32 %v2322, %v2348
        %v2361 = vmul.f32 %v2323, %v2348
        %v2362 = vmul.f32 %v2324, %v2348
        %v2363 = vmul.f32 %v2325, %v2348
        %v2364 = vmul.f32 %v2326, %v2348
        %v2365 = vmul.f32 %v2327, %v2348
        %v2366 = vmul.f32 %v2328, %v2348
        %v2367 = vmul.f32 %v2329, %v2348
        %v2368 = vmul.f32 %v2330, %v2348
        %v2369 = vmul.f32 %v2331, %v2348
        %v2370 = vmul.f32 %v2332, %v2348
        %v2371 = vmul.f32 %v2333, %v2348
        %v2372 = vmul.f32 %v2334, %v2348
        %v2373 = vmul.f32 %v2335, %v2348
        %v2374 = vmul.f32 %v2336, %v2348
        %v2375 = vmul.f32 %v2337, %v2348
        %v2376 = vmul.f32 %v2338, %v2348
        %v2377 = vmul.f32 %v2339, %v2348
        %v2378 = vmul.f32 %v2340, %v2348
        %v2379 = vmul.f32 %v2341, %v2348
        %v2380 = vmul.f32 %v2342, %v2348
        %v2381 = vmul.f32 %v2343, %v2348
        %v2383 = vlaneseq
        %v2384 = vshrl.u32 %v2383, 7
        %v2385 = vsub.s32 0, %v2384
        %v2386 = vrot.slane %v1927, %v2385
        %v2388 = vadd.f32 %v2350, %v2386
        %v2389 = vadd.f32 %v2351, %v2386
        %v2390 = vadd.f32 %v2352, %v2386
        %v2391 = vadd.f32 %v2353, %v2386
        %v2392 = vadd.f32 %v2354, %v2386
        %v2393 = vadd.f32 %v2355, %v2386
        %v2394 = vadd.f32 %v2356, %v2386
        %v2395 = vadd.f32 %v2357, %v2386
        %v2396 = vadd.f32 %v2358, %v2386
        %v2397 = vadd.f32 %v2359, %v2386
        %v2398 = vadd.f32 %v2360, %v2386
        %v2399 = vadd.f32 %v2361, %v2386
        %v2400 = vadd.f32 %v2362, %v2386
        %v2401 = vadd.f32 %v2363, %v2386
        %v2402 = vadd.f32 %v2364, %v2386
        %v2403 = vadd.f32 %v2365, %v2386
        %v2404 = vadd.f32 %v2366, %v2386
        %v2405 = vadd.f32 %v2367, %v2386
        %v2406 = vadd.f32 %v2368, %v2386
        %v2407 = vadd.f32 %v2369, %v2386
        %v2408 = vadd.f32 %v2370, %v2386
        %v2409 = vadd.f32 %v2371, %v2386
        %v2410 = vadd.f32 %v2372, %v2386
        %v2411 = vadd.f32 %v2373, %v2386
        %v2412 = vadd.f32 %v2374, %v2386
        %v2413 = vadd.f32 %v2375, %v2386
        %v2414 = vadd.f32 %v2376, %v2386
        %v2415 = vadd.f32 %v2377, %v2386
        %v2416 = vadd.f32 %v2378, %v2386
        %v2417 = vadd.f32 %v2379, %v2386
        %v2418 = vadd.f32 %v2380, %v2386
        %v2419 = vadd.f32 %v2381, %v2386
        %v2420 = vpack.c.bf16 %v2389, %v2388
        %v2421 = vpack.c.bf16 %v2391, %v2390
        %v2422 = vpack.c.bf16 %v2393, %v2392
        %v2423 = vpack.c.bf16 %v2395, %v2394
        %v2424 = vpack.c.bf16 %v2397, %v2396
        %v2425 = vpack.c.bf16 %v2399, %v2398
        %v2426 = vpack.c.bf16 %v2401, %v2400
        %v2427 = vpack.c.bf16 %v2403, %v2402
        %v2428 = vpack.c.bf16 %v2405, %v2404
        %v2429 = vpack.c.bf16 %v2407, %v2406
        %v2430 = vpack.c.bf16 %v2409, %v2408
        %v2431 = vpack.c.bf16 %v2411, %v2410
        %v2432 = vpack.c.bf16 %v2413, %v2412
        %v2433 = vpack.c.bf16 %v2415, %v2414
        %v2434 = vpack.c.bf16 %v2417, %v2416
        %v2435 = vpack.c.bf16 %v2419, %v2418
        %v2436 = vld [vmem:[#allocation16] sm:$0x3]
        %v2438 = vsel %vm1475, %v2436, 0
        %v2441 = vsel %vm1475, %v2420, 0
        %v2444 = vsel %vm1475, %v2421, 0
        %v2447 = vsel %vm1475, %v2422, 0
        %v2450 = vsel %vm1475, %v2423, 0
        %v2453 = vsel %vm1475, %v2424, 0
        %v2456 = vsel %vm1475, %v2425, 0
        %v2459 = vsel %vm1475, %v2426, 0
        %v2462 = vsel %vm1475, %v2427, 0
        %v2465 = vsel %vm1475, %v2428, 0
        %v2468 = vsel %vm1475, %v2429, 0
        %v2471 = vsel %vm1475, %v2430, 0
        %v2474 = vsel %vm1475, %v2431, 0
        %v2477 = vsel %vm1475, %v2432, 0
        %v2480 = vsel %vm1475, %v2433, 0
        %v2483 = vsel %vm1475, %v2434, 0
        %v2486 = vsel %vm1475, %v2435, 0
        %2488 = vmatprep.subr.bf16.mxu0 0
        %2489 = vmatpush1.bf16.xpose.msra.mxu0 %v2441
        %2490 = vmatprep.subr.bf16.mxu0 0
        %2491 = vmatpush1.bf16.xpose.msra.mxu0 %v2444
        %2492 = vmatprep.subr.bf16.mxu0 0
        %2493 = vmatpush1.bf16.xpose.msra.mxu0 %v2447
        %2494 = vmatprep.subr.bf16.mxu0 0
        %2495 = vmatpush1.bf16.xpose.msra.mxu0 %v2450
        %2496 = vmatprep.subr.bf16.mxu0 0
        %2497 = vmatpush1.bf16.xpose.msra.mxu0 %v2453
        %2498 = vmatprep.subr.bf16.mxu0 0
        %2499 = vmatpush1.bf16.xpose.msra.mxu0 %v2456
        %2500 = vmatprep.subr.bf16.mxu0 0
        %2501 = vmatpush1.bf16.xpose.msra.mxu0 %v2459
        %2502 = vmatprep.subr.bf16.mxu0 0
        %2503 = vmatpush1.bf16.xpose.msra.mxu0 %v2462
        %2504 = vmatprep.subr.bf16.mxu0 0
        %2505 = vmatpush1.bf16.xpose.msra.mxu0 %v2465
        %2506 = vmatprep.subr.bf16.mxu0 0
        %2507 = vmatpush1.bf16.xpose.msra.mxu0 %v2468
        %2508 = vmatprep.subr.bf16.mxu0 0
        %2509 = vmatpush1.bf16.xpose.msra.mxu0 %v2471
        %2510 = vmatprep.subr.bf16.mxu0 0
        %2511 = vmatpush1.bf16.xpose.msra.mxu0 %v2474
        %2512 = vmatprep.subr.bf16.mxu0 0
        %2513 = vmatpush1.bf16.xpose.msra.mxu0 %v2477
        %2514 = vmatprep.subr.bf16.mxu0 0
        %2515 = vmatpush1.bf16.xpose.msra.mxu0 %v2480
        %2516 = vmatprep.subr.bf16.mxu0 0
        %2517 = vmatpush1.bf16.xpose.msra.mxu0 %v2483
        %2518 = vmatprep.subr.bf16.mxu0 0
        %2519 = vmatpush1.bf16.xpose.msra.mxu0 %v2486
        %2520 = vmatprep.mubr.bf16.mxu0 0
        %2521 = vmatmul.mubr.bf16.gmra.mrb[0].mxu0 %v2438
        %v2522 = vpop.f32.mrb[0].mxu0
        %v2523 = vadd.f32 0.0, %v2522
        %v2524 = vpop.f32.mrb[0].mxu0
        %v2525 = vadd.f32 0.0, %v2524
        %v2526 = vpop.f32.mrb[0].mxu0
        %v2527 = vpop.f32.mrb[0].mxu0
        %2528 = vdwg.mxu0
        %2530 = vrot.lane.b32.xlu0 %v2523, 112
        %v2531 = vpop.permute.xlu0 %2530
        %2533 = vrot.lane.b32.xlu0 %v2523, 96
        %v2534 = vpop.permute.xlu0 %2533
        %2536 = vrot.lane.b32.xlu0 %v2523, 80
        %v2537 = vpop.permute.xlu0 %2536
        %2539 = vrot.lane.b32.xlu0 %v2523, 64
        %v2540 = vpop.permute.xlu0 %2539
        %2542 = vrot.lane.b32.xlu0 %v2523, 48
        %v2543 = vpop.permute.xlu0 %2542
        %2545 = vrot.lane.b32.xlu0 %v2523, 32
        %v2546 = vpop.permute.xlu0 %2545
        %2548 = vrot.lane.b32.xlu0 %v2523, 16
        %v2549 = vpop.permute.xlu0 %2548
        %2552 = vrot.lane.b32.xlu0 %v2525, 112
        %v2553 = vpop.permute.xlu0 %2552
        %2555 = vrot.lane.b32.xlu0 %v2525, 96
        %v2556 = vpop.permute.xlu0 %2555
        %2558 = vrot.lane.b32.xlu0 %v2525, 80
        %v2559 = vpop.permute.xlu0 %2558
        %2561 = vrot.lane.b32.xlu0 %v2525, 64
        %v2562 = vpop.permute.xlu0 %2561
        %2564 = vrot.lane.b32.xlu0 %v2525, 48
        %v2565 = vpop.permute.xlu0 %2564
        %2567 = vrot.lane.b32.xlu0 %v2525, 32
        %v2568 = vpop.permute.xlu0 %2567
        %2570 = vrot.lane.b32.xlu0 %v2525, 16
        %v2571 = vpop.permute.xlu0 %2570
        %v2573 = vcombine.low %v2523, %v2534
        %v2575 = vunpack.c.l.s4 1983009808
        %v2576 = vunpack.c.0.s8 %v2575
        %v2577 = vlaneseq
        %v2578 = vshrl.u32 %v2577, 7
        %v2579 = vsub.s32 %v2576, %v2578
        %v2580 = vrot.slane %v2573, %v2579
        %v2581 = vcombine.low %v2531, %v2537
        %v2583 = vunpack.c.l.s4 1983009808
        %v2584 = vunpack.c.0.s8 %v2583
        %v2585 = vlaneseq
        %v2586 = vshrl.u32 %v2585, 7
        %v2587 = vsub.s32 %v2584, %v2586
        %v2588 = vrot.slane %v2581, %v2587
        %v2589 = vcombine.low %v2540, %v2546
        %v2591 = vunpack.c.l.s4 1983009808
        %v2592 = vunpack.c.0.s8 %v2591
        %v2593 = vlaneseq
        %v2594 = vshrl.u32 %v2593, 7
        %v2595 = vsub.s32 %v2592, %v2594
        %v2596 = vrot.slane %v2589, %v2595
        %v2597 = vcombine.low %v2543, %v2549
        %v2599 = vunpack.c.l.s4 1983009808
        %v2600 = vunpack.c.0.s8 %v2599
        %v2601 = vlaneseq
        %v2602 = vshrl.u32 %v2601, 7
        %v2603 = vsub.s32 %v2600, %v2602
        %v2604 = vrot.slane %v2597, %v2603
        %v2605 = vcombine.low %v2580, %v2588
        %v2606 = vcombine.high %v2580, %v2588
        %v2608 = vunpack.c.l.s4 1934713408
        %v2609 = vunpack.c.0.s8 %v2608
        %v2610 = vlaneseq
        %v2611 = vshrl.u32 %v2610, 7
        %v2612 = vsub.s32 %v2609, %v2611
        %v2613 = vrot.slane %v2605, %v2612
        %v2615 = vunpack.c.l.s4 1934713408
        %v2616 = vunpack.c.0.s8 %v2615
        %v2617 = vlaneseq
        %v2618 = vshrl.u32 %v2617, 7
        %v2619 = vsub.s32 %v2616, %v2618
        %v2620 = vrot.slane %v2606, %v2619
        %v2621 = vcombine.low %v2596, %v2604
        %v2622 = vcombine.high %v2596, %v2604
        %v2624 = vunpack.c.l.s4 1934713408
        %v2625 = vunpack.c.0.s8 %v2624
        %v2626 = vlaneseq
        %v2627 = vshrl.u32 %v2626, 7
        %v2628 = vsub.s32 %v2625, %v2627
        %v2629 = vrot.slane %v2621, %v2628
        %v2631 = vunpack.c.l.s4 1934713408
        %v2632 = vunpack.c.0.s8 %v2631
        %v2633 = vlaneseq
        %v2634 = vshrl.u32 %v2633, 7
        %v2635 = vsub.s32 %v2632, %v2634
        %v2636 = vrot.slane %v2622, %v2635
        %v2637 = vcombine.low %v2613, %v2629
        %v2638 = vcombine.high %v2613, %v2629
        %v2639 = vcombine.low %v2620, %v2636
        %v2640 = vcombine.high %v2620, %v2636
        %v2641 = vcombine.low %v2525, %v2556
        %v2643 = vunpack.c.l.s4 1983009808
        %v2644 = vunpack.c.0.s8 %v2643
        %v2645 = vlaneseq
        %v2646 = vshrl.u32 %v2645, 7
        %v2647 = vsub.s32 %v2644, %v2646
        %v2648 = vrot.slane %v2641, %v2647
        %v2649 = vcombine.low %v2553, %v2559
        %v2651 = vunpack.c.l.s4 1983009808
        %v2652 = vunpack.c.0.s8 %v2651
        %v2653 = vlaneseq
        %v2654 = vshrl.u32 %v2653, 7
        %v2655 = vsub.s32 %v2652, %v2654
        %v2656 = vrot.slane %v2649, %v2655
        %v2657 = vcombine.low %v2562, %v2568
        %v2659 = vunpack.c.l.s4 1983009808
        %v2660 = vunpack.c.0.s8 %v2659
        %v2661 = vlaneseq
        %v2662 = vshrl.u32 %v2661, 7
        %v2663 = vsub.s32 %v2660, %v2662
        %v2664 = vrot.slane %v2657, %v2663
        %v2665 = vcombine.low %v2565, %v2571
        %v2667 = vunpack.c.l.s4 1983009808
        %v2668 = vunpack.c.0.s8 %v2667
        %v2669 = vlaneseq
        %v2670 = vshrl.u32 %v2669, 7
        %v2671 = vsub.s32 %v2668, %v2670
        %v2672 = vrot.slane %v2665, %v2671
        %v2673 = vcombine.low %v2648, %v2656
        %v2674 = vcombine.high %v2648, %v2656
        %v2676 = vunpack.c.l.s4 1934713408
        %v2677 = vunpack.c.0.s8 %v2676
        %v2678 = vlaneseq
        %v2679 = vshrl.u32 %v2678, 7
        %v2680 = vsub.s32 %v2677, %v2679
        %v2681 = vrot.slane %v2673, %v2680
        %v2683 = vunpack.c.l.s4 1934713408
        %v2684 = vunpack.c.0.s8 %v2683
        %v2685 = vlaneseq
        %v2686 = vshrl.u32 %v2685, 7
        %v2687 = vsub.s32 %v2684, %v2686
        %v2688 = vrot.slane %v2674, %v2687
        %v2689 = vcombine.low %v2664, %v2672
        %v2690 = vcombine.high %v2664, %v2672
        %v2692 = vunpack.c.l.s4 1934713408
        %v2693 = vunpack.c.0.s8 %v2692
        %v2694 = vlaneseq
        %v2695 = vshrl.u32 %v2694, 7
        %v2696 = vsub.s32 %v2693, %v2695
        %v2697 = vrot.slane %v2689, %v2696
        %v2699 = vunpack.c.l.s4 1934713408
        %v2700 = vunpack.c.0.s8 %v2699
        %v2701 = vlaneseq
        %v2702 = vshrl.u32 %v2701, 7
        %v2703 = vsub.s32 %v2700, %v2702
        %v2704 = vrot.slane %v2690, %v2703
        %v2705 = vcombine.low %v2681, %v2697
        %v2706 = vcombine.high %v2681, %v2697
        %v2707 = vcombine.low %v2688, %v2704
        %v2708 = vcombine.high %v2688, %v2704
        %v2709 = vld [vmem:[%s734] sm:$0x1]
        %vm2710 = vcmp.gt.f32.partialorder %v2709, 0.5
        %v2711 = vsel %vm2710, 0.0, -1e+30
        %v2713 = vlaneseq
        %v2714 = vshrl.u32 %v2713, 7
        %v2715 = vsub.s32 0, %v2714
        %v2716 = vrot.slane %v2711, %v2715
        %v2718 = vadd.f32 %v2637, %v2716
        %v2719 = vadd.f32 %v2705, %v2716
        %v2720 = vadd.f32 %v2638, %v2716
        %v2721 = vadd.f32 %v2706, %v2716
        %v2722 = vadd.f32 %v2639, %v2716
        %v2723 = vadd.f32 %v2707, %v2716
        %v2724 = vadd.f32 %v2640, %v2716
        %v2725 = vadd.f32 %v2708, %v2716
        %v2726 = vld [vmem:[#allocation2] sm:$0xff]
        %v2727 = vld [vmem:[#allocation2 + $0x8] sm:$0xff]
        %v2728 = vld [vmem:[#allocation2 + $0x10] sm:$0xff]
        %v2729 = vld [vmem:[#allocation2 + $0x18] sm:$0xff]
        %vm2730 = vcmask 130048
        %v2732 = vsel %vm2730, %v1890, 0
        %v2735 = vsel %vm2730, %v2726, 0
        %2737 = vmatprep.subr.bf16.mxu0 0
        %2738 = vmatpush1.bf16.xpose.msra.mxu0 %v2735
        %2739 = vmatprep.subr.bf16.mxu0 0
        %2740 = vmatpush1.bf16.xpose.msra.mxu0 0
        %2741 = vmatprep.subr.bf16.mxu0 0
        %2742 = vmatpush1.bf16.xpose.msra.mxu0 0
        %2743 = vmatprep.subr.bf16.mxu0 0
        %2744 = vmatpush1.bf16.xpose.msra.mxu0 0
        %2745 = vmatprep.subr.bf16.mxu0 0
        %2746 = vmatpush1.bf16.xpose.msra.mxu0 0
        %2747 = vmatprep.subr.bf16.mxu0 0
        %2748 = vmatpush1.bf16.xpose.msra.mxu0 0
        %2749 = vmatprep.subr.bf16.mxu0 0
        %2750 = vmatpush1.bf16.xpose.msra.mxu0 0
        %2751 = vmatprep.subr.bf16.mxu0 0
        %2752 = vmatpush1.bf16.xpose.msra.mxu0 0
        %2753 = vmatprep.subr.bf16.mxu0 0
        %2754 = vmatpush1.bf16.xpose.msra.mxu0 0
        %2755 = vmatprep.subr.bf16.mxu0 0
        %2756 = vmatpush1.bf16.xpose.msra.mxu0 0
        %2757 = vmatprep.subr.bf16.mxu0 0
        %2758 = vmatpush1.bf16.xpose.msra.mxu0 0
        %2759 = vmatprep.subr.bf16.mxu0 0
        %2760 = vmatpush1.bf16.xpose.msra.mxu0 0
        %2761 = vmatprep.subr.bf16.mxu0 0
        %2762 = vmatpush1.bf16.xpose.msra.mxu0 0
        %2763 = vmatprep.subr.bf16.mxu0 0
        %2764 = vmatpush1.bf16.xpose.msra.mxu0 0
        %2765 = vmatprep.subr.bf16.mxu0 0
        %2766 = vmatpush1.bf16.xpose.msra.mxu0 0
        %2767 = vmatprep.subr.bf16.mxu0 0
        %2768 = vmatpush1.bf16.xpose.msra.mxu0 0
        %2769 = vmatprep.mubr.bf16.mxu0 0
        %2770 = vmatmul.mubr.bf16.gmra.mrb[0].mxu0 %v2732
        %v2771 = vpop.f32.mrb[0].mxu0
        %v2772 = vadd.f32 %v2718, %v2771
        %v2773 = vpop.f32.mrb[0].mxu0
        %v2774 = vpop.f32.mrb[0].mxu0
        %v2775 = vadd.f32 %v2719, %v2774
        %v2776 = vpop.f32.mrb[0].mxu0
        %2777 = vdwg.mxu0
        %v2779 = vsel %vm2730, %v1891, 0
        %v2782 = vsel %vm2730, %v2727, 0
        %2784 = vmatprep.subr.bf16.mxu0 0
        %2785 = vmatpush1.bf16.xpose.msra.mxu0 %v2782
        %2786 = vmatprep.subr.bf16.mxu0 0
        %2787 = vmatpush1.bf16.xpose.msra.mxu0 0
        %2788 = vmatprep.subr.bf16.mxu0 0
        %2789 = vmatpush1.bf16.xpose.msra.mxu0 0
        %2790 = vmatprep.subr.bf16.mxu0 0
        %2791 = vmatpush1.bf16.xpose.msra.mxu0 0
        %2792 = vmatprep.subr.bf16.mxu0 0
        %2793 = vmatpush1.bf16.xpose.msra.mxu0 0
        %2794 = vmatprep.subr.bf16.mxu0 0
        %2795 = vmatpush1.bf16.xpose.msra.mxu0 0
        %2796 = vmatprep.subr.bf16.mxu0 0
        %2797 = vmatpush1.bf16.xpose.msra.mxu0 0
        %2798 = vmatprep.subr.bf16.mxu0 0
        %2799 = vmatpush1.bf16.xpose.msra.mxu0 0
        %2800 = vmatprep.subr.bf16.mxu0 0
        %2801 = vmatpush1.bf16.xpose.msra.mxu0 0
        %2802 = vmatprep.subr.bf16.mxu0 0
        %2803 = vmatpush1.bf16.xpose.msra.mxu0 0
        %2804 = vmatprep.subr.bf16.mxu0 0
        %2805 = vmatpush1.bf16.xpose.msra.mxu0 0
        %2806 = vmatprep.subr.bf16.mxu0 0
        %2807 = vmatpush1.bf16.xpose.msra.mxu0 0
        %2808 = vmatprep.subr.bf16.mxu0 0
        %2809 = vmatpush1.bf16.xpose.msra.mxu0 0
        %2810 = vmatprep.subr.bf16.mxu0 0
        %2811 = vmatpush1.bf16.xpose.msra.mxu0 0
        %2812 = vmatprep.subr.bf16.mxu0 0
        %2813 = vmatpush1.bf16.xpose.msra.mxu0 0
        %2814 = vmatprep.subr.bf16.mxu0 0
        %2815 = vmatpush1.bf16.xpose.msra.mxu0 0
        %2816 = vmatprep.mubr.bf16.mxu0 0
        %2817 = vmatmul.mubr.bf16.gmra.mrb[0].mxu0 %v2779
        %v2818 = vpop.f32.mrb[0].mxu0
        %v2819 = vadd.f32 %v2720, %v2818
        %v2820 = vpop.f32.mrb[0].mxu0
        %v2821 = vpop.f32.mrb[0].mxu0
        %v2822 = vadd.f32 %v2721, %v2821
        %v2823 = vpop.f32.mrb[0].mxu0
        %2824 = vdwg.mxu0
        %v2826 = vsel %vm2730, %v1892, 0
        %v2829 = vsel %vm2730, %v2728, 0
        %2831 = vmatprep.subr.bf16.mxu0 0
        %2832 = vmatpush1.bf16.xpose.msra.mxu0 %v2829
        %2833 = vmatprep.subr.bf16.mxu0 0
        %2834 = vmatpush1.bf16.xpose.msra.mxu0 0
        %2835 = vmatprep.subr.bf16.mxu0 0
        %2836 = vmatpush1.bf16.xpose.msra.mxu0 0
        %2837 = vmatprep.subr.bf16.mxu0 0
        %2838 = vmatpush1.bf16.xpose.msra.mxu0 0
        %2839 = vmatprep.subr.bf16.mxu0 0
        %2840 = vmatpush1.bf16.xpose.msra.mxu0 0
        %2841 = vmatprep.subr.bf16.mxu0 0
        %2842 = vmatpush1.bf16.xpose.msra.mxu0 0
        %2843 = vmatprep.subr.bf16.mxu0 0
        %2844 = vmatpush1.bf16.xpose.msra.mxu0 0
        %2845 = vmatprep.subr.bf16.mxu0 0
        %2846 = vmatpush1.bf16.xpose.msra.mxu0 0
        %2847 = vmatprep.subr.bf16.mxu0 0
        %2848 = vmatpush1.bf16.xpose.msra.mxu0 0
        %2849 = vmatprep.subr.bf16.mxu0 0
        %2850 = vmatpush1.bf16.xpose.msra.mxu0 0
        %2851 = vmatprep.subr.bf16.mxu0 0
        %2852 = vmatpush1.bf16.xpose.msra.mxu0 0
        %2853 = vmatprep.subr.bf16.mxu0 0
        %2854 = vmatpush1.bf16.xpose.msra.mxu0 0
        %2855 = vmatprep.subr.bf16.mxu0 0
        %2856 = vmatpush1.bf16.xpose.msra.mxu0 0
        %2857 = vmatprep.subr.bf16.mxu0 0
        %2858 = vmatpush1.bf16.xpose.msra.mxu0 0
        %2859 = vmatprep.subr.bf16.mxu0 0
        %2860 = vmatpush1.bf16.xpose.msra.mxu0 0
        %2861 = vmatprep.subr.bf16.mxu0 0
        %2862 = vmatpush1.bf16.xpose.msra.mxu0 0
        %2863 = vmatprep.mubr.bf16.mxu0 0
        %2864 = vmatmul.mubr.bf16.gmra.mrb[0].mxu0 %v2826
        %v2865 = vpop.f32.mrb[0].mxu0
        %v2866 = vadd.f32 %v2722, %v2865
        %v2867 = vpop.f32.mrb[0].mxu0
        %v2868 = vpop.f32.mrb[0].mxu0
        %v2869 = vadd.f32 %v2723, %v2868
        %v2870 = vpop.f32.mrb[0].mxu0
        %2871 = vdwg.mxu0
        %v2873 = vsel %vm2730, %v1893, 0
        %v2876 = vsel %vm2730, %v2729, 0
        %2878 = vmatprep.subr.bf16.mxu0 0
        %2879 = vmatpush1.bf16.xpose.msra.mxu0 %v2876
        %2880 = vmatprep.subr.bf16.mxu0 0
        %2881 = vmatpush1.bf16.xpose.msra.mxu0 0
        %2882 = vmatprep.subr.bf16.mxu0 0
        %2883 = vmatpush1.bf16.xpose.msra.mxu0 0
        %2884 = vmatprep.subr.bf16.mxu0 0
        %2885 = vmatpush1.bf16.xpose.msra.mxu0 0
        %2886 = vmatprep.subr.bf16.mxu0 0
        %2887 = vmatpush1.bf16.xpose.msra.mxu0 0
        %2888 = vmatprep.subr.bf16.mxu0 0
        %2889 = vmatpush1.bf16.xpose.msra.mxu0 0
        %2890 = vmatprep.subr.bf16.mxu0 0
        %2891 = vmatpush1.bf16.xpose.msra.mxu0 0
        %2892 = vmatprep.subr.bf16.mxu0 0
        %2893 = vmatpush1.bf16.xpose.msra.mxu0 0
        %2894 = vmatprep.subr.bf16.mxu0 0
        %2895 = vmatpush1.bf16.xpose.msra.mxu0 0
        %2896 = vmatprep.subr.bf16.mxu0 0
        %2897 = vmatpush1.bf16.xpose.msra.mxu0 0
        %2898 = vmatprep.subr.bf16.mxu0 0
        %2899 = vmatpush1.bf16.xpose.msra.mxu0 0
        %2900 = vmatprep.subr.bf16.mxu0 0
        %2901 = vmatpush1.bf16.xpose.msra.mxu0 0
        %2902 = vmatprep.subr.bf16.mxu0 0
        %2903 = vmatpush1.bf16.xpose.msra.mxu0 0
        %2904 = vmatprep.subr.bf16.mxu0 0
        %2905 = vmatpush1.bf16.xpose.msra.mxu0 0
        %2906 = vmatprep.subr.bf16.mxu0 0
        %2907 = vmatpush1.bf16.xpose.msra.mxu0 0
        %2908 = vmatprep.subr.bf16.mxu0 0
        %2909 = vmatpush1.bf16.xpose.msra.mxu0 0
        %2910 = vmatprep.mubr.bf16.mxu0 0
        %2911 = vmatmul.mubr.bf16.gmra.mrb[0].mxu0 %v2873
        %v2912 = vpop.f32.mrb[0].mxu0
        %v2913 = vadd.f32 %v2724, %v2912
        %v2914 = vpop.f32.mrb[0].mxu0
        %v2915 = vpop.f32.mrb[0].mxu0
        %v2916 = vadd.f32 %v2725, %v2915
        %v2917 = vpop.f32.mrb[0].mxu0
        %2918 = vdwg.mxu0
        %v2919 = vsel %vm2730, %v2772, -inf
        %2920 = vmax.xlane.f32.xlu0 %v2919
        %v2921 = vpop.xlane.xlu0 %2920
        %v2922 = vsel %vm2730, %v2775, -inf
        %2923 = vmax.xlane.f32.xlu0 %v2922
        %v2924 = vpop.xlane.xlu0 %2923
        %v2925 = vsel %vm2730, %v2819, -inf
        %2926 = vmax.xlane.f32.xlu0 %v2925
        %v2927 = vpop.xlane.xlu0 %2926
        %v2928 = vsel %vm2730, %v2822, -inf
        %2929 = vmax.xlane.f32.xlu0 %v2928
        %v2930 = vpop.xlane.xlu0 %2929
        %v2931 = vsel %vm2730, %v2866, -inf
        %2932 = vmax.xlane.f32.xlu0 %v2931
        %v2933 = vpop.xlane.xlu0 %2932
        %v2934 = vsel %vm2730, %v2869, -inf
        %2935 = vmax.xlane.f32.xlu0 %v2934
        %v2936 = vpop.xlane.xlu0 %2935
        %v2937 = vsel %vm2730, %v2913, -inf
        %2938 = vmax.xlane.f32.xlu0 %v2937
        %v2939 = vpop.xlane.xlu0 %2938
        %v2940 = vsel %vm2730, %v2916, -inf
        %2941 = vmax.xlane.f32.xlu0 %v2940
        %v2942 = vpop.xlane.xlu0 %2941
        %v2943 = vsub.f32 %v2772, %v2921
        %v2944 = vsub.f32 %v2775, %v2924
        %v2945 = vsub.f32 %v2819, %v2927
        %v2946 = vsub.f32 %v2822, %v2930
        %v2947 = vsub.f32 %v2866, %v2933
        %v2948 = vsub.f32 %v2869, %v2936
        %v2949 = vsub.f32 %v2913, %v2939
        %v2950 = vsub.f32 %v2916, %v2942
        %v2951 = vmul.f32 %v2943, 1.442695
        %v2952 = vpow.pop %v2951
        %v2953 = vmul.f32 %v2944, 1.442695
        %v2954 = vpow.pop %v2953
        %v2955 = vmul.f32 %v2945, 1.442695
        %v2956 = vpow.pop %v2955
        %v2957 = vmul.f32 %v2946, 1.442695
        %v2958 = vpow.pop %v2957
        %v2959 = vmul.f32 %v2947, 1.442695
        %v2960 = vpow.pop %v2959
        %v2961 = vmul.f32 %v2948, 1.442695
        %v2962 = vpow.pop %v2961
        %v2963 = vmul.f32 %v2949, 1.442695
        %v2964 = vpow.pop %v2963
        %v2965 = vmul.f32 %v2950, 1.442695
        %v2966 = vpow.pop %v2965
        %v2967 = vsel %vm2730, %v2952, 0.0
        %2968 = vadd.xlane.f32.xlu0 %v2967
        %v2969 = vpop.xlane.xlu0 %2968
        %v2970 = vsel %vm2730, %v2954, 0.0
        %2971 = vadd.xlane.f32.xlu0 %v2970
        %v2972 = vpop.xlane.xlu0 %2971
        %v2973 = vsel %vm2730, %v2956, 0.0
        %2974 = vadd.xlane.f32.xlu0 %v2973
        %v2975 = vpop.xlane.xlu0 %2974
        %v2976 = vsel %vm2730, %v2958, 0.0
        %2977 = vadd.xlane.f32.xlu0 %v2976
        %v2978 = vpop.xlane.xlu0 %2977
        %v2979 = vsel %vm2730, %v2960, 0.0
        %2980 = vadd.xlane.f32.xlu0 %v2979
        %v2981 = vpop.xlane.xlu0 %2980
        %v2982 = vsel %vm2730, %v2962, 0.0
        %2983 = vadd.xlane.f32.xlu0 %v2982
        %v2984 = vpop.xlane.xlu0 %2983
        %v2985 = vsel %vm2730, %v2964, 0.0
        %2986 = vadd.xlane.f32.xlu0 %v2985
        %v2987 = vpop.xlane.xlu0 %2986
        %v2988 = vsel %vm2730, %v2966, 0.0
        %2989 = vadd.xlane.f32.xlu0 %v2988
        %v2990 = vpop.xlane.xlu0 %2989
        %v2991 = vrcp.pop %v2969
        %v2992 = vrcp.pop %v2972
        %v2993 = vrcp.pop %v2975
        %v2994 = vrcp.pop %v2978
        %v2995 = vrcp.pop %v2981
        %v2996 = vrcp.pop %v2984
        %v2997 = vrcp.pop %v2987
        %v2998 = vrcp.pop %v2990
        %v2999 = vmul.f32 %v2952, %v2991
        %v3000 = vmul.f32 %v2954, %v2992
        %v3001 = vmul.f32 %v2956, %v2993
        %v3002 = vmul.f32 %v2958, %v2994
        %v3003 = vmul.f32 %v2960, %v2995
        %v3004 = vmul.f32 %v2962, %v2996
        %v3005 = vmul.f32 %v2964, %v2997
        %v3006 = vmul.f32 %v2966, %v2998
        %v3007 = vpack.c.bf16 %v3000, %v2999
        %v3008 = vpack.c.bf16 %v3002, %v3001
        %v3009 = vpack.c.bf16 %v3004, %v3003
        %v3010 = vpack.c.bf16 %v3006, %v3005
        %v3011 = vld [vmem:[#allocation3] sm:$0xff]
        %v3012 = vld [vmem:[#allocation3 + $0x8] sm:$0xff]
        %v3013 = vld [vmem:[#allocation3 + $0x10] sm:$0xff]
        %v3014 = vld [vmem:[#allocation3 + $0x18] sm:$0xff]
        %v3016 = vsel %vm2730, %v3007, 0
        %3018 = vmatprep.subr.bf16.mxu0 0
        %3019 = vmatpush1.bf16.msra.mxu0 %v3011
        %3020 = vmatprep.subr.bf16.mxu0 0
        %3021 = vmatpush1.bf16.msra.mxu0 0
        %3022 = vmatprep.subr.bf16.mxu0 0
        %3023 = vmatpush1.bf16.msra.mxu0 0
        %3024 = vmatprep.subr.bf16.mxu0 0
        %3025 = vmatpush1.bf16.msra.mxu0 0
        %3026 = vmatprep.subr.bf16.mxu0 0
        %3027 = vmatpush1.bf16.msra.mxu0 0
        %3028 = vmatprep.subr.bf16.mxu0 0
        %3029 = vmatpush1.bf16.msra.mxu0 0
        %3030 = vmatprep.subr.bf16.mxu0 0
        %3031 = vmatpush1.bf16.msra.mxu0 0
        %3032 = vmatprep.subr.bf16.mxu0 0
        %3033 = vmatpush1.bf16.msra.mxu0 0
        %3034 = vmatprep.subr.bf16.mxu0 0
        %3035 = vmatpush1.bf16.msra.mxu0 0
        %3036 = vmatprep.subr.bf16.mxu0 0
        %3037 = vmatpush1.bf16.msra.mxu0 0
        %3038 = vmatprep.subr.bf16.mxu0 0
        %3039 = vmatpush1.bf16.msra.mxu0 0
        %3040 = vmatprep.subr.bf16.mxu0 0
        %3041 = vmatpush1.bf16.msra.mxu0 0
        %3042 = vmatprep.subr.bf16.mxu0 0
        %3043 = vmatpush1.bf16.msra.mxu0 0
        %3044 = vmatprep.subr.bf16.mxu0 0
        %3045 = vmatpush1.bf16.msra.mxu0 0
        %3046 = vmatprep.subr.bf16.mxu0 0
        %3047 = vmatpush1.bf16.msra.mxu0 0
        %3048 = vmatprep.subr.bf16.mxu0 0
        %3049 = vmatpush1.bf16.msra.mxu0 0
        %3050 = vmatprep.mubr.bf16.mxu0 0
        %3051 = vmatmul.mubr.bf16.gmra.mrb[0].mxu0 %v3016
        %v3052 = vpop.f32.mrb[0].mxu0
        %v3053 = vadd.f32 0.0, %v3052
        %v3054 = vpop.f32.mrb[0].mxu0
        %v3055 = vpop.f32.mrb[0].mxu0
        %v3056 = vadd.f32 0.0, %v3055
        %v3057 = vpop.f32.mrb[0].mxu0
        %3058 = vdwg.mxu0
        %v3060 = vsel %vm2730, %v3008, 0
        %3062 = vmatprep.subr.bf16.mxu0 0
        %3063 = vmatpush1.bf16.msra.mxu0 %v3012
        %3064 = vmatprep.subr.bf16.mxu0 0
        %3065 = vmatpush1.bf16.msra.mxu0 0
        %3066 = vmatprep.subr.bf16.mxu0 0
        %3067 = vmatpush1.bf16.msra.mxu0 0
        %3068 = vmatprep.subr.bf16.mxu0 0
        %3069 = vmatpush1.bf16.msra.mxu0 0
        %3070 = vmatprep.subr.bf16.mxu0 0
        %3071 = vmatpush1.bf16.msra.mxu0 0
        %3072 = vmatprep.subr.bf16.mxu0 0
        %3073 = vmatpush1.bf16.msra.mxu0 0
        %3074 = vmatprep.subr.bf16.mxu0 0
        %3075 = vmatpush1.bf16.msra.mxu0 0
        %3076 = vmatprep.subr.bf16.mxu0 0
        %3077 = vmatpush1.bf16.msra.mxu0 0
        %3078 = vmatprep.subr.bf16.mxu0 0
        %3079 = vmatpush1.bf16.msra.mxu0 0
        %3080 = vmatprep.subr.bf16.mxu0 0
        %3081 = vmatpush1.bf16.msra.mxu0 0
        %3082 = vmatprep.subr.bf16.mxu0 0
        %3083 = vmatpush1.bf16.msra.mxu0 0
        %3084 = vmatprep.subr.bf16.mxu0 0
        %3085 = vmatpush1.bf16.msra.mxu0 0
        %3086 = vmatprep.subr.bf16.mxu0 0
        %3087 = vmatpush1.bf16.msra.mxu0 0
        %3088 = vmatprep.subr.bf16.mxu0 0
        %3089 = vmatpush1.bf16.msra.mxu0 0
        %3090 = vmatprep.subr.bf16.mxu0 0
        %3091 = vmatpush1.bf16.msra.mxu0 0
        %3092 = vmatprep.subr.bf16.mxu0 0
        %3093 = vmatpush1.bf16.msra.mxu0 0
        %3094 = vmatprep.mubr.bf16.mxu0 0
        %3095 = vmatmul.mubr.bf16.gmra.mrb[0].mxu0 %v3060
        %v3096 = vpop.f32.mrb[0].mxu0
        %v3097 = vadd.f32 0.0, %v3096
        %v3098 = vpop.f32.mrb[0].mxu0
        %v3099 = vpop.f32.mrb[0].mxu0
        %v3100 = vadd.f32 0.0, %v3099
        %v3101 = vpop.f32.mrb[0].mxu0
        %3102 = vdwg.mxu0
        %v3104 = vsel %vm2730, %v3009, 0
        %3106 = vmatprep.subr.bf16.mxu0 0
        %3107 = vmatpush1.bf16.msra.mxu0 %v3013
        %3108 = vmatprep.subr.bf16.mxu0 0
        %3109 = vmatpush1.bf16.msra.mxu0 0
        %3110 = vmatprep.subr.bf16.mxu0 0
        %3111 = vmatpush1.bf16.msra.mxu0 0
        %3112 = vmatprep.subr.bf16.mxu0 0
        %3113 = vmatpush1.bf16.msra.mxu0 0
        %3114 = vmatprep.subr.bf16.mxu0 0
        %3115 = vmatpush1.bf16.msra.mxu0 0
        %3116 = vmatprep.subr.bf16.mxu0 0
        %3117 = vmatpush1.bf16.msra.mxu0 0
        %3118 = vmatprep.subr.bf16.mxu0 0
        %3119 = vmatpush1.bf16.msra.mxu0 0
        %3120 = vmatprep.subr.bf16.mxu0 0
        %3121 = vmatpush1.bf16.msra.mxu0 0
        %3122 = vmatprep.subr.bf16.mxu0 0
        %3123 = vmatpush1.bf16.msra.mxu0 0
        %3124 = vmatprep.subr.bf16.mxu0 0
        %3125 = vmatpush1.bf16.msra.mxu0 0
        %3126 = vmatprep.subr.bf16.mxu0 0
        %3127 = vmatpush1.bf16.msra.mxu0 0
        %3128 = vmatprep.subr.bf16.mxu0 0
        %3129 = vmatpush1.bf16.msra.mxu0 0
        %3130 = vmatprep.subr.bf16.mxu0 0
        %3131 = vmatpush1.bf16.msra.mxu0 0
        %3132 = vmatprep.subr.bf16.mxu0 0
        %3133 = vmatpush1.bf16.msra.mxu0 0
        %3134 = vmatprep.subr.bf16.mxu0 0
        %3135 = vmatpush1.bf16.msra.mxu0 0
        %3136 = vmatprep.subr.bf16.mxu0 0
        %3137 = vmatpush1.bf16.msra.mxu0 0
        %3138 = vmatprep.mubr.bf16.mxu0 0
        %3139 = vmatmul.mubr.bf16.gmra.mrb[0].mxu0 %v3104
        %v3140 = vpop.f32.mrb[0].mxu0
        %v3141 = vadd.f32 0.0, %v3140
        %v3142 = vpop.f32.mrb[0].mxu0
        %v3143 = vpop.f32.mrb[0].mxu0
        %v3144 = vadd.f32 0.0, %v3143
        %v3145 = vpop.f32.mrb[0].mxu0
        %3146 = vdwg.mxu0
        %v3148 = vsel %vm2730, %v3010, 0
        %3150 = vmatprep.subr.bf16.mxu0 0
        %3151 = vmatpush1.bf16.msra.mxu0 %v3014
        %3152 = vmatprep.subr.bf16.mxu0 0
        %3153 = vmatpush1.bf16.msra.mxu0 0
        %3154 = vmatprep.subr.bf16.mxu0 0
        %3155 = vmatpush1.bf16.msra.mxu0 0
        %3156 = vmatprep.subr.bf16.mxu0 0
        %3157 = vmatpush1.bf16.msra.mxu0 0
        %3158 = vmatprep.subr.bf16.mxu0 0
        %3159 = vmatpush1.bf16.msra.mxu0 0
        %3160 = vmatprep.subr.bf16.mxu0 0
        %3161 = vmatpush1.bf16.msra.mxu0 0
        %3162 = vmatprep.subr.bf16.mxu0 0
        %3163 = vmatpush1.bf16.msra.mxu0 0
        %3164 = vmatprep.subr.bf16.mxu0 0
        %3165 = vmatpush1.bf16.msra.mxu0 0
        %3166 = vmatprep.subr.bf16.mxu0 0
        %3167 = vmatpush1.bf16.msra.mxu0 0
        %3168 = vmatprep.subr.bf16.mxu0 0
        %3169 = vmatpush1.bf16.msra.mxu0 0
        %3170 = vmatprep.subr.bf16.mxu0 0
        %3171 = vmatpush1.bf16.msra.mxu0 0
        %3172 = vmatprep.subr.bf16.mxu0 0
        %3173 = vmatpush1.bf16.msra.mxu0 0
        %3174 = vmatprep.subr.bf16.mxu0 0
        %3175 = vmatpush1.bf16.msra.mxu0 0
        %3176 = vmatprep.subr.bf16.mxu0 0
        %3177 = vmatpush1.bf16.msra.mxu0 0
        %3178 = vmatprep.subr.bf16.mxu0 0
        %3179 = vmatpush1.bf16.msra.mxu0 0
        %3180 = vmatprep.subr.bf16.mxu0 0
        %3181 = vmatpush1.bf16.msra.mxu0 0
        %3182 = vmatprep.mubr.bf16.mxu0 0
        %3183 = vmatmul.mubr.bf16.gmra.mrb[0].mxu0 %v3148
        %v3184 = vpop.f32.mrb[0].mxu0
        %v3185 = vadd.f32 0.0, %v3184
        %v3186 = vpop.f32.mrb[0].mxu0
        %v3187 = vpop.f32.mrb[0].mxu0
        %v3188 = vadd.f32 0.0, %v3187
        %v3189 = vpop.f32.mrb[0].mxu0
        %3190 = vdwg.mxu0
        %v3191 = vcombine.low %v3053, %v3141
        %v3192 = vcombine.high %v3053, %v3141
        %v3194 = vunpack.c.l.s4 1983009808
        %v3195 = vunpack.c.0.s8 %v3194
        %v3196 = vlaneseq
        %v3197 = vshrl.u32 %v3196, 7
        %v3198 = vsub.s32 %v3195, %v3197
        %v3199 = vrot.slane %v3191, %v3198
        %v3201 = vunpack.c.l.s4 1983009808
        %v3202 = vunpack.c.0.s8 %v3201
        %v3203 = vlaneseq
        %v3204 = vshrl.u32 %v3203, 7
        %v3205 = vsub.s32 %v3202, %v3204
        %v3206 = vrot.slane %v3192, %v3205
        %v3207 = vcombine.low %v3097, %v3185
        %v3208 = vcombine.high %v3097, %v3185
        %v3210 = vunpack.c.l.s4 1983009808
        %v3211 = vunpack.c.0.s8 %v3210
        %v3212 = vlaneseq
        %v3213 = vshrl.u32 %v3212, 7
        %v3214 = vsub.s32 %v3211, %v3213
        %v3215 = vrot.slane %v3207, %v3214
        %v3217 = vunpack.c.l.s4 1983009808
        %v3218 = vunpack.c.0.s8 %v3217
        %v3219 = vlaneseq
        %v3220 = vshrl.u32 %v3219, 7
        %v3221 = vsub.s32 %v3218, %v3220
        %v3222 = vrot.slane %v3208, %v3221
        %v3223 = vcombine.low %v3199, %v3215
        %v3224 = vcombine.high %v3199, %v3215
        %v3226 = vunpack.c.l.s4 1934713408
        %v3227 = vunpack.c.0.s8 %v3226
        %v3228 = vlaneseq
        %v3229 = vshrl.u32 %v3228, 7
        %v3230 = vsub.s32 %v3227, %v3229
        %v3231 = vrot.slane %v3223, %v3230
        %v3233 = vunpack.c.l.s4 1934713408
        %v3234 = vunpack.c.0.s8 %v3233
        %v3235 = vlaneseq
        %v3236 = vshrl.u32 %v3235, 7
        %v3237 = vsub.s32 %v3234, %v3236
        %v3238 = vrot.slane %v3224, %v3237
        %v3239 = vcombine.low %v3206, %v3222
        %v3240 = vcombine.high %v3206, %v3222
        %v3242 = vunpack.c.l.s4 1934713408
        %v3243 = vunpack.c.0.s8 %v3242
        %v3244 = vlaneseq
        %v3245 = vshrl.u32 %v3244, 7
        %v3246 = vsub.s32 %v3243, %v3245
        %v3247 = vrot.slane %v3239, %v3246
        %v3249 = vunpack.c.l.s4 1934713408
        %v3250 = vunpack.c.0.s8 %v3249
        %v3251 = vlaneseq
        %v3252 = vshrl.u32 %v3251, 7
        %v3253 = vsub.s32 %v3250, %v3252
        %v3254 = vrot.slane %v3240, %v3253
        %v3255 = vcombine.high %v3231, 0.0
        %v3256 = vcombine.high %v3238, 0.0
        %v3257 = vcombine.high %v3247, 0.0
        %v3258 = vcombine.high %v3254, 0.0
        %v3259 = vcombine.low %v3056, %v3144
        %v3260 = vcombine.high %v3056, %v3144
        %v3262 = vunpack.c.l.s4 1983009808
        %v3263 = vunpack.c.0.s8 %v3262
        %v3264 = vlaneseq
        %v3265 = vshrl.u32 %v3264, 7
        %v3266 = vsub.s32 %v3263, %v3265
        %v3267 = vrot.slane %v3259, %v3266
        %v3269 = vunpack.c.l.s4 1983009808
        %v3270 = vunpack.c.0.s8 %v3269
        %v3271 = vlaneseq
        %v3272 = vshrl.u32 %v3271, 7
        %v3273 = vsub.s32 %v3270, %v3272
        %v3274 = vrot.slane %v3260, %v3273
        %v3275 = vcombine.low %v3100, %v3188
        %v3276 = vcombine.high %v3100, %v3188
        %v3278 = vunpack.c.l.s4 1983009808
        %v3279 = vunpack.c.0.s8 %v3278
        %v3280 = vlaneseq
        %v3281 = vshrl.u32 %v3280, 7
        %v3282 = vsub.s32 %v3279, %v3281
        %v3283 = vrot.slane %v3275, %v3282
        %v3285 = vunpack.c.l.s4 1983009808
        %v3286 = vunpack.c.0.s8 %v3285
        %v3287 = vlaneseq
        %v3288 = vshrl.u32 %v3287, 7
        %v3289 = vsub.s32 %v3286, %v3288
        %v3290 = vrot.slane %v3276, %v3289
        %v3291 = vcombine.low %v3267, %v3283
        %v3292 = vcombine.high %v3267, %v3283
        %v3294 = vunpack.c.l.s4 1934713408
        %v3295 = vunpack.c.0.s8 %v3294
        %v3296 = vlaneseq
        %v3297 = vshrl.u32 %v3296, 7
        %v3298 = vsub.s32 %v3295, %v3297
        %v3299 = vrot.slane %v3291, %v3298
        %v3301 = vunpack.c.l.s4 1934713408
        %v3302 = vunpack.c.0.s8 %v3301
        %v3303 = vlaneseq
        %v3304 = vshrl.u32 %v3303, 7
        %v3305 = vsub.s32 %v3302, %v3304
        %v3306 = vrot.slane %v3292, %v3305
        %v3307 = vcombine.low %v3274, %v3290
        %v3308 = vcombine.high %v3274, %v3290
        %v3310 = vunpack.c.l.s4 1934713408
        %v3311 = vunpack.c.0.s8 %v3310
        %v3312 = vlaneseq
        %v3313 = vshrl.u32 %v3312, 7
        %v3314 = vsub.s32 %v3311, %v3313
        %v3315 = vrot.slane %v3307, %v3314
        %v3317 = vunpack.c.l.s4 1934713408
        %v3318 = vunpack.c.0.s8 %v3317
        %v3319 = vlaneseq
        %v3320 = vshrl.u32 %v3319, 7
        %v3321 = vsub.s32 %v3318, %v3320
        %v3322 = vrot.slane %v3308, %v3321
        %v3323 = vcombine.high %v3299, 0.0
        %v3324 = vcombine.high %v3306, 0.0
        %v3325 = vcombine.high %v3315, 0.0
        %v3326 = vcombine.high %v3322, 0.0
        %v3327 = vcombine.low %v3231, %v3238
        %v3329 = vunpack.c.l.s4 1983009808
        %v3330 = vunpack.c.0.s8 %v3329
        %v3331 = vlaneseq
        %v3332 = vshrl.u32 %v3331, 7
        %v3333 = vsub.s32 %v3330, %v3332
        %v3334 = vrot.slane %v3327, %v3333
        %v3335 = vcombine.low %v3255, %v3256
        %v3337 = vunpack.c.l.s4 1983009808
        %v3338 = vunpack.c.0.s8 %v3337
        %v3339 = vlaneseq
        %v3340 = vshrl.u32 %v3339, 7
        %v3341 = vsub.s32 %v3338, %v3340
        %v3342 = vrot.slane %v3335, %v3341
        %v3343 = vcombine.low %v3247, %v3254
        %v3345 = vunpack.c.l.s4 1983009808
        %v3346 = vunpack.c.0.s8 %v3345
        %v3347 = vlaneseq
        %v3348 = vshrl.u32 %v3347, 7
        %v3349 = vsub.s32 %v3346, %v3348
        %v3350 = vrot.slane %v3343, %v3349
        %v3351 = vcombine.low %v3257, %v3258
        %v3353 = vunpack.c.l.s4 1983009808
        %v3354 = vunpack.c.0.s8 %v3353
        %v3355 = vlaneseq
        %v3356 = vshrl.u32 %v3355, 7
        %v3357 = vsub.s32 %v3354, %v3356
        %v3358 = vrot.slane %v3351, %v3357
        %v3359 = vcombine.low %v3334, %v3342
        %v3360 = vcombine.high %v3334, %v3342
        %v3362 = vunpack.c.l.s4 1934713408
        %v3363 = vunpack.c.0.s8 %v3362
        %v3364 = vlaneseq
        %v3365 = vshrl.u32 %v3364, 7
        %v3366 = vsub.s32 %v3363, %v3365
        %v3367 = vrot.slane %v3359, %v3366
        %v3369 = vunpack.c.l.s4 1934713408
        %v3370 = vunpack.c.0.s8 %v3369
        %v3371 = vlaneseq
        %v3372 = vshrl.u32 %v3371, 7
        %v3373 = vsub.s32 %v3370, %v3372
        %v3374 = vrot.slane %v3360, %v3373
        %v3375 = vcombine.low %v3350, %v3358
        %v3376 = vcombine.high %v3350, %v3358
        %v3378 = vunpack.c.l.s4 1934713408
        %v3379 = vunpack.c.0.s8 %v3378
        %v3380 = vlaneseq
        %v3381 = vshrl.u32 %v3380, 7
        %v3382 = vsub.s32 %v3379, %v3381
        %v3383 = vrot.slane %v3375, %v3382
        %v3385 = vunpack.c.l.s4 1934713408
        %v3386 = vunpack.c.0.s8 %v3385
        %v3387 = vlaneseq
        %v3388 = vshrl.u32 %v3387, 7
        %v3389 = vsub.s32 %v3386, %v3388
        %v3390 = vrot.slane %v3376, %v3389
        %v3391 = vcombine.low %v3367, %v3383
        %v3392 = vcombine.high %v3367, %v3383
        %v3393 = vcombine.low %v3374, %v3390
        %v3394 = vcombine.high %v3374, %v3390
        %v3395 = vcombine.low %v3299, %v3306
        %v3397 = vunpack.c.l.s4 1983009808
        %v3398 = vunpack.c.0.s8 %v3397
        %v3399 = vlaneseq
        %v3400 = vshrl.u32 %v3399, 7
        %v3401 = vsub.s32 %v3398, %v3400
        %v3402 = vrot.slane %v3395, %v3401
        %v3403 = vcombine.low %v3323, %v3324
        %v3405 = vunpack.c.l.s4 1983009808
        %v3406 = vunpack.c.0.s8 %v3405
        %v3407 = vlaneseq
        %v3408 = vshrl.u32 %v3407, 7
        %v3409 = vsub.s32 %v3406, %v3408
        %v3410 = vrot.slane %v3403, %v3409
        %v3411 = vcombine.low %v3315, %v3322
        %v3413 = vunpack.c.l.s4 1983009808
        %v3414 = vunpack.c.0.s8 %v3413
        %v3415 = vlaneseq
        %v3416 = vshrl.u32 %v3415, 7
        %v3417 = vsub.s32 %v3414, %v3416
        %v3418 = vrot.slane %v3411, %v3417
        %v3419 = vcombine.low %v3325, %v3326
        %v3421 = vunpack.c.l.s4 1983009808
        %v3422 = vunpack.c.0.s8 %v3421
        %v3423 = vlaneseq
        %v3424 = vshrl.u32 %v3423, 7
        %v3425 = vsub.s32 %v3422, %v3424
        %v3426 = vrot.slane %v3419, %v3425
        %v3427 = vcombine.low %v3402, %v3410
        %v3428 = vcombine.high %v3402, %v3410
        %v3430 = vunpack.c.l.s4 1934713408
        %v3431 = vunpack.c.0.s8 %v3430
        %v3432 = vlaneseq
        %v3433 = vshrl.u32 %v3432, 7
        %v3434 = vsub.s32 %v3431, %v3433
        %v3435 = vrot.slane %v3427, %v3434
        %v3437 = vunpack.c.l.s4 1934713408
        %v3438 = vunpack.c.0.s8 %v3437
        %v3439 = vlaneseq
        %v3440 = vshrl.u32 %v3439, 7
        %v3441 = vsub.s32 %v3438, %v3440
        %v3442 = vrot.slane %v3428, %v3441
        %v3443 = vcombine.low %v3418, %v3426
        %v3444 = vcombine.high %v3418, %v3426
        %v3446 = vunpack.c.l.s4 1934713408
        %v3447 = vunpack.c.0.s8 %v3446
        %v3448 = vlaneseq
        %v3449 = vshrl.u32 %v3448, 7
        %v3450 = vsub.s32 %v3447, %v3449
        %v3451 = vrot.slane %v3443, %v3450
        %v3453 = vunpack.c.l.s4 1934713408
        %v3454 = vunpack.c.0.s8 %v3453
        %v3455 = vlaneseq
        %v3456 = vshrl.u32 %v3455, 7
        %v3457 = vsub.s32 %v3454, %v3456
        %v3458 = vrot.slane %v3444, %v3457
        %v3459 = vcombine.low %v3435, %v3451
        %v3460 = vcombine.high %v3435, %v3451
        %v3461 = vcombine.low %v3442, %v3458
        %v3462 = vcombine.high %v3442, %v3458
        %3465 = vrot.lane.b32.xlu0 %v3392, 16
        %v3466 = vpop.permute.xlu0 %3465
        %3467 = vrot.lane.b32.xlu0 %v3460, 16
        %v3468 = vpop.permute.xlu0 %3467
        %3473 = vrot.lane.b32.xlu0 %v3393, 32
        %v3474 = vpop.permute.xlu0 %3473
        %3475 = vrot.lane.b32.xlu0 %v3461, 32
        %v3476 = vpop.permute.xlu0 %3475
        %3481 = vrot.lane.b32.xlu0 %v3394, 48
        %v3482 = vpop.permute.xlu0 %3481
        %3483 = vrot.lane.b32.xlu0 %v3462, 48
        %v3484 = vpop.permute.xlu0 %3483
        %v3487 = vsel %vm2730, %v3391, %v3466
        %v3488 = vsel %vm2730, %v3459, %v3468
        %vm3489 = vcmask 261120
        %v3490 = vsel %vm3489, %v3487, %v3474
        %v3491 = vsel %vm3489, %v3488, %v3476
        %vm3492 = vcmask 392192
        %v3493 = vsel %vm3492, %v3490, %v3482
        %v3494 = vsel %vm3492, %v3491, %v3484
        %v3495 = vld [vmem:[#allocation19] sm:$0xf]
        %v3496 = vld [vmem:[#allocation19 + $0x4] sm:$0xf]
        %v3497 = vld [vmem:[#allocation19 + $0x8] sm:$0xf]
        %v3498 = vld [vmem:[#allocation19 + $0xc] sm:$0xf]
        %v3499 = vld [vmem:[#allocation19 + $0x10] sm:$0xf]
        %v3500 = vld [vmem:[#allocation19 + $0x14] sm:$0xf]
        %v3501 = vld [vmem:[#allocation19 + $0x18] sm:$0xf]
        %v3502 = vld [vmem:[#allocation19 + $0x1c] sm:$0xf]
        %v3503 = vld [vmem:[%s12] sm:$0x1]
        %v3505 = vlaneseq
        %v3506 = vshrl.u32 %v3505, 7
        %v3507 = vsub.s32 0, %v3506
        %v3508 = vrot.slane %v3503, %v3507
        %v3518 = vunpack.c.l.b16 %v3495
        %v3519 = vunpack.c.l.b16 %v3496
        %v3520 = vunpack.c.l.b16 %v3497
        %v3521 = vunpack.c.l.b16 %v3498
        %v3522 = vunpack.c.l.b16 %v3499
        %v3523 = vunpack.c.l.b16 %v3500
        %v3524 = vunpack.c.l.b16 %v3501
        %v3525 = vunpack.c.l.b16 %v3502
        %v3526 = vpack.c.b16 %v3519, %v3518
        %v3527 = vpack.c.b16 %v3521, %v3520
        %v3528 = vpack.c.b16 %v3523, %v3522
        %v3529 = vpack.c.b16 %v3525, %v3524
        %3534 = vmatprep.subr.bf16.mxu0 0
        %3535 = vmatpush1.bf16.msra.mxu0 %v3526
        %3536 = vmatprep.subr.bf16.mxu0 0
        %3537 = vmatpush1.bf16.msra.mxu0 %v3527
        %3538 = vmatprep.subr.bf16.mxu0 0
        %3539 = vmatpush1.bf16.msra.mxu0 %v3528
        %3540 = vmatprep.subr.bf16.mxu0 0
        %3541 = vmatpush1.bf16.msra.mxu0 %v3529
        %3542 = vmatprep.subr.bf16.mxu0 0
        %3543 = vmatpush1.bf16.msra.mxu0 0
        %3544 = vmatprep.subr.bf16.mxu0 0
        %3545 = vmatpush1.bf16.msra.mxu0 0
        %3546 = vmatprep.subr.bf16.mxu0 0
        %3547 = vmatpush1.bf16.msra.mxu0 0
        %3548 = vmatprep.subr.bf16.mxu0 0
        %3549 = vmatpush1.bf16.msra.mxu0 0
        %3550 = vmatprep.subr.bf16.mxu0 0
        %3551 = vmatpush1.bf16.msra.mxu0 0
        %3552 = vmatprep.subr.bf16.mxu0 0
        %3553 = vmatpush1.bf16.msra.mxu0 0
        %3554 = vmatprep.subr.bf16.mxu0 0
        %3555 = vmatpush1.bf16.msra.mxu0 0
        %3556 = vmatprep.subr.bf16.mxu0 0
        %3557 = vmatpush1.bf16.msra.mxu0 0
        %3558 = vmatprep.subr.bf16.mxu0 0
        %3559 = vmatpush1.bf16.msra.mxu0 0
        %3560 = vmatprep.subr.bf16.mxu0 0
        %3561 = vmatpush1.bf16.msra.mxu0 0
        %3562 = vmatprep.subr.bf16.mxu0 0
        %3563 = vmatpush1.bf16.msra.mxu0 0
        %3564 = vmatprep.subr.bf16.mxu0 0
        %3565 = vmatpush1.bf16.msra.mxu0 0
        %3566 = vmatprep.mubr.bf16.mxu0 0
        %3567 = vmatmul.mubr.bf16.gmra.mrb[0].mxu0 %v1553
        %v3568 = vpop.f32.mrb[0].mxu0
        %v3569 = vadd.f32 %v3508, %v3568
        %v3570 = vpop.f32.mrb[0].mxu0
        %v3571 = vpop.f32.mrb[0].mxu0
        %v3572 = vadd.f32 %v3508, %v3571
        %v3573 = vpop.f32.mrb[0].mxu0
        %3574 = vdwg.mxu0
        %v3575 = vxor.u32 %v3569, 2147483648
        %v3576 = vxor.u32 %v3572, 2147483648
        %v3577 = vmul.f32 %v3575, 1.442695
        %v3578 = vpow.pop %v3577
        %v3579 = vmul.f32 %v3576, 1.442695
        %v3580 = vpow.pop %v3579
        %v3581 = vadd.f32 %v3578, 1.0
        %v3582 = vadd.f32 %v3580, 1.0
        %v3583 = vrcp.pop %v3581
        %v3584 = vmul.f32 1.0, %v3583
        %v3585 = vrcp.pop %v3582
        %v3586 = vmul.f32 1.0, %v3585
        %v3587 = vmul.f32 %v3584, %v3493
        %v3588 = vmul.f32 %v3586, %v3494
        %v3589 = vpack.c.bf16 %v3588, %v3587
        %v3590 = vld [vmem:[#allocation21] sm:$0xf]
        %v3591 = vld [vmem:[#allocation21 + $0x4] sm:$0xf]
        %v3592 = vld [vmem:[#allocation21 + $0x8] sm:$0xf]
        %v3593 = vld [vmem:[#allocation21 + $0xc] sm:$0xf]
        %v3594 = vld [vmem:[#allocation21 + $0x10] sm:$0xf]
        %v3595 = vld [vmem:[#allocation21 + $0x14] sm:$0xf]
        %v3596 = vld [vmem:[#allocation21 + $0x18] sm:$0xf]
        %v3597 = vld [vmem:[#allocation21 + $0x1c] sm:$0xf]
        %v3598 = vld [vmem:[%s14] sm:$0x1]
        %v3600 = vlaneseq
        %v3601 = vshrl.u32 %v3600, 7
        %v3602 = vsub.s32 0, %v3601
        %v3603 = vrot.slane %v3598, %v3602
        %v3613 = vunpack.c.l.b16 %v3590
        %v3614 = vunpack.c.l.b16 %v3591
        %v3615 = vunpack.c.l.b16 %v3592
        %v3616 = vunpack.c.l.b16 %v3593
        %v3617 = vunpack.c.l.b16 %v3594
        %v3618 = vunpack.c.l.b16 %v3595
        %v3619 = vunpack.c.l.b16 %v3596
        %v3620 = vunpack.c.l.b16 %v3597
        %v3621 = vpack.c.b16 %v3614, %v3613
        %v3622 = vpack.c.b16 %v3616, %v3615
        %v3623 = vpack.c.b16 %v3618, %v3617
        %v3624 = vpack.c.b16 %v3620, %v3619
        %v3630 = vsel %vm1475, %v3589, 0
        %3632 = vmatprep.subr.bf16.mxu0 0
        %3633 = vmatpush1.bf16.msra.mxu0 %v3621
        %3634 = vmatprep.subr.bf16.mxu0 0
        %3635 = vmatpush1.bf16.msra.mxu0 %v3622
        %3636 = vmatprep.subr.bf16.mxu0 0
        %3637 = vmatpush1.bf16.msra.mxu0 %v3623
        %3638 = vmatprep.subr.bf16.mxu0 0
        %3639 = vmatpush1.bf16.msra.mxu0 %v3624
        %3640 = vmatprep.subr.bf16.mxu0 0
        %3641 = vmatpush1.bf16.msra.mxu0 0
        %3642 = vmatprep.subr.bf16.mxu0 0
        %3643 = vmatpush1.bf16.msra.mxu0 0
        %3644 = vmatprep.subr.bf16.mxu0 0
        %3645 = vmatpush1.bf16.msra.mxu0 0
        %3646 = vmatprep.subr.bf16.mxu0 0
        %3647 = vmatpush1.bf16.msra.mxu0 0
        %3648 = vmatprep.subr.bf16.mxu0 0
        %3649 = vmatpush1.bf16.msra.mxu0 0
        %3650 = vmatprep.subr.bf16.mxu0 0
        %3651 = vmatpush1.bf16.msra.mxu0 0
        %3652 = vmatprep.subr.bf16.mxu0 0
        %3653 = vmatpush1.bf16.msra.mxu0 0
        %3654 = vmatprep.subr.bf16.mxu0 0
        %3655 = vmatpush1.bf16.msra.mxu0 0
        %3656 = vmatprep.subr.bf16.mxu0 0
        %3657 = vmatpush1.bf16.msra.mxu0 0
        %3658 = vmatprep.subr.bf16.mxu0 0
        %3659 = vmatpush1.bf16.msra.mxu0 0
        %3660 = vmatprep.subr.bf16.mxu0 0
        %3661 = vmatpush1.bf16.msra.mxu0 0
        %3662 = vmatprep.subr.bf16.mxu0 0
        %3663 = vmatpush1.bf16.msra.mxu0 0
        %3664 = vmatprep.mubr.bf16.mxu0 0
        %3665 = vmatmul.mubr.bf16.gmra.mrb[0].mxu0 %v3630
        %v3666 = vpop.f32.mrb[0].mxu0
        %v3667 = vadd.f32 %v3603, %v3666
        %v3668 = vpop.f32.mrb[0].mxu0
        %v3669 = vpop.f32.mrb[0].mxu0
        %v3670 = vadd.f32 %v3603, %v3669
        %v3671 = vpop.f32.mrb[0].mxu0
        %3672 = vdwg.mxu0
        %v3673 = vadd.f32 %v1471, %v3667
        %v3674 = vadd.f32 %v1472, %v3670
        %3675 = vst.msk [vmem:[%s729] sm:$0xff] %vm1475, %v3673
        %3676 = vst.msk [vmem:[%s729 + $0x8] sm:$0xff] %vm1475, %v3674
        %s3677 = sand.u32 %s400, 1
        %s3678 = scalar_lea.sflag [#allocation6], %s3677
        %s3679 = sand.u32 %s400, 1
        %s3680 = smul.addr %s3679, 16
        %s3681 = scalar_lea.vmem [#allocation22], %s3680
        // Predicated region
        $region129: #{tpu_custom_call.1} parent=79 // pred_check
          %p3682 = pneg %p410
        $region130: #{tpu_custom_call.1} parent=79 // pred_check_branch
          %3684 = sbr.rel (%p3682) target = $region132
        $region131: #{tpu_custom_call.1} parent=79 // pred_region
          %s3685 = smul.u32 2, %s44
          %s3687 = ssub.s32 256, 256
          %3688 = vsyncadd %s3678, %s3687
          %s3689 = smul.addr %s43, 2
          %s3690 = sadd.s32 %s3685, %s3689
          %s3691 = smul.addr %s3690, 128
          %s3692 = scalar_lea.hbm %s15, %s3691
          %s3693 = sshll.u32 %s3681, 4
          %s3694 = int_to_ptr.vmem [resolvable:$true] %s3693
          %3699 = dma.vmem_to_hbm [thread:$0]  %s3694, 256, %s3692, %s3678, 128, 128, 8
        $region132: #{tpu_custom_call.1} parent=79 // pred_fallthru
          _
      $region80: #{tpu_custom_call.1} parent=5 // pred_fallthru
        _
      %p3700 = scmp.le.s32.totalorder 2, %s34
      // Predicated region
      $region133: #{tpu_custom_call.1} parent=5 // pred_check
        %p3701 = pneg %p3700
      $region134: #{tpu_custom_call.1} parent=5 // pred_check_branch
        %3703 = sbr.rel (%p3701) target = $region136
      $region135: #{tpu_custom_call.1} parent=5 // pred_region
        %s3704 = ssub.s32 %s34, 2
        // Predicated region
        $region137: #{tpu_custom_call.1} parent=135 // pred_check
          %p3705 = pneg %p416
        $region138: #{tpu_custom_call.1} parent=135 // pred_check_branch
          %3707 = sbr.rel (%p3705) target = $region140
        $region139: #{tpu_custom_call.1} parent=135 // pred_region
          %s3708 = sand.u32 %s401, 1
          %s3709 = scalar_lea.sflag [#allocation6], %s3708
          %s3710 = sand.u32 %s401, 1
          %s3711 = smul.addr %s3710, 16
          %s3712 = scalar_lea.vmem [#allocation22], %s3711
          %3713 = dma.done %s3709, 256
        $region140: #{tpu_custom_call.1} parent=135 // pred_fallthru
          _
      $region136: #{tpu_custom_call.1} parent=5 // pred_fallthru
        _
    $region6: #{tpu_custom_call.1} parent=1 // loop_footer
      %s38 = sadd.s32 1, %s34
    $region7: #{tpu_custom_call.1} parent=1 // loop_footer_branch
      %33 = sbr.rel target = $region3
    $region8: #{tpu_custom_call.1} parent=1 // loop_exit
      _
    %3714 = vsyncpa [#allocation5], 1
    %s3715 = scalar_lea.sflag [#allocation5], 1
    %3716 = vsyncpa %s3715, 1
    %3717 = vsyncpa [#allocation8], 1
    %s3718 = scalar_lea.sflag [#allocation8], 1
    %3719 = vsyncpa %s3718, 1
    %3720 = vsyncpa [#allocation11], 1
    %3721 = vsyncpa [#allocation14], 1
    %3722 = vsyncpa [#allocation17], 1
    %3723 = vsyncpa [#allocation20], 1
    %3724 = vsyncpa [#allocation6], 1
    %s3725 = scalar_lea.sflag [#allocation6], 1
    %3726 = vsyncpa %s3725, 1

</llo_original>
